<compile_context>
chip_gen: v7x
topology: tpu7x:2x2x1
jax: 0.10.0
libtpu: 0.0.40
codegen_flags: <defaults>
</compile_context>

<pallas_src>
import functools

import jax
import jax.numpy as jnp
from jax.experimental import pallas as pl
from jax.experimental.pallas import tpu as pltpu


# ----------------------------- shared math --------------------------------- #

def _layernorm(x, w, b, eps=1e-5):
    mu = jnp.mean(x, axis=-1, keepdims=True)
    var = jnp.mean((x - mu) ** 2, axis=-1, keepdims=True)
    return (x - mu) * jax.lax.rsqrt(var + eps) * w + b


def extract_patches(x, patch):
    # NCHW -> [B, num_patches, C*p*p] with (c, ph, pw) ordering so it matches
    # the flattened PyTorch Conv2d weight [D, C, p, p].
    B, C, H, W = x.shape
    x = x.reshape(B, C, H // patch, patch, W // patch, patch)
    x = x.transpose(0, 2, 4, 1, 3, 5)
    return x.reshape(B, (H // patch) * (W // patch), C * patch * patch)


# ----------------------------- fused kernel -------------------------------- #

def vit_fused_kernel(patches_ref, pw_ref, pb_ref, cls_ref, pos_ref,
                     ln1w_ref, ln1b_ref, wqkv_ref, bqkv_ref, wo_ref, bo_ref,
                     ln2w_ref, ln2b_ref, w1_ref, b1_ref, w2_ref, b2_ref,
                     out_ref, x_scr, *, num_heads):
    l = pl.program_id(1)
    num_layers = pl.num_programs(1)
    S, D = x_scr.shape
    dh = D // num_heads

    # ---- patch embedding: only on the first layer step of each batch elem ----
    @pl.when(l == 0)
    def _():
        p = patches_ref[0].astype(jnp.bfloat16)                       # [N, Cpp]
        proj = jnp.dot(p, pw_ref[...],
                       preferred_element_type=jnp.float32) + pb_ref[...]
        pos = pos_ref[0]                                              # [S, D]
        # cls token row and patch rows written separately (no concatenate).
        x_scr[0:1, :] = cls_ref[...] + pos[0:1, :]
        x_scr[1:, :] = proj + pos[1:, :]

    x = x_scr[...]                                                    # [S, D] fp32

    # ---- multi-head self-attention (pre-LN) ----
    h = _layernorm(x, ln1w_ref[0], ln1b_ref[0]).astype(jnp.bfloat16)
    qkv = jnp.dot(h, wqkv_ref[0],
                  preferred_element_type=jnp.float32) + bqkv_ref[0]   # [S, 3D]
    # 1/sqrt(dh) scale is pre-folded into the packed Q weight/bias.
    q = qkv[:, :D].astype(jnp.bfloat16)
    k = qkv[:, D:2 * D].astype(jnp.bfloat16)
    v = qkv[:, 2 * D:].astype(jnp.bfloat16)

    ctx_heads = []
    for head in range(num_heads):                                     # static unroll
        sl = slice(head * dh, (head + 1) * dh)
        s = jnp.einsum("qd,kd->qk", q[:, sl], k[:, sl],
                       preferred_element_type=jnp.float32)            # [S, S]
        s = s - jnp.max(s, axis=-1, keepdims=True)
        p = jnp.exp(s)
        p = p * pl.reciprocal(jnp.sum(p, axis=-1, keepdims=True), approx=True)
        ctx_heads.append(jnp.dot(p.astype(jnp.bfloat16), v[:, sl],
                                 preferred_element_type=jnp.float32))  # [S, dh]
    ctx = jnp.concatenate(ctx_heads, axis=-1).astype(jnp.bfloat16)    # [S, D]
    attn = jnp.dot(ctx, wo_ref[0],
                   preferred_element_type=jnp.float32) + bo_ref[0]
    x = x + attn

    # ---- MLP (pre-LN) ----
    h2 = _layernorm(x, ln2w_ref[0], ln2b_ref[0]).astype(jnp.bfloat16)
    ff = jnp.dot(h2, w1_ref[0], preferred_element_type=jnp.float32) + b1_ref[0]
    ff = jax.nn.gelu(ff, approximate=True).astype(jnp.bfloat16)
    ff = jnp.dot(ff, w2_ref[0], preferred_element_type=jnp.float32) + b2_ref[0]
    x = x + ff

    x_scr[...] = x                                                    # stays resident

    # ---- single HBM writeback at the end of the layer stack ----
    @pl.when(l == num_layers - 1)
    def _():
        out_ref[0] = x


# ----------------------------- wrapper -------------------------------------- #

def vit_backbone(x_img, packed, *, patch, num_heads):
    B = x_img.shape[0]
    patches = extract_patches(x_img, patch)                 # [B, N, C*p*p]
    N, cpp = patches.shape[1], patches.shape[2]
    S, D = packed["pos"].shape[1], packed["pos"].shape[2]
    L = packed["wqkv"].shape[0]
    F = packed["w1"].shape[2]

    def cspec(arr):                          # constant block over the whole grid
        rank = arr.ndim
        return pl.BlockSpec(tuple(arr.shape), lambda b, l: (0,) * rank)

    def lspec(arr):                          # layer-indexed stacked weights [L, ...]
        rank = arr.ndim
        return pl.BlockSpec((1,) + tuple(arr.shape[1:]),
                            lambda b, l: (l,) + (0,) * (rank - 1))

    # Advisory cost estimate for XLA scheduling around the custom call.
    flops = 2 * B * N * cpp * D + B * L * (
        2 * S * D * (3 * D)      # fused QKV
        + 2 * S * S * D          # attention scores (all heads)
        + 2 * S * S * D          # attention context
        + 2 * S * D * D          # output projection
        + 2 * S * D * F          # MLP fc1
        + 2 * S * F * D)         # MLP fc2
    transcendentals = B * L * (num_heads * S * S + S * F)
    weight_bytes = sum(int(v.size) * v.dtype.itemsize for v in packed.values())
    bytes_accessed = int(patches.size) * 4 + B * weight_bytes + B * S * D * 4

    kernel = functools.partial(vit_fused_kernel, num_heads=num_heads)
    return pl.pallas_call(
        kernel,
        out_shape=jax.ShapeDtypeStruct((B, S, D), jnp.float32),
        grid=(B, L),
        in_specs=[
            pl.BlockSpec((1, N, cpp), lambda b, l: (b, 0, 0)),        # patches
            cspec(packed["pw"]), cspec(packed["pb"]),
            cspec(packed["cls"]), cspec(packed["pos"]),
            lspec(packed["ln1_w"]), lspec(packed["ln1_b"]),
            lspec(packed["wqkv"]), lspec(packed["bqkv"]),
            lspec(packed["wo"]), lspec(packed["bo"]),
            lspec(packed["ln2_w"]), lspec(packed["ln2_b"]),
            lspec(packed["w1"]), lspec(packed["b1"]),
            lspec(packed["w2"]), lspec(packed["b2"]),
        ],
        out_specs=pl.BlockSpec((1, S, D), lambda b, l: (b, 0, 0)),
        scratch_shapes=[pltpu.VMEM((S, D), jnp.float32)],
        compiler_params=pltpu.CompilerParams(
            dimension_semantics=("parallel", "arbitrary"),
            vmem_limit_bytes=32 * 1024 * 1024),
        cost_estimate=pl.CostEstimate(flops=flops,
                                      transcendentals=transcendentals,
                                      bytes_accessed=bytes_accessed),
    )(patches, packed["pw"], packed["pb"], packed["cls"], packed["pos"],
      packed["ln1_w"], packed["ln1_b"], packed["wqkv"], packed["bqkv"],
      packed["wo"], packed["bo"], packed["ln2_w"], packed["ln2_b"],
      packed["w1"], packed["b1"], packed["w2"], packed["b2"])


# ----------------------------- params --------------------------------------- #

def init_params(key, *, in_channels, patch, img_size, d_model, num_layers, d_ff):
    num_patches = (img_size // patch) ** 2
    keys = jax.random.split(key, 4 + num_layers)

    def nrm(k, shape, scale=0.02):
        return (scale * jax.random.normal(k, shape)).astype(jnp.float32)

    cpp = in_channels * patch * patch
    # PyTorch conv weight is [D, C, p, p]; flatten + transpose to [C*p*p, D].
    conv_w = nrm(keys[0], (d_model, in_channels, patch, patch))
    patch_embed = {
        "proj_w": conv_w.reshape(d_model, cpp).T,
        "proj_b": nrm(keys[1], (1, d_model)),
        "cls": jnp.zeros((1, d_model), jnp.float32),                  # nn.Parameter(zeros)
        "pos": jax.random.normal(keys[2], (1, 1 + num_patches, d_model),
                                 jnp.float32),                        # nn.Parameter(randn)
    }

    layers = []
    for li in range(num_layers):
        lk = jax.random.split(keys[4 + li], 8)
        layers.append({
            "ln1_w": jnp.ones((1, d_model), jnp.float32),
            "ln1_b": jnp.zeros((1, d_model), jnp.float32),
            "wq": nrm(lk[0], (d_model, d_model)), "bq": jnp.zeros((1, d_model), jnp.float32),
            "wk": nrm(lk[1], (d_model, d_model)), "bk": jnp.zeros((1, d_model), jnp.float32),
            "wv": nrm(lk[2], (d_model, d_model)), "bv": jnp.zeros((1, d_model), jnp.float32),
            "wo": nrm(lk[3], (d_model, d_model)), "bo": jnp.zeros((1, d_model), jnp.float32),
            "ln2_w": jnp.ones((1, d_model), jnp.float32),
            "ln2_b": jnp.zeros((1, d_model), jnp.float32),
            "w1": nrm(lk[4], (d_model, d_ff)), "b1": jnp.zeros((1, d_ff), jnp.float32),
            "w2": nrm(lk[5], (d_ff, d_model)), "b2": jnp.zeros((1, d_model), jnp.float32),
        })
    return {"patch_embed": patch_embed, "layers": layers}


def pack_params(params, *, num_heads):
    """Stack per-layer weights into [L, ...]; bf16 weights, fp32 biases/LN.

    The 1/sqrt(head_dim) attention scale is folded into the Q weight/bias so
    the kernel does not need an extra per-layer multiply.
    """
    pe = params["patch_embed"]
    layers = params["layers"]
    stack = lambda name: jnp.stack([lp[name] for lp in layers], axis=0)
    bf16, f32 = jnp.bfloat16, jnp.float32
    d_model = pe["proj_w"].shape[1]
    scale = 1.0 / float(d_model // num_heads) ** 0.5
    wqkv = jnp.concatenate([stack("wq") * scale, stack("wk"), stack("wv")],
                           axis=-1)                                   # [L, D, 3D]
    bqkv = jnp.concatenate([stack("bq") * scale, stack("bk"), stack("bv")],
                           axis=-1)                                   # [L, 1, 3D]
    return {
        "pw": pe["proj_w"].astype(bf16), "pb": pe["proj_b"].astype(f32),
        "cls": pe["cls"].astype(f32), "pos": pe["pos"].astype(f32),
        "ln1_w": stack("ln1_w"), "ln1_b": stack("ln1_b"),
        "wqkv": wqkv.astype(bf16), "bqkv": bqkv.astype(f32),
        "wo": stack("wo").astype(bf16), "bo": stack("bo"),
        "ln2_w": stack("ln2_w"), "ln2_b": stack("ln2_b"),
        "w1": stack("w1").astype(bf16), "b1": stack("b1"),
        "w2": stack("w2").astype(bf16), "b2": stack("b2"),
    }


# ----------------------------- pure-JAX reference ---------------------------- #

def _attention_ref(h, lp, num_heads):
    B, S, D = h.shape
    dh = D // num_heads
    q = h @ lp["wq"] + lp["bq"]
    k = h @ lp["wk"] + lp["bk"]
    v = h @ lp["wv"] + lp["bv"]
    q = q.reshape(B, S, num_heads, dh).transpose(0, 2, 1, 3)
    k = k.reshape(B, S, num_heads, dh).transpose(0, 2, 1, 3)
    v = v.reshape(B, S, num_heads, dh).transpose(0, 2, 1, 3)
    s = jnp.einsum("bhqd,bhkd->bhqk", q, k) / (dh ** 0.5)
    p = jax.nn.softmax(s, axis=-1)
    ctx = jnp.einsum("bhqk,bhkd->bhqd", p, v)
    ctx = ctx.transpose(0, 2, 1, 3).reshape(B, S, D)
    return ctx @ lp["wo"] + lp["bo"]


def vit_reference(x_img, params, *, patch, num_heads):
    pe = params["patch_embed"]
    patches = extract_patches(x_img, patch)
    B = patches.shape[0]
    D = pe["proj_w"].shape[1]
    proj = patches @ pe["proj_w"] + pe["proj_b"]
    cls = jnp.broadcast_to(pe["cls"][None, :, :], (B, 1, D))
    x = jnp.concatenate([cls, proj], axis=1) + pe["pos"]
    for lp in params["layers"]:
        h = _layernorm(x, lp["ln1_w"], lp["ln1_b"])
        x = x + _attention_ref(h, lp, num_heads)
        h2 = _layernorm(x, lp["ln2_w"], lp["ln2_b"])
        x = x + (jax.nn.gelu(h2 @ lp["w1"] + lp["b1"], approximate=True)
                 @ lp["w2"] + lp["b2"])
    return x


# ----------------------------- main ------------------------------------------ #

if __name__ == "__main__":
    # Small shapes consistent with the module: batch=2, in_channels=4,
    # img_size=16, patch_size=4 -> 16 patches, seq=17; d_model=48 so the
    # module's hard-coded 12 heads divide evenly (head_dim=4); 12 layers; ff=4*d.
    B, C, IMG, PATCH = 2, 4, 16, 4
    D_MODEL, NUM_LAYERS, NUM_HEADS = 48, 12, 12
    D_FF = 4 * D_MODEL

    key = jax.random.PRNGKey(0)
    k_img, k_par = jax.random.split(key)
    x_img = jax.random.normal(k_img, (B, C, IMG, IMG), jnp.float32)   # NCHW like PyTorch

    params = init_params(k_par, in_channels=C, patch=PATCH, img_size=IMG,
                         d_model=D_MODEL, num_layers=NUM_LAYERS, d_ff=D_FF)
    packed = pack_params(params, num_heads=NUM_HEADS)

    fwd = jax.jit(functools.partial(vit_backbone, patch=PATCH, num_heads=NUM_HEADS))
    out = jax.block_until_ready(fwd(x_img, packed))

    assert out.shape == (B, 1 + (IMG // PATCH) ** 2, D_MODEL)
    assert bool(jnp.all(jnp.isfinite(out)))

    # Verify against the fp32 pure-JAX reference (kernel uses bf16 matmul
    # operands with fp32 accumulation, so allow a loose tolerance).
    ref = vit_reference(x_img, params, patch=PATCH, num_heads=NUM_HEADS)
    err = float(jnp.max(jnp.abs(out - ref)))
    assert err < 0.1, f"max |pallas - reference| = {err}"

    print("KERNEL_OK")
</pallas_src>

<mosaic_0001>
module attributes {stable_mosaic.version = 11 : i64} {
  func.func @vit_fused_kernel(%arg0: i32, %arg1: i32, %arg2: memref<1x16x64xf32, #tpu.memory_space<vmem>>, %arg3: memref<64x48xbf16, #tpu.memory_space<vmem>>, %arg4: memref<1x48xf32, #tpu.memory_space<vmem>>, %arg5: memref<1x48xf32, #tpu.memory_space<vmem>>, %arg6: memref<1x17x48xf32, #tpu.memory_space<vmem>>, %arg7: memref<1x1x48xf32, #tpu.memory_space<vmem>>, %arg8: memref<1x1x48xf32, #tpu.memory_space<vmem>>, %arg9: memref<1x48x144xbf16, #tpu.memory_space<vmem>>, %arg10: memref<1x1x144xf32, #tpu.memory_space<vmem>>, %arg11: memref<1x48x48xbf16, #tpu.memory_space<vmem>>, %arg12: memref<1x1x48xf32, #tpu.memory_space<vmem>>, %arg13: memref<1x1x48xf32, #tpu.memory_space<vmem>>, %arg14: memref<1x1x48xf32, #tpu.memory_space<vmem>>, %arg15: memref<1x48x192xbf16, #tpu.memory_space<vmem>>, %arg16: memref<1x1x192xf32, #tpu.memory_space<vmem>>, %arg17: memref<1x192x48xbf16, #tpu.memory_space<vmem>>, %arg18: memref<1x1x48xf32, #tpu.memory_space<vmem>>, %arg19: memref<1x17x48xf32, #tpu.memory_space<vmem>>, %arg20: memref<17x48xf32, #tpu.memory_space<vmem>>) attributes {dimension_semantics = [#tpu.dimension_semantics<parallel>, #tpu.dimension_semantics<arbitrary>], iteration_bounds = array<i64: 2, 12>, scalar_prefetch = 0 : i64, scratch_operands = 1 : i64, tpu.core_type = #tpu.core_type<tc>, window_params = [{transform_indices = @transform_0, window_bounds = array<i64: 1, 16, 64>}, {pipeline_mode = #tpu.pipeline_mode<synchronous>, transform_indices = @transform_1, window_bounds = array<i64: 64, 48>}, {pipeline_mode = #tpu.pipeline_mode<synchronous>, transform_indices = @transform_2, window_bounds = array<i64: 1, 48>}, {pipeline_mode = #tpu.pipeline_mode<synchronous>, transform_indices = @transform_3, window_bounds = array<i64: 1, 48>}, {pipeline_mode = #tpu.pipeline_mode<synchronous>, transform_indices = @transform_4, window_bounds = array<i64: 1, 17, 48>}, {transform_indices = @transform_5, window_bounds = array<i64: 1, 1, 48>}, {transform_indices = @transform_6, window_bounds = array<i64: 1, 1, 48>}, {transform_indices = @transform_7, window_bounds = array<i64: 1, 48, 144>}, {transform_indices = @transform_8, window_bounds = array<i64: 1, 1, 144>}, {transform_indices = @transform_9, window_bounds = array<i64: 1, 48, 48>}, {transform_indices = @transform_10, window_bounds = array<i64: 1, 1, 48>}, {transform_indices = @transform_11, window_bounds = array<i64: 1, 1, 48>}, {transform_indices = @transform_12, window_bounds = array<i64: 1, 1, 48>}, {transform_indices = @transform_13, window_bounds = array<i64: 1, 48, 192>}, {transform_indices = @transform_14, window_bounds = array<i64: 1, 1, 192>}, {transform_indices = @transform_15, window_bounds = array<i64: 1, 192, 48>}, {transform_indices = @transform_16, window_bounds = array<i64: 1, 1, 48>}, {transform_indices = @transform_17, window_bounds = array<i64: 1, 17, 48>}]} {
    %c0_i32 = arith.constant 0 : i32
    %0 = arith.cmpi eq, %arg1, %c0_i32 : i32
    %1 = arith.extui %0 : i1 to i32
    %c0_i32_0 = arith.constant 0 : i32
    %2 = arith.cmpi ne, %1, %c0_i32_0 : i32
    scf.if %2 {
      %c0_106 = arith.constant 0 : index
      %c0_107 = arith.constant 0 : index
      %c0_108 = arith.constant 0 : index
      %306 = vector.load %arg2[%c0_106, %c0_107, %c0_108] : memref<1x16x64xf32, #tpu.memory_space<vmem>>, vector<1x16x64xf32>
      %307 = vector.shape_cast %306 : vector<1x16x64xf32> to vector<16x64xf32>
      %308 = arith.truncf %307 : vector<16x64xf32> to vector<16x64xbf16>
      %c0_109 = arith.constant 0 : index
      %c0_110 = arith.constant 0 : index
      %309 = vector.load %arg3[%c0_109, %c0_110] : memref<64x48xbf16, #tpu.memory_space<vmem>>, vector<64x48xbf16>
      %cst_111 = arith.constant dense<0.000000e+00> : vector<16x48xf32>
      %310 = tpu.matmul %308, %309, %cst_111 {dimension_numbers = #tpu.dot_dimension_numbers<[1], [0], [0], [1], [0, 0, 1, 1], [], []>} : vector<16x64xbf16>, vector<64x48xbf16>, vector<16x48xf32> -> vector<16x48xf32>
      %c0_112 = arith.constant 0 : index
      %c0_113 = arith.constant 0 : index
      %311 = vector.load %arg4[%c0_112, %c0_113] : memref<1x48xf32, #tpu.memory_space<vmem>>, vector<1x48xf32>
      %312 = vector.broadcast %311 : vector<1x48xf32> to vector<16x48xf32>
      %313 = arith.addf %310, %312 : vector<16x48xf32>
      %c0_114 = arith.constant 0 : index
      %c0_115 = arith.constant 0 : index
      %c0_116 = arith.constant 0 : index
      %314 = vector.load %arg6[%c0_114, %c0_115, %c0_116] : memref<1x17x48xf32, #tpu.memory_space<vmem>>, vector<1x17x48xf32>
      %315 = vector.shape_cast %314 : vector<1x17x48xf32> to vector<17x48xf32>
      %c0_117 = arith.constant 0 : index
      %c0_118 = arith.constant 0 : index
      %316 = vector.load %arg5[%c0_117, %c0_118] : memref<1x48xf32, #tpu.memory_space<vmem>>, vector<1x48xf32>
      %317 = vector.extract_strided_slice %315 {offsets = [0, 0], sizes = [1, 48], strides = [1, 1]} : vector<17x48xf32> to vector<1x48xf32>
      %318 = arith.addf %316, %317 : vector<1x48xf32>
      %c0_119 = arith.constant 0 : index
      %c0_120 = arith.constant 0 : index
      %319 = vector.load %arg20[%c0_119, %c0_120] : memref<17x48xf32, #tpu.memory_space<vmem>>, vector<1x48xf32>
      tpu.vector_store %arg20[%c0_119, %c0_120], %318 {strides = array<i32>} : memref<17x48xf32, #tpu.memory_space<vmem>>, vector<1x48xf32>,
      %320 = vector.extract_strided_slice %315 {offsets = [1, 0], sizes = [16, 48], strides = [1, 1]} : vector<17x48xf32> to vector<16x48xf32>
      %321 = arith.addf %313, %320 : vector<16x48xf32>
      %c1 = arith.constant 1 : index
      %c0_121 = arith.constant 0 : index
      %322 = vector.load %arg20[%c1, %c0_121] : memref<17x48xf32, #tpu.memory_space<vmem>>, vector<16x48xf32>
      tpu.vector_store %arg20[%c1, %c0_121], %321 {strides = array<i32>} : memref<17x48xf32, #tpu.memory_space<vmem>>, vector<16x48xf32>,
    } else {
    }
    %c0 = arith.constant 0 : index
    %c0_1 = arith.constant 0 : index
    %3 = vector.load %arg20[%c0, %c0_1] : memref<17x48xf32, #tpu.memory_space<vmem>>, vector<17x48xf32>
    %c0_2 = arith.constant 0 : index
    %c0_3 = arith.constant 0 : index
    %c0_4 = arith.constant 0 : index
    %4 = vector.load %arg7[%c0_2, %c0_3, %c0_4] : memref<1x1x48xf32, #tpu.memory_space<vmem>>, vector<1x1x48xf32>
    %5 = vector.shape_cast %4 : vector<1x1x48xf32> to vector<1x48xf32>
    %c0_5 = arith.constant 0 : index
    %c0_6 = arith.constant 0 : index
    %c0_7 = arith.constant 0 : index
    %6 = vector.load %arg8[%c0_5, %c0_6, %c0_7] : memref<1x1x48xf32, #tpu.memory_space<vmem>>, vector<1x1x48xf32>
    %7 = vector.shape_cast %6 : vector<1x1x48xf32> to vector<1x48xf32>
    %cst = arith.constant dense<0.000000e+00> : vector<17xf32>
    %8 = vector.multi_reduction <add>, %3, %cst [1] : vector<17x48xf32> to vector<17xf32>
    %9 = vector.shape_cast %8 : vector<17xf32> to vector<17x1xf32>
    %cst_8 = arith.constant 4.800000e+01 : f32
    %10 = vector.broadcast %cst_8 : f32 to vector<17x1xf32>
    %11 = arith.divf %9, %10 : vector<17x1xf32>
    %12 = vector.broadcast %11 : vector<17x1xf32> to vector<17x48xf32>
    %13 = arith.subf %3, %12 : vector<17x48xf32>
    %14 = arith.mulf %13, %13 : vector<17x48xf32>
    %cst_9 = arith.constant dense<0.000000e+00> : vector<17xf32>
    %15 = vector.multi_reduction <add>, %14, %cst_9 [1] : vector<17x48xf32> to vector<17xf32>
    %16 = vector.shape_cast %15 : vector<17xf32> to vector<17x1xf32>
    %cst_10 = arith.constant 4.800000e+01 : f32
    %17 = vector.broadcast %cst_10 : f32 to vector<17x1xf32>
    %18 = arith.divf %16, %17 : vector<17x1xf32>
    %19 = vector.broadcast %11 : vector<17x1xf32> to vector<17x48xf32>
    %20 = arith.subf %3, %19 : vector<17x48xf32>
    %cst_11 = arith.constant 9.99999974E-6 : f32
    %21 = vector.broadcast %cst_11 : f32 to vector<17x1xf32>
    %22 = arith.addf %18, %21 : vector<17x1xf32>
    %23 = math.rsqrt %22 : vector<17x1xf32>
    %24 = vector.broadcast %23 : vector<17x1xf32> to vector<17x48xf32>
    %25 = arith.mulf %20, %24 : vector<17x48xf32>
    %26 = vector.broadcast %5 : vector<1x48xf32> to vector<17x48xf32>
    %27 = arith.mulf %25, %26 : vector<17x48xf32>
    %28 = vector.broadcast %7 : vector<1x48xf32> to vector<17x48xf32>
    %29 = arith.addf %27, %28 : vector<17x48xf32>
    %30 = arith.truncf %29 : vector<17x48xf32> to vector<17x48xbf16>
    %c0_12 = arith.constant 0 : index
    %c0_13 = arith.constant 0 : index
    %c0_14 = arith.constant 0 : index
    %31 = vector.load %arg9[%c0_12, %c0_13, %c0_14] : memref<1x48x144xbf16, #tpu.memory_space<vmem>>, vector<1x48x144xbf16>
    %32 = vector.shape_cast %31 : vector<1x48x144xbf16> to vector<48x144xbf16>
    %cst_15 = arith.constant dense<0.000000e+00> : vector<17x144xf32>
    %33 = tpu.matmul %30, %32, %cst_15 {dimension_numbers = #tpu.dot_dimension_numbers<[1], [0], [0], [1], [0, 0, 1, 1], [], []>} : vector<17x48xbf16>, vector<48x144xbf16>, vector<17x144xf32> -> vector<17x144xf32>
    %c0_16 = arith.constant 0 : index
    %c0_17 = arith.constant 0 : index
    %c0_18 = arith.constant 0 : index
    %34 = vector.load %arg10[%c0_16, %c0_17, %c0_18] : memref<1x1x144xf32, #tpu.memory_space<vmem>>, vector<1x1x144xf32>
    %35 = vector.shape_cast %34 : vector<1x1x144xf32> to vector<1x144xf32>
    %36 = vector.broadcast %35 : vector<1x144xf32> to vector<17x144xf32>
    %37 = arith.addf %33, %36 : vector<17x144xf32>
    %38 = vector.extract_strided_slice %37 {offsets = [0, 0], sizes = [17, 48], strides = [1, 1]} : vector<17x144xf32> to vector<17x48xf32>
    %39 = arith.truncf %38 : vector<17x48xf32> to vector<17x48xbf16>
    %40 = vector.extract_strided_slice %37 {offsets = [0, 48], sizes = [17, 48], strides = [1, 1]} : vector<17x144xf32> to vector<17x48xf32>
    %41 = arith.truncf %40 : vector<17x48xf32> to vector<17x48xbf16>
    %42 = vector.extract_strided_slice %37 {offsets = [0, 96], sizes = [17, 48], strides = [1, 1]} : vector<17x144xf32> to vector<17x48xf32>
    %43 = arith.truncf %42 : vector<17x48xf32> to vector<17x48xbf16>
    %44 = vector.extract_strided_slice %39 {offsets = [0, 0], sizes = [17, 4], strides = [1, 1]} : vector<17x48xbf16> to vector<17x4xbf16>
    %45 = vector.extract_strided_slice %41 {offsets = [0, 0], sizes = [17, 4], strides = [1, 1]} : vector<17x48xbf16> to vector<17x4xbf16>
    "tpu.trace_start"() <{level = 10 : i32, message = "qd,kd->qk"}> : () -> ()
    %cst_19 = arith.constant dense<0.000000e+00> : vector<17x17xf32>
    %46 = tpu.matmul %44, %45, %cst_19 {dimension_numbers = #tpu.dot_dimension_numbers<[1], [1], [0], [0], [0, 0, 1, 0], [], []>} : vector<17x4xbf16>, vector<17x4xbf16>, vector<17x17xf32> -> vector<17x17xf32>
    "tpu.trace_stop"() : () -> ()
    %cst_20 = arith.constant dense<0xFF800000> : vector<17xf32>
    %47 = vector.multi_reduction <maximumf>, %46, %cst_20 [1] : vector<17x17xf32> to vector<17xf32>
    %48 = vector.shape_cast %47 : vector<17xf32> to vector<17x1xf32>
    %49 = vector.broadcast %48 : vector<17x1xf32> to vector<17x17xf32>
    %50 = arith.subf %46, %49 : vector<17x17xf32>
    %51 = math.exp %50 : vector<17x17xf32>
    %cst_21 = arith.constant dense<0.000000e+00> : vector<17xf32>
    %52 = vector.multi_reduction <add>, %51, %cst_21 [1] : vector<17x17xf32> to vector<17xf32>
    %53 = vector.shape_cast %52 : vector<17xf32> to vector<17x1xf32>
    %54 = tpu.reciprocal %53 {approx = true} : vector<17x1xf32> -> vector<17x1xf32>
    %55 = vector.broadcast %54 : vector<17x1xf32> to vector<17x17xf32>
    %56 = arith.mulf %51, %55 : vector<17x17xf32>
    %57 = arith.truncf %56 : vector<17x17xf32> to vector<17x17xbf16>
    %58 = vector.extract_strided_slice %43 {offsets = [0, 0], sizes = [17, 4], strides = [1, 1]} : vector<17x48xbf16> to vector<17x4xbf16>
    %cst_22 = arith.constant dense<0.000000e+00> : vector<17x4xf32>
    %59 = tpu.matmul %57, %58, %cst_22 {dimension_numbers = #tpu.dot_dimension_numbers<[1], [0], [0], [1], [0, 0, 1, 1], [], []>} : vector<17x17xbf16>, vector<17x4xbf16>, vector<17x4xf32> -> vector<17x4xf32>
    %60 = vector.extract_strided_slice %39 {offsets = [0, 4], sizes = [17, 4], strides = [1, 1]} : vector<17x48xbf16> to vector<17x4xbf16>
    %61 = vector.extract_strided_slice %41 {offsets = [0, 4], sizes = [17, 4], strides = [1, 1]} : vector<17x48xbf16> to vector<17x4xbf16>
    "tpu.trace_start"() <{level = 10 : i32, message = "qd,kd->qk"}> : () -> ()
    %cst_23 = arith.constant dense<0.000000e+00> : vector<17x17xf32>
    %62 = tpu.matmul %60, %61, %cst_23 {dimension_numbers = #tpu.dot_dimension_numbers<[1], [1], [0], [0], [0, 0, 1, 0], [], []>} : vector<17x4xbf16>, vector<17x4xbf16>, vector<17x17xf32> -> vector<17x17xf32>
    "tpu.trace_stop"() : () -> ()
    %cst_24 = arith.constant dense<0xFF800000> : vector<17xf32>
    %63 = vector.multi_reduction <maximumf>, %62, %cst_24 [1] : vector<17x17xf32> to vector<17xf32>
    %64 = vector.shape_cast %63 : vector<17xf32> to vector<17x1xf32>
    %65 = vector.broadcast %64 : vector<17x1xf32> to vector<17x17xf32>
    %66 = arith.subf %62, %65 : vector<17x17xf32>
    %67 = math.exp %66 : vector<17x17xf32>
    %cst_25 = arith.constant dense<0.000000e+00> : vector<17xf32>
    %68 = vector.multi_reduction <add>, %67, %cst_25 [1] : vector<17x17xf32> to vector<17xf32>
    %69 = vector.shape_cast %68 : vector<17xf32> to vector<17x1xf32>
    %70 = tpu.reciprocal %69 {approx = true} : vector<17x1xf32> -> vector<17x1xf32>
    %71 = vector.broadcast %70 : vector<17x1xf32> to vector<17x17xf32>
    %72 = arith.mulf %67, %71 : vector<17x17xf32>
    %73 = arith.truncf %72 : vector<17x17xf32> to vector<17x17xbf16>
    %74 = vector.extract_strided_slice %43 {offsets = [0, 4], sizes = [17, 4], strides = [1, 1]} : vector<17x48xbf16> to vector<17x4xbf16>
    %cst_26 = arith.constant dense<0.000000e+00> : vector<17x4xf32>
    %75 = tpu.matmul %73, %74, %cst_26 {dimension_numbers = #tpu.dot_dimension_numbers<[1], [0], [0], [1], [0, 0, 1, 1], [], []>} : vector<17x17xbf16>, vector<17x4xbf16>, vector<17x4xf32> -> vector<17x4xf32>
    %76 = vector.extract_strided_slice %39 {offsets = [0, 8], sizes = [17, 4], strides = [1, 1]} : vector<17x48xbf16> to vector<17x4xbf16>
    %77 = vector.extract_strided_slice %41 {offsets = [0, 8], sizes = [17, 4], strides = [1, 1]} : vector<17x48xbf16> to vector<17x4xbf16>
    "tpu.trace_start"() <{level = 10 : i32, message = "qd,kd->qk"}> : () -> ()
    %cst_27 = arith.constant dense<0.000000e+00> : vector<17x17xf32>
    %78 = tpu.matmul %76, %77, %cst_27 {dimension_numbers = #tpu.dot_dimension_numbers<[1], [1], [0], [0], [0, 0, 1, 0], [], []>} : vector<17x4xbf16>, vector<17x4xbf16>, vector<17x17xf32> -> vector<17x17xf32>
    "tpu.trace_stop"() : () -> ()
    %cst_28 = arith.constant dense<0xFF800000> : vector<17xf32>
    %79 = vector.multi_reduction <maximumf>, %78, %cst_28 [1] : vector<17x17xf32> to vector<17xf32>
    %80 = vector.shape_cast %79 : vector<17xf32> to vector<17x1xf32>
    %81 = vector.broadcast %80 : vector<17x1xf32> to vector<17x17xf32>
    %82 = arith.subf %78, %81 : vector<17x17xf32>
    %83 = math.exp %82 : vector<17x17xf32>
    %cst_29 = arith.constant dense<0.000000e+00> : vector<17xf32>
    %84 = vector.multi_reduction <add>, %83, %cst_29 [1] : vector<17x17xf32> to vector<17xf32>
    %85 = vector.shape_cast %84 : vector<17xf32> to vector<17x1xf32>
    %86 = tpu.reciprocal %85 {approx = true} : vector<17x1xf32> -> vector<17x1xf32>
    %87 = vector.broadcast %86 : vector<17x1xf32> to vector<17x17xf32>
    %88 = arith.mulf %83, %87 : vector<17x17xf32>
    %89 = arith.truncf %88 : vector<17x17xf32> to vector<17x17xbf16>
    %90 = vector.extract_strided_slice %43 {offsets = [0, 8], sizes = [17, 4], strides = [1, 1]} : vector<17x48xbf16> to vector<17x4xbf16>
    %cst_30 = arith.constant dense<0.000000e+00> : vector<17x4xf32>
    %91 = tpu.matmul %89, %90, %cst_30 {dimension_numbers = #tpu.dot_dimension_numbers<[1], [0], [0], [1], [0, 0, 1, 1], [], []>} : vector<17x17xbf16>, vector<17x4xbf16>, vector<17x4xf32> -> vector<17x4xf32>
    %92 = vector.extract_strided_slice %39 {offsets = [0, 12], sizes = [17, 4], strides = [1, 1]} : vector<17x48xbf16> to vector<17x4xbf16>
    %93 = vector.extract_strided_slice %41 {offsets = [0, 12], sizes = [17, 4], strides = [1, 1]} : vector<17x48xbf16> to vector<17x4xbf16>
    "tpu.trace_start"() <{level = 10 : i32, message = "qd,kd->qk"}> : () -> ()
    %cst_31 = arith.constant dense<0.000000e+00> : vector<17x17xf32>
    %94 = tpu.matmul %92, %93, %cst_31 {dimension_numbers = #tpu.dot_dimension_numbers<[1], [1], [0], [0], [0, 0, 1, 0], [], []>} : vector<17x4xbf16>, vector<17x4xbf16>, vector<17x17xf32> -> vector<17x17xf32>
    "tpu.trace_stop"() : () -> ()
    %cst_32 = arith.constant dense<0xFF800000> : vector<17xf32>
    %95 = vector.multi_reduction <maximumf>, %94, %cst_32 [1] : vector<17x17xf32> to vector<17xf32>
    %96 = vector.shape_cast %95 : vector<17xf32> to vector<17x1xf32>
    %97 = vector.broadcast %96 : vector<17x1xf32> to vector<17x17xf32>
    %98 = arith.subf %94, %97 : vector<17x17xf32>
    %99 = math.exp %98 : vector<17x17xf32>
    %cst_33 = arith.constant dense<0.000000e+00> : vector<17xf32>
    %100 = vector.multi_reduction <add>, %99, %cst_33 [1] : vector<17x17xf32> to vector<17xf32>
    %101 = vector.shape_cast %100 : vector<17xf32> to vector<17x1xf32>
    %102 = tpu.reciprocal %101 {approx = true} : vector<17x1xf32> -> vector<17x1xf32>
    %103 = vector.broadcast %102 : vector<17x1xf32> to vector<17x17xf32>
    %104 = arith.mulf %99, %103 : vector<17x17xf32>
    %105 = arith.truncf %104 : vector<17x17xf32> to vector<17x17xbf16>
    %106 = vector.extract_strided_slice %43 {offsets = [0, 12], sizes = [17, 4], strides = [1, 1]} : vector<17x48xbf16> to vector<17x4xbf16>
    %cst_34 = arith.constant dense<0.000000e+00> : vector<17x4xf32>
    %107 = tpu.matmul %105, %106, %cst_34 {dimension_numbers = #tpu.dot_dimension_numbers<[1], [0], [0], [1], [0, 0, 1, 1], [], []>} : vector<17x17xbf16>, vector<17x4xbf16>, vector<17x4xf32> -> vector<17x4xf32>
    %108 = vector.extract_strided_slice %39 {offsets = [0, 16], sizes = [17, 4], strides = [1, 1]} : vector<17x48xbf16> to vector<17x4xbf16>
    %109 = vector.extract_strided_slice %41 {offsets = [0, 16], sizes = [17, 4], strides = [1, 1]} : vector<17x48xbf16> to vector<17x4xbf16>
    "tpu.trace_start"() <{level = 10 : i32, message = "qd,kd->qk"}> : () -> ()
    %cst_35 = arith.constant dense<0.000000e+00> : vector<17x17xf32>
    %110 = tpu.matmul %108, %109, %cst_35 {dimension_numbers = #tpu.dot_dimension_numbers<[1], [1], [0], [0], [0, 0, 1, 0], [], []>} : vector<17x4xbf16>, vector<17x4xbf16>, vector<17x17xf32> -> vector<17x17xf32>
    "tpu.trace_stop"() : () -> ()
    %cst_36 = arith.constant dense<0xFF800000> : vector<17xf32>
    %111 = vector.multi_reduction <maximumf>, %110, %cst_36 [1] : vector<17x17xf32> to vector<17xf32>
    %112 = vector.shape_cast %111 : vector<17xf32> to vector<17x1xf32>
    %113 = vector.broadcast %112 : vector<17x1xf32> to vector<17x17xf32>
    %114 = arith.subf %110, %113 : vector<17x17xf32>
    %115 = math.exp %114 : vector<17x17xf32>
    %cst_37 = arith.constant dense<0.000000e+00> : vector<17xf32>
    %116 = vector.multi_reduction <add>, %115, %cst_37 [1] : vector<17x17xf32> to vector<17xf32>
    %117 = vector.shape_cast %116 : vector<17xf32> to vector<17x1xf32>
    %118 = tpu.reciprocal %117 {approx = true} : vector<17x1xf32> -> vector<17x1xf32>
    %119 = vector.broadcast %118 : vector<17x1xf32> to vector<17x17xf32>
    %120 = arith.mulf %115, %119 : vector<17x17xf32>
    %121 = arith.truncf %120 : vector<17x17xf32> to vector<17x17xbf16>
    %122 = vector.extract_strided_slice %43 {offsets = [0, 16], sizes = [17, 4], strides = [1, 1]} : vector<17x48xbf16> to vector<17x4xbf16>
    %cst_38 = arith.constant dense<0.000000e+00> : vector<17x4xf32>
    %123 = tpu.matmul %121, %122, %cst_38 {dimension_numbers = #tpu.dot_dimension_numbers<[1], [0], [0], [1], [0, 0, 1, 1], [], []>} : vector<17x17xbf16>, vector<17x4xbf16>, vector<17x4xf32> -> vector<17x4xf32>
    %124 = vector.extract_strided_slice %39 {offsets = [0, 20], sizes = [17, 4], strides = [1, 1]} : vector<17x48xbf16> to vector<17x4xbf16>
    %125 = vector.extract_strided_slice %41 {offsets = [0, 20], sizes = [17, 4], strides = [1, 1]} : vector<17x48xbf16> to vector<17x4xbf16>
    "tpu.trace_start"() <{level = 10 : i32, message = "qd,kd->qk"}> : () -> ()
    %cst_39 = arith.constant dense<0.000000e+00> : vector<17x17xf32>
    %126 = tpu.matmul %124, %125, %cst_39 {dimension_numbers = #tpu.dot_dimension_numbers<[1], [1], [0], [0], [0, 0, 1, 0], [], []>} : vector<17x4xbf16>, vector<17x4xbf16>, vector<17x17xf32> -> vector<17x17xf32>
    "tpu.trace_stop"() : () -> ()
    %cst_40 = arith.constant dense<0xFF800000> : vector<17xf32>
    %127 = vector.multi_reduction <maximumf>, %126, %cst_40 [1] : vector<17x17xf32> to vector<17xf32>
    %128 = vector.shape_cast %127 : vector<17xf32> to vector<17x1xf32>
    %129 = vector.broadcast %128 : vector<17x1xf32> to vector<17x17xf32>
    %130 = arith.subf %126, %129 : vector<17x17xf32>
    %131 = math.exp %130 : vector<17x17xf32>
    %cst_41 = arith.constant dense<0.000000e+00> : vector<17xf32>
    %132 = vector.multi_reduction <add>, %131, %cst_41 [1] : vector<17x17xf32> to vector<17xf32>
    %133 = vector.shape_cast %132 : vector<17xf32> to vector<17x1xf32>
    %134 = tpu.reciprocal %133 {approx = true} : vector<17x1xf32> -> vector<17x1xf32>
    %135 = vector.broadcast %134 : vector<17x1xf32> to vector<17x17xf32>
    %136 = arith.mulf %131, %135 : vector<17x17xf32>
    %137 = arith.truncf %136 : vector<17x17xf32> to vector<17x17xbf16>
    %138 = vector.extract_strided_slice %43 {offsets = [0, 20], sizes = [17, 4], strides = [1, 1]} : vector<17x48xbf16> to vector<17x4xbf16>
    %cst_42 = arith.constant dense<0.000000e+00> : vector<17x4xf32>
    %139 = tpu.matmul %137, %138, %cst_42 {dimension_numbers = #tpu.dot_dimension_numbers<[1], [0], [0], [1], [0, 0, 1, 1], [], []>} : vector<17x17xbf16>, vector<17x4xbf16>, vector<17x4xf32> -> vector<17x4xf32>
    %140 = vector.extract_strided_slice %39 {offsets = [0, 24], sizes = [17, 4], strides = [1, 1]} : vector<17x48xbf16> to vector<17x4xbf16>
    %141 = vector.extract_strided_slice %41 {offsets = [0, 24], sizes = [17, 4], strides = [1, 1]} : vector<17x48xbf16> to vector<17x4xbf16>
    "tpu.trace_start"() <{level = 10 : i32, message = "qd,kd->qk"}> : () -> ()
    %cst_43 = arith.constant dense<0.000000e+00> : vector<17x17xf32>
    %142 = tpu.matmul %140, %141, %cst_43 {dimension_numbers = #tpu.dot_dimension_numbers<[1], [1], [0], [0], [0, 0, 1, 0], [], []>} : vector<17x4xbf16>, vector<17x4xbf16>, vector<17x17xf32> -> vector<17x17xf32>
    "tpu.trace_stop"() : () -> ()
    %cst_44 = arith.constant dense<0xFF800000> : vector<17xf32>
    %143 = vector.multi_reduction <maximumf>, %142, %cst_44 [1] : vector<17x17xf32> to vector<17xf32>
    %144 = vector.shape_cast %143 : vector<17xf32> to vector<17x1xf32>
    %145 = vector.broadcast %144 : vector<17x1xf32> to vector<17x17xf32>
    %146 = arith.subf %142, %145 : vector<17x17xf32>
    %147 = math.exp %146 : vector<17x17xf32>
    %cst_45 = arith.constant dense<0.000000e+00> : vector<17xf32>
    %148 = vector.multi_reduction <add>, %147, %cst_45 [1] : vector<17x17xf32> to vector<17xf32>
    %149 = vector.shape_cast %148 : vector<17xf32> to vector<17x1xf32>
    %150 = tpu.reciprocal %149 {approx = true} : vector<17x1xf32> -> vector<17x1xf32>
    %151 = vector.broadcast %150 : vector<17x1xf32> to vector<17x17xf32>
    %152 = arith.mulf %147, %151 : vector<17x17xf32>
    %153 = arith.truncf %152 : vector<17x17xf32> to vector<17x17xbf16>
    %154 = vector.extract_strided_slice %43 {offsets = [0, 24], sizes = [17, 4], strides = [1, 1]} : vector<17x48xbf16> to vector<17x4xbf16>
    %cst_46 = arith.constant dense<0.000000e+00> : vector<17x4xf32>
    %155 = tpu.matmul %153, %154, %cst_46 {dimension_numbers = #tpu.dot_dimension_numbers<[1], [0], [0], [1], [0, 0, 1, 1], [], []>} : vector<17x17xbf16>, vector<17x4xbf16>, vector<17x4xf32> -> vector<17x4xf32>
    %156 = vector.extract_strided_slice %39 {offsets = [0, 28], sizes = [17, 4], strides = [1, 1]} : vector<17x48xbf16> to vector<17x4xbf16>
    %157 = vector.extract_strided_slice %41 {offsets = [0, 28], sizes = [17, 4], strides = [1, 1]} : vector<17x48xbf16> to vector<17x4xbf16>
    "tpu.trace_start"() <{level = 10 : i32, message = "qd,kd->qk"}> : () -> ()
    %cst_47 = arith.constant dense<0.000000e+00> : vector<17x17xf32>
    %158 = tpu.matmul %156, %157, %cst_47 {dimension_numbers = #tpu.dot_dimension_numbers<[1], [1], [0], [0], [0, 0, 1, 0], [], []>} : vector<17x4xbf16>, vector<17x4xbf16>, vector<17x17xf32> -> vector<17x17xf32>
    "tpu.trace_stop"() : () -> ()
    %cst_48 = arith.constant dense<0xFF800000> : vector<17xf32>
    %159 = vector.multi_reduction <maximumf>, %158, %cst_48 [1] : vector<17x17xf32> to vector<17xf32>
    %160 = vector.shape_cast %159 : vector<17xf32> to vector<17x1xf32>
    %161 = vector.broadcast %160 : vector<17x1xf32> to vector<17x17xf32>
    %162 = arith.subf %158, %161 : vector<17x17xf32>
    %163 = math.exp %162 : vector<17x17xf32>
    %cst_49 = arith.constant dense<0.000000e+00> : vector<17xf32>
    %164 = vector.multi_reduction <add>, %163, %cst_49 [1] : vector<17x17xf32> to vector<17xf32>
    %165 = vector.shape_cast %164 : vector<17xf32> to vector<17x1xf32>
    %166 = tpu.reciprocal %165 {approx = true} : vector<17x1xf32> -> vector<17x1xf32>
    %167 = vector.broadcast %166 : vector<17x1xf32> to vector<17x17xf32>
    %168 = arith.mulf %163, %167 : vector<17x17xf32>
    %169 = arith.truncf %168 : vector<17x17xf32> to vector<17x17xbf16>
    %170 = vector.extract_strided_slice %43 {offsets = [0, 28], sizes = [17, 4], strides = [1, 1]} : vector<17x48xbf16> to vector<17x4xbf16>
    %cst_50 = arith.constant dense<0.000000e+00> : vector<17x4xf32>
    %171 = tpu.matmul %169, %170, %cst_50 {dimension_numbers = #tpu.dot_dimension_numbers<[1], [0], [0], [1], [0, 0, 1, 1], [], []>} : vector<17x17xbf16>, vector<17x4xbf16>, vector<17x4xf32> -> vector<17x4xf32>
    %172 = vector.extract_strided_slice %39 {offsets = [0, 32], sizes = [17, 4], strides = [1, 1]} : vector<17x48xbf16> to vector<17x4xbf16>
    %173 = vector.extract_strided_slice %41 {offsets = [0, 32], sizes = [17, 4], strides = [1, 1]} : vector<17x48xbf16> to vector<17x4xbf16>
    "tpu.trace_start"() <{level = 10 : i32, message = "qd,kd->qk"}> : () -> ()
    %cst_51 = arith.constant dense<0.000000e+00> : vector<17x17xf32>
    %174 = tpu.matmul %172, %173, %cst_51 {dimension_numbers = #tpu.dot_dimension_numbers<[1], [1], [0], [0], [0, 0, 1, 0], [], []>} : vector<17x4xbf16>, vector<17x4xbf16>, vector<17x17xf32> -> vector<17x17xf32>
    "tpu.trace_stop"() : () -> ()
    %cst_52 = arith.constant dense<0xFF800000> : vector<17xf32>
    %175 = vector.multi_reduction <maximumf>, %174, %cst_52 [1] : vector<17x17xf32> to vector<17xf32>
    %176 = vector.shape_cast %175 : vector<17xf32> to vector<17x1xf32>
    %177 = vector.broadcast %176 : vector<17x1xf32> to vector<17x17xf32>
    %178 = arith.subf %174, %177 : vector<17x17xf32>
    %179 = math.exp %178 : vector<17x17xf32>
    %cst_53 = arith.constant dense<0.000000e+00> : vector<17xf32>
    %180 = vector.multi_reduction <add>, %179, %cst_53 [1] : vector<17x17xf32> to vector<17xf32>
    %181 = vector.shape_cast %180 : vector<17xf32> to vector<17x1xf32>
    %182 = tpu.reciprocal %181 {approx = true} : vector<17x1xf32> -> vector<17x1xf32>
    %183 = vector.broadcast %182 : vector<17x1xf32> to vector<17x17xf32>
    %184 = arith.mulf %179, %183 : vector<17x17xf32>
    %185 = arith.truncf %184 : vector<17x17xf32> to vector<17x17xbf16>
    %186 = vector.extract_strided_slice %43 {offsets = [0, 32], sizes = [17, 4], strides = [1, 1]} : vector<17x48xbf16> to vector<17x4xbf16>
    %cst_54 = arith.constant dense<0.000000e+00> : vector<17x4xf32>
    %187 = tpu.matmul %185, %186, %cst_54 {dimension_numbers = #tpu.dot_dimension_numbers<[1], [0], [0], [1], [0, 0, 1, 1], [], []>} : vector<17x17xbf16>, vector<17x4xbf16>, vector<17x4xf32> -> vector<17x4xf32>
    %188 = vector.extract_strided_slice %39 {offsets = [0, 36], sizes = [17, 4], strides = [1, 1]} : vector<17x48xbf16> to vector<17x4xbf16>
    %189 = vector.extract_strided_slice %41 {offsets = [0, 36], sizes = [17, 4], strides = [1, 1]} : vector<17x48xbf16> to vector<17x4xbf16>
    "tpu.trace_start"() <{level = 10 : i32, message = "qd,kd->qk"}> : () -> ()
    %cst_55 = arith.constant dense<0.000000e+00> : vector<17x17xf32>
    %190 = tpu.matmul %188, %189, %cst_55 {dimension_numbers = #tpu.dot_dimension_numbers<[1], [1], [0], [0], [0, 0, 1, 0], [], []>} : vector<17x4xbf16>, vector<17x4xbf16>, vector<17x17xf32> -> vector<17x17xf32>
    "tpu.trace_stop"() : () -> ()
    %cst_56 = arith.constant dense<0xFF800000> : vector<17xf32>
    %191 = vector.multi_reduction <maximumf>, %190, %cst_56 [1] : vector<17x17xf32> to vector<17xf32>
    %192 = vector.shape_cast %191 : vector<17xf32> to vector<17x1xf32>
    %193 = vector.broadcast %192 : vector<17x1xf32> to vector<17x17xf32>
    %194 = arith.subf %190, %193 : vector<17x17xf32>
    %195 = math.exp %194 : vector<17x17xf32>
    %cst_57 = arith.constant dense<0.000000e+00> : vector<17xf32>
    %196 = vector.multi_reduction <add>, %195, %cst_57 [1] : vector<17x17xf32> to vector<17xf32>
    %197 = vector.shape_cast %196 : vector<17xf32> to vector<17x1xf32>
    %198 = tpu.reciprocal %197 {approx = true} : vector<17x1xf32> -> vector<17x1xf32>
    %199 = vector.broadcast %198 : vector<17x1xf32> to vector<17x17xf32>
    %200 = arith.mulf %195, %199 : vector<17x17xf32>
    %201 = arith.truncf %200 : vector<17x17xf32> to vector<17x17xbf16>
    %202 = vector.extract_strided_slice %43 {offsets = [0, 36], sizes = [17, 4], strides = [1, 1]} : vector<17x48xbf16> to vector<17x4xbf16>
    %cst_58 = arith.constant dense<0.000000e+00> : vector<17x4xf32>
    %203 = tpu.matmul %201, %202, %cst_58 {dimension_numbers = #tpu.dot_dimension_numbers<[1], [0], [0], [1], [0, 0, 1, 1], [], []>} : vector<17x17xbf16>, vector<17x4xbf16>, vector<17x4xf32> -> vector<17x4xf32>
    %204 = vector.extract_strided_slice %39 {offsets = [0, 40], sizes = [17, 4], strides = [1, 1]} : vector<17x48xbf16> to vector<17x4xbf16>
    %205 = vector.extract_strided_slice %41 {offsets = [0, 40], sizes = [17, 4], strides = [1, 1]} : vector<17x48xbf16> to vector<17x4xbf16>
    "tpu.trace_start"() <{level = 10 : i32, message = "qd,kd->qk"}> : () -> ()
    %cst_59 = arith.constant dense<0.000000e+00> : vector<17x17xf32>
    %206 = tpu.matmul %204, %205, %cst_59 {dimension_numbers = #tpu.dot_dimension_numbers<[1], [1], [0], [0], [0, 0, 1, 0], [], []>} : vector<17x4xbf16>, vector<17x4xbf16>, vector<17x17xf32> -> vector<17x17xf32>
    "tpu.trace_stop"() : () -> ()
    %cst_60 = arith.constant dense<0xFF800000> : vector<17xf32>
    %207 = vector.multi_reduction <maximumf>, %206, %cst_60 [1] : vector<17x17xf32> to vector<17xf32>
    %208 = vector.shape_cast %207 : vector<17xf32> to vector<17x1xf32>
    %209 = vector.broadcast %208 : vector<17x1xf32> to vector<17x17xf32>
    %210 = arith.subf %206, %209 : vector<17x17xf32>
    %211 = math.exp %210 : vector<17x17xf32>
    %cst_61 = arith.constant dense<0.000000e+00> : vector<17xf32>
    %212 = vector.multi_reduction <add>, %211, %cst_61 [1] : vector<17x17xf32> to vector<17xf32>
    %213 = vector.shape_cast %212 : vector<17xf32> to vector<17x1xf32>
    %214 = tpu.reciprocal %213 {approx = true} : vector<17x1xf32> -> vector<17x1xf32>
    %215 = vector.broadcast %214 : vector<17x1xf32> to vector<17x17xf32>
    %216 = arith.mulf %211, %215 : vector<17x17xf32>
    %217 = arith.truncf %216 : vector<17x17xf32> to vector<17x17xbf16>
    %218 = vector.extract_strided_slice %43 {offsets = [0, 40], sizes = [17, 4], strides = [1, 1]} : vector<17x48xbf16> to vector<17x4xbf16>
    %cst_62 = arith.constant dense<0.000000e+00> : vector<17x4xf32>
    %219 = tpu.matmul %217, %218, %cst_62 {dimension_numbers = #tpu.dot_dimension_numbers<[1], [0], [0], [1], [0, 0, 1, 1], [], []>} : vector<17x17xbf16>, vector<17x4xbf16>, vector<17x4xf32> -> vector<17x4xf32>
    %220 = vector.extract_strided_slice %39 {offsets = [0, 44], sizes = [17, 4], strides = [1, 1]} : vector<17x48xbf16> to vector<17x4xbf16>
    %221 = vector.extract_strided_slice %41 {offsets = [0, 44], sizes = [17, 4], strides = [1, 1]} : vector<17x48xbf16> to vector<17x4xbf16>
    "tpu.trace_start"() <{level = 10 : i32, message = "qd,kd->qk"}> : () -> ()
    %cst_63 = arith.constant dense<0.000000e+00> : vector<17x17xf32>
    %222 = tpu.matmul %220, %221, %cst_63 {dimension_numbers = #tpu.dot_dimension_numbers<[1], [1], [0], [0], [0, 0, 1, 0], [], []>} : vector<17x4xbf16>, vector<17x4xbf16>, vector<17x17xf32> -> vector<17x17xf32>
    "tpu.trace_stop"() : () -> ()
    %cst_64 = arith.constant dense<0xFF800000> : vector<17xf32>
    %223 = vector.multi_reduction <maximumf>, %222, %cst_64 [1] : vector<17x17xf32> to vector<17xf32>
    %224 = vector.shape_cast %223 : vector<17xf32> to vector<17x1xf32>
    %225 = vector.broadcast %224 : vector<17x1xf32> to vector<17x17xf32>
    %226 = arith.subf %222, %225 : vector<17x17xf32>
    %227 = math.exp %226 : vector<17x17xf32>
    %cst_65 = arith.constant dense<0.000000e+00> : vector<17xf32>
    %228 = vector.multi_reduction <add>, %227, %cst_65 [1] : vector<17x17xf32> to vector<17xf32>
    %229 = vector.shape_cast %228 : vector<17xf32> to vector<17x1xf32>
    %230 = tpu.reciprocal %229 {approx = true} : vector<17x1xf32> -> vector<17x1xf32>
    %231 = vector.broadcast %230 : vector<17x1xf32> to vector<17x17xf32>
    %232 = arith.mulf %227, %231 : vector<17x17xf32>
    %233 = arith.truncf %232 : vector<17x17xf32> to vector<17x17xbf16>
    %234 = vector.extract_strided_slice %43 {offsets = [0, 44], sizes = [17, 4], strides = [1, 1]} : vector<17x48xbf16> to vector<17x4xbf16>
    %cst_66 = arith.constant dense<0.000000e+00> : vector<17x4xf32>
    %235 = tpu.matmul %233, %234, %cst_66 {dimension_numbers = #tpu.dot_dimension_numbers<[1], [0], [0], [1], [0, 0, 1, 1], [], []>} : vector<17x17xbf16>, vector<17x4xbf16>, vector<17x4xf32> -> vector<17x4xf32>
    %236 = tpu.concatenate %59, %75, %91, %107, %123, %139, %155, %171, %187, %203, %219, %235 in 1 : vector<17x4xf32>, vector<17x4xf32>, vector<17x4xf32>, vector<17x4xf32>, vector<17x4xf32>, vector<17x4xf32>, vector<17x4xf32>, vector<17x4xf32>, vector<17x4xf32>, vector<17x4xf32>, vector<17x4xf32>, vector<17x4xf32> -> vector<17x48xf32>
    %237 = arith.truncf %236 : vector<17x48xf32> to vector<17x48xbf16>
    %c0_67 = arith.constant 0 : index
    %c0_68 = arith.constant 0 : index
    %c0_69 = arith.constant 0 : index
    %238 = vector.load %arg11[%c0_67, %c0_68, %c0_69] : memref<1x48x48xbf16, #tpu.memory_space<vmem>>, vector<1x48x48xbf16>
    %239 = vector.shape_cast %238 : vector<1x48x48xbf16> to vector<48x48xbf16>
    %cst_70 = arith.constant dense<0.000000e+00> : vector<17x48xf32>
    %240 = tpu.matmul %237, %239, %cst_70 {dimension_numbers = #tpu.dot_dimension_numbers<[1], [0], [0], [1], [0, 0, 1, 1], [], []>} : vector<17x48xbf16>, vector<48x48xbf16>, vector<17x48xf32> -> vector<17x48xf32>
    %c0_71 = arith.constant 0 : index
    %c0_72 = arith.constant 0 : index
    %c0_73 = arith.constant 0 : index
    %241 = vector.load %arg12[%c0_71, %c0_72, %c0_73] : memref<1x1x48xf32, #tpu.memory_space<vmem>>, vector<1x1x48xf32>
    %242 = vector.shape_cast %241 : vector<1x1x48xf32> to vector<1x48xf32>
    %243 = vector.broadcast %242 : vector<1x48xf32> to vector<17x48xf32>
    %244 = arith.addf %240, %243 : vector<17x48xf32>
    %245 = arith.addf %3, %244 : vector<17x48xf32>
    %c0_74 = arith.constant 0 : index
    %c0_75 = arith.constant 0 : index
    %c0_76 = arith.constant 0 : index
    %246 = vector.load %arg13[%c0_74, %c0_75, %c0_76] : memref<1x1x48xf32, #tpu.memory_space<vmem>>, vector<1x1x48xf32>
    %247 = vector.shape_cast %246 : vector<1x1x48xf32> to vector<1x48xf32>
    %c0_77 = arith.constant 0 : index
    %c0_78 = arith.constant 0 : index
    %c0_79 = arith.constant 0 : index
    %248 = vector.load %arg14[%c0_77, %c0_78, %c0_79] : memref<1x1x48xf32, #tpu.memory_space<vmem>>, vector<1x1x48xf32>
    %249 = vector.shape_cast %248 : vector<1x1x48xf32> to vector<1x48xf32>
    %cst_80 = arith.constant dense<0.000000e+00> : vector<17xf32>
    %250 = vector.multi_reduction <add>, %245, %cst_80 [1] : vector<17x48xf32> to vector<17xf32>
    %251 = vector.shape_cast %250 : vector<17xf32> to vector<17x1xf32>
    %cst_81 = arith.constant 4.800000e+01 : f32
    %252 = vector.broadcast %cst_81 : f32 to vector<17x1xf32>
    %253 = arith.divf %251, %252 : vector<17x1xf32>
    %254 = vector.broadcast %253 : vector<17x1xf32> to vector<17x48xf32>
    %255 = arith.subf %245, %254 : vector<17x48xf32>
    %256 = arith.mulf %255, %255 : vector<17x48xf32>
    %cst_82 = arith.constant dense<0.000000e+00> : vector<17xf32>
    %257 = vector.multi_reduction <add>, %256, %cst_82 [1] : vector<17x48xf32> to vector<17xf32>
    %258 = vector.shape_cast %257 : vector<17xf32> to vector<17x1xf32>
    %cst_83 = arith.constant 4.800000e+01 : f32
    %259 = vector.broadcast %cst_83 : f32 to vector<17x1xf32>
    %260 = arith.divf %258, %259 : vector<17x1xf32>
    %261 = vector.broadcast %253 : vector<17x1xf32> to vector<17x48xf32>
    %262 = arith.subf %245, %261 : vector<17x48xf32>
    %cst_84 = arith.constant 9.99999974E-6 : f32
    %263 = vector.broadcast %cst_84 : f32 to vector<17x1xf32>
    %264 = arith.addf %260, %263 : vector<17x1xf32>
    %265 = math.rsqrt %264 : vector<17x1xf32>
    %266 = vector.broadcast %265 : vector<17x1xf32> to vector<17x48xf32>
    %267 = arith.mulf %262, %266 : vector<17x48xf32>
    %268 = vector.broadcast %247 : vector<1x48xf32> to vector<17x48xf32>
    %269 = arith.mulf %267, %268 : vector<17x48xf32>
    %270 = vector.broadcast %249 : vector<1x48xf32> to vector<17x48xf32>
    %271 = arith.addf %269, %270 : vector<17x48xf32>
    %272 = arith.truncf %271 : vector<17x48xf32> to vector<17x48xbf16>
    %c0_85 = arith.constant 0 : index
    %c0_86 = arith.constant 0 : index
    %c0_87 = arith.constant 0 : index
    %273 = vector.load %arg15[%c0_85, %c0_86, %c0_87] : memref<1x48x192xbf16, #tpu.memory_space<vmem>>, vector<1x48x192xbf16>
    %274 = vector.shape_cast %273 : vector<1x48x192xbf16> to vector<48x192xbf16>
    %cst_88 = arith.constant dense<0.000000e+00> : vector<17x192xf32>
    %275 = tpu.matmul %272, %274, %cst_88 {dimension_numbers = #tpu.dot_dimension_numbers<[1], [0], [0], [1], [0, 0, 1, 1], [], []>} : vector<17x48xbf16>, vector<48x192xbf16>, vector<17x192xf32> -> vector<17x192xf32>
    %c0_89 = arith.constant 0 : index
    %c0_90 = arith.constant 0 : index
    %c0_91 = arith.constant 0 : index
    %276 = vector.load %arg16[%c0_89, %c0_90, %c0_91] : memref<1x1x192xf32, #tpu.memory_space<vmem>>, vector<1x1x192xf32>
    %277 = vector.shape_cast %276 : vector<1x1x192xf32> to vector<1x192xf32>
    %278 = vector.broadcast %277 : vector<1x192xf32> to vector<17x192xf32>
    %279 = arith.addf %275, %278 : vector<17x192xf32>
    %280 = arith.mulf %279, %279 : vector<17x192xf32>
    %281 = arith.mulf %279, %280 : vector<17x192xf32>
    %cst_92 = arith.constant 4.471500e-02 : f32
    %282 = vector.broadcast %cst_92 : f32 to vector<17x192xf32>
    %283 = arith.mulf %282, %281 : vector<17x192xf32>
    %284 = arith.addf %279, %283 : vector<17x192xf32>
    %cst_93 = arith.constant 0.797884583 : f32
    %285 = vector.broadcast %cst_93 : f32 to vector<17x192xf32>
    %286 = arith.mulf %285, %284 : vector<17x192xf32>
    %287 = math.tanh %286 : vector<17x192xf32>
    %cst_94 = arith.constant 1.000000e+00 : f32
    %288 = vector.broadcast %cst_94 : f32 to vector<17x192xf32>
    %289 = arith.addf %288, %287 : vector<17x192xf32>
    %cst_95 = arith.constant 5.000000e-01 : f32
    %290 = vector.broadcast %cst_95 : f32 to vector<17x192xf32>
    %291 = arith.mulf %290, %289 : vector<17x192xf32>
    %292 = arith.mulf %279, %291 : vector<17x192xf32>
    %293 = arith.truncf %292 : vector<17x192xf32> to vector<17x192xbf16>
    %c0_96 = arith.constant 0 : index
    %c0_97 = arith.constant 0 : index
    %c0_98 = arith.constant 0 : index
    %294 = vector.load %arg17[%c0_96, %c0_97, %c0_98] : memref<1x192x48xbf16, #tpu.memory_space<vmem>>, vector<1x192x48xbf16>
    %295 = vector.shape_cast %294 : vector<1x192x48xbf16> to vector<192x48xbf16>
    %cst_99 = arith.constant dense<0.000000e+00> : vector<17x48xf32>
    %296 = tpu.matmul %293, %295, %cst_99 {dimension_numbers = #tpu.dot_dimension_numbers<[1], [0], [0], [1], [0, 0, 1, 1], [], []>} : vector<17x192xbf16>, vector<192x48xbf16>, vector<17x48xf32> -> vector<17x48xf32>
    %c0_100 = arith.constant 0 : index
    %c0_101 = arith.constant 0 : index
    %c0_102 = arith.constant 0 : index
    %297 = vector.load %arg18[%c0_100, %c0_101, %c0_102] : memref<1x1x48xf32, #tpu.memory_space<vmem>>, vector<1x1x48xf32>
    %298 = vector.shape_cast %297 : vector<1x1x48xf32> to vector<1x48xf32>
    %299 = vector.broadcast %298 : vector<1x48xf32> to vector<17x48xf32>
    %300 = arith.addf %296, %299 : vector<17x48xf32>
    %301 = arith.addf %245, %300 : vector<17x48xf32>
    %c0_103 = arith.constant 0 : index
    %c0_104 = arith.constant 0 : index
    %302 = vector.load %arg20[%c0_103, %c0_104] : memref<17x48xf32, #tpu.memory_space<vmem>>, vector<17x48xf32>
    tpu.vector_store %arg20[%c0_103, %c0_104], %301 {strides = array<i32>} : memref<17x48xf32, #tpu.memory_space<vmem>>, vector<17x48xf32>,
    %c11_i32 = arith.constant 11 : i32
    %303 = arith.cmpi eq, %arg1, %c11_i32 : i32
    %304 = arith.extui %303 : i1 to i32
    %c0_i32_105 = arith.constant 0 : i32
    %305 = arith.cmpi ne, %304, %c0_i32_105 : i32
    scf.if %305 {
      %c0_106 = arith.constant 0 : index
      %c0_107 = arith.constant 0 : index
      %c0_108 = arith.constant 0 : index
      %306 = vector.load %arg19[%c0_106, %c0_107, %c0_108] : memref<1x17x48xf32, #tpu.memory_space<vmem>>, vector<1x17x48xf32>
      %307 = vector.shape_cast %306 : vector<1x17x48xf32> to vector<17x48xf32>
      %308 = vector.shape_cast %301 : vector<17x48xf32> to vector<1x17x48xf32>
      tpu.vector_store %arg19[%c0_106, %c0_107, %c0_108], %308 {strides = array<i32>} : memref<1x17x48xf32, #tpu.memory_space<vmem>>, vector<1x17x48xf32>,
    } else {
    }
    return
  }
  func.func @transform_0(%arg0: i32, %arg1: i32) -> (i32, i32, i32) {
    %c0_i32 = arith.constant 0 : i32
    %c0_i32_0 = arith.constant 0 : i32
    %c0_i32_1 = arith.constant 0 : i32
    return %arg0, %c0_i32, %c0_i32_0 : i32, i32, i32
  }
  func.func @transform_1(%arg0: i32, %arg1: i32) -> (i32, i32) {
    %c0_i32 = arith.constant 0 : i32
    %c0_i32_0 = arith.constant 0 : i32
    %c0_i32_1 = arith.constant 0 : i32
    return %c0_i32, %c0_i32_0 : i32, i32
  }
  func.func @transform_2(%arg0: i32, %arg1: i32) -> (i32, i32) {
    %c0_i32 = arith.constant 0 : i32
    %c0_i32_0 = arith.constant 0 : i32
    %c0_i32_1 = arith.constant 0 : i32
    return %c0_i32, %c0_i32_0 : i32, i32
  }
  func.func @transform_3(%arg0: i32, %arg1: i32) -> (i32, i32) {
    %c0_i32 = arith.constant 0 : i32
    %c0_i32_0 = arith.constant 0 : i32
    %c0_i32_1 = arith.constant 0 : i32
    return %c0_i32, %c0_i32_0 : i32, i32
  }
  func.func @transform_4(%arg0: i32, %arg1: i32) -> (i32, i32, i32) {
    %c0_i32 = arith.constant 0 : i32
    %c0_i32_0 = arith.constant 0 : i32
    %c0_i32_1 = arith.constant 0 : i32
    %c0_i32_2 = arith.constant 0 : i32
    return %c0_i32, %c0_i32_0, %c0_i32_1 : i32, i32, i32
  }
  func.func @transform_5(%arg0: i32, %arg1: i32) -> (i32, i32, i32) {
    %c0_i32 = arith.constant 0 : i32
    %c0_i32_0 = arith.constant 0 : i32
    %c0_i32_1 = arith.constant 0 : i32
    return %arg1, %c0_i32, %c0_i32_0 : i32, i32, i32
  }
  func.func @transform_6(%arg0: i32, %arg1: i32) -> (i32, i32, i32) {
    %c0_i32 = arith.constant 0 : i32
    %c0_i32_0 = arith.constant 0 : i32
    %c0_i32_1 = arith.constant 0 : i32
    return %arg1, %c0_i32, %c0_i32_0 : i32, i32, i32
  }
  func.func @transform_7(%arg0: i32, %arg1: i32) -> (i32, i32, i32) {
    %c0_i32 = arith.constant 0 : i32
    %c0_i32_0 = arith.constant 0 : i32
    %c0_i32_1 = arith.constant 0 : i32
    return %arg1, %c0_i32, %c0_i32_0 : i32, i32, i32
  }
  func.func @transform_8(%arg0: i32, %arg1: i32) -> (i32, i32, i32) {
    %c0_i32 = arith.constant 0 : i32
    %c0_i32_0 = arith.constant 0 : i32
    %c0_i32_1 = arith.constant 0 : i32
    return %arg1, %c0_i32, %c0_i32_0 : i32, i32, i32
  }
  func.func @transform_9(%arg0: i32, %arg1: i32) -> (i32, i32, i32) {
    %c0_i32 = arith.constant 0 : i32
    %c0_i32_0 = arith.constant 0 : i32
    %c0_i32_1 = arith.constant 0 : i32
    return %arg1, %c0_i32, %c0_i32_0 : i32, i32, i32
  }
  func.func @transform_10(%arg0: i32, %arg1: i32) -> (i32, i32, i32) {
    %c0_i32 = arith.constant 0 : i32
    %c0_i32_0 = arith.constant 0 : i32
    %c0_i32_1 = arith.constant 0 : i32
    return %arg1, %c0_i32, %c0_i32_0 : i32, i32, i32
  }
  func.func @transform_11(%arg0: i32, %arg1: i32) -> (i32, i32, i32) {
    %c0_i32 = arith.constant 0 : i32
    %c0_i32_0 = arith.constant 0 : i32
    %c0_i32_1 = arith.constant 0 : i32
    return %arg1, %c0_i32, %c0_i32_0 : i32, i32, i32
  }
  func.func @transform_12(%arg0: i32, %arg1: i32) -> (i32, i32, i32) {
    %c0_i32 = arith.constant 0 : i32
    %c0_i32_0 = arith.constant 0 : i32
    %c0_i32_1 = arith.constant 0 : i32
    return %arg1, %c0_i32, %c0_i32_0 : i32, i32, i32
  }
  func.func @transform_13(%arg0: i32, %arg1: i32) -> (i32, i32, i32) {
    %c0_i32 = arith.constant 0 : i32
    %c0_i32_0 = arith.constant 0 : i32
    %c0_i32_1 = arith.constant 0 : i32
    return %arg1, %c0_i32, %c0_i32_0 : i32, i32, i32
  }
  func.func @transform_14(%arg0: i32, %arg1: i32) -> (i32, i32, i32) {
    %c0_i32 = arith.constant 0 : i32
    %c0_i32_0 = arith.constant 0 : i32
    %c0_i32_1 = arith.constant 0 : i32
    return %arg1, %c0_i32, %c0_i32_0 : i32, i32, i32
  }
  func.func @transform_15(%arg0: i32, %arg1: i32) -> (i32, i32, i32) {
    %c0_i32 = arith.constant 0 : i32
    %c0_i32_0 = arith.constant 0 : i32
    %c0_i32_1 = arith.constant 0 : i32
    return %arg1, %c0_i32, %c0_i32_0 : i32, i32, i32
  }
  func.func @transform_16(%arg0: i32, %arg1: i32) -> (i32, i32, i32) {
    %c0_i32 = arith.constant 0 : i32
    %c0_i32_0 = arith.constant 0 : i32
    %c0_i32_1 = arith.constant 0 : i32
    return %arg1, %c0_i32, %c0_i32_0 : i32, i32, i32
  }
  func.func @transform_17(%arg0: i32, %arg1: i32) -> (i32, i32, i32) {
    %c0_i32 = arith.constant 0 : i32
    %c0_i32_0 = arith.constant 0 : i32
    %c0_i32_1 = arith.constant 0 : i32
    return %arg0, %c0_i32, %c0_i32_0 : i32, i32, i32
  }
}

</mosaic_0001>

<llo_original>
// kernel: vit_backbone.1
$region0: #{vit_backbone.1}
  #allocation0 [shape = 'u32[]', space=smem, size = 0x4, offset = 0x4, fixed_abs, tag = 'smem constant byte address 0x4 - core index']
  #allocation1 [shape = 'u32[144,128]{1,0:T(1,128)}', space=vmem, size = 0x12000, scoped, tag = 'internal scratch']
  #allocation2 [shape = 'f32[17,48]{1,0:T(8,128)}', space=vmem, size = 0x3000, scoped, tag = 'scratch operand']
  %s0 = inlined_call_operand.vmem [shape: f32[2,16,64], index: 0, kind: input, shape index: {}]
  %s1 = inlined_call_operand.vmem [shape: bf16[64,48], index: 1, kind: input, shape index: {}]
  %s2 = inlined_call_operand.vmem [shape: f32[1,48], index: 2, kind: input, shape index: {}]
  %s3 = inlined_call_operand.vmem [shape: f32[1,48], index: 3, kind: input, shape index: {}]
  %s4 = inlined_call_operand.vmem [shape: f32[1,17,48], index: 4, kind: input, shape index: {}]
  %s5 = inlined_call_operand.vmem [shape: f32[12,1,48], index: 5, kind: input, shape index: {}]
  %s6 = inlined_call_operand.vmem [shape: f32[12,1,48], index: 6, kind: input, shape index: {}]
  %s7 = inlined_call_operand.vmem [shape: bf16[12,48,144], index: 7, kind: input, shape index: {}]
  %s8 = inlined_call_operand.vmem [shape: f32[12,1,144], index: 8, kind: input, shape index: {}]
  %s9 = inlined_call_operand.vmem [shape: bf16[12,48,48], index: 9, kind: input, shape index: {}]
  %s10 = inlined_call_operand.vmem [shape: f32[12,1,48], index: 10, kind: input, shape index: {}]
  %s11 = inlined_call_operand.vmem [shape: f32[12,1,48], index: 11, kind: input, shape index: {}]
  %s12 = inlined_call_operand.vmem [shape: f32[12,1,48], index: 12, kind: input, shape index: {}]
  %s13 = inlined_call_operand.vmem [shape: bf16[12,48,192], index: 13, kind: input, shape index: {}]
  %s14 = inlined_call_operand.vmem [shape: f32[12,1,192], index: 14, kind: input, shape index: {}]
  %s15 = inlined_call_operand.vmem [shape: bf16[12,192,48], index: 15, kind: input, shape index: {}]
  %s16 = inlined_call_operand.vmem [shape: f32[12,1,48], index: 16, kind: input, shape index: {}]
  %s17 = inlined_call_operand.vmem [shape: f32[2,17,48], index: 17, kind: output, shape index: {}]
  %s18 = sld [smem:[#allocation0]]
  $region109: #{vit_backbone.1} parent=0
    _
  %s20 = ssub.s32 1, %s18
  %s21 = scalar_select 0, %s20, %s18
  loop: start=0, step=1, limit=26
  $region2: #{vit_backbone.1} parent=0 // loop_pre_header
    _
  $region3: #{vit_backbone.1} parent=0 // loop_header
    %s23 = sphi 0, %s27
    %p24 = scmp.ge.s32.totalorder %s23, 26
    %s30 = sphi 0, %s42
    %s31 = sphi 0, %s38
    %s32 = sphi 0, %s30
    %s33 = sphi 0, %s31
    %s34 = sphi 0, %s32
    %s35 = sphi 0, %s33
    %s45 = sphi 0, %s47
    %s48 = sphi 0, %s45
    %s49 = sphi 0, %s48
    %s65 = sphi 0, %s49
    %s69 = sphi 0, %s69
    %s71 = sphi 0, %s69
    %s72 = sphi 0, %s71
    %s86 = sphi 0, %s72
    %s90 = sphi 0, %s90
    %s92 = sphi 0, %s90
    %s93 = sphi 0, %s92
    %s107 = sphi 0, %s93
    %s111 = sphi 0, %s111
    %s113 = sphi 0, %s111
    %s114 = sphi 0, %s113
    %s128 = sphi 0, %s114
    %s132 = sphi 0, %s132
    %s134 = sphi 0, %s132
    %s135 = sphi 0, %s134
    %s149 = sphi 0, %s135
    %s155 = sphi 0, %s157
    %s158 = sphi 0, %s155
    %s159 = sphi 0, %s158
    %s175 = sphi 0, %s159
    %s181 = sphi 0, %s183
    %s184 = sphi 0, %s181
    %s185 = sphi 0, %s184
    %s201 = sphi 0, %s185
    %s207 = sphi 0, %s209
    %s210 = sphi 0, %s207
    %s211 = sphi 0, %s210
    %s227 = sphi 0, %s211
    %s233 = sphi 0, %s235
    %s236 = sphi 0, %s233
    %s237 = sphi 0, %s236
    %s253 = sphi 0, %s237
    %s259 = sphi 0, %s261
    %s262 = sphi 0, %s259
    %s263 = sphi 0, %s262
    %s279 = sphi 0, %s263
    %s285 = sphi 0, %s287
    %s288 = sphi 0, %s285
    %s289 = sphi 0, %s288
    %s305 = sphi 0, %s289
    %s311 = sphi 0, %s313
    %s314 = sphi 0, %s311
    %s315 = sphi 0, %s314
    %s331 = sphi 0, %s315
    %s337 = sphi 0, %s339
    %s340 = sphi 0, %s337
    %s341 = sphi 0, %s340
    %s357 = sphi 0, %s341
    %s363 = sphi 0, %s365
    %s366 = sphi 0, %s363
    %s367 = sphi 0, %s366
    %s383 = sphi 0, %s367
    %s389 = sphi 0, %s391
    %s392 = sphi 0, %s389
    %s393 = sphi 0, %s392
    %s409 = sphi 0, %s393
    %s415 = sphi 0, %s417
    %s418 = sphi 0, %s415
    %s419 = sphi 0, %s418
    %s435 = sphi 0, %s419
    %s441 = sphi 0, %s443
    %s444 = sphi 0, %s441
    %s445 = sphi 0, %s444
    %s461 = sphi 0, %s445
    %s467 = sphi 0, %s469
    %s470 = sphi 0, %s467
    %s471 = sphi 0, %s470
    %s487 = sphi 0, %s471
  $region4: #{vit_backbone.1} parent=0 // loop_header_branch
    %26 = sbr.rel (%p24) target = $region8
  $region5: #{vit_backbone.1} parent=0 // loop_body
    %s28 = ssub.s32 %s23, 1
    %s29 = ssub.s32 %s23, 2
    %s36 = sadd.s32 1, %s31
    %p37 = scmp.ge.s32.totalorder %s36, 12
    %s38 = scalar_select %p37, 0, %s36
    %s39 = sadd.s32 1, %s30
    %s40 = scalar_select %p37, %s39, %s30
    %p41 = scmp.ge.s32.totalorder %s40, 2
    %s42 = scalar_select %p41, 0, %s40
    %s43 = ssub.s32 %s30, %s42
    %p44 = scmp.eq.s32.totalorder %s43, 0
    %s46 = sadd.s32 %s45, 1
    %s47 = scalar_select %p44, %s45, %s46
    %p50 = pneg %p44
    %p51 = scmp.eq.s32.totalorder %s23, 23
    %p52 = por %p50, %p51
    %p53 = scmp.ne.s32.totalorder %s45, %s48
    %p54 = scmp.eq.s32.totalorder %s23, 0
    %p55 = por %p53, %p54
    %p56 = scmp.ne.s32.totalorder %s45, %s48
    %p57 = scmp.eq.s32.totalorder %s28, 23
    %p58 = por %p56, %p57
    %p59 = scmp.ne.s32.totalorder %s48, %s49
    %p60 = scmp.eq.s32.totalorder %s28, 0
    %p61 = por %p59, %p60
    %p62 = scmp.ne.s32.totalorder %s48, %s49
    %p63 = scmp.eq.s32.totalorder %s29, 23
    %p64 = por %p62, %p63
    %p66 = scmp.ne.s32.totalorder %s49, %s65
    %p67 = scmp.eq.s32.totalorder %s29, 0
    %p68 = por %p66, %p67
    %s70 = sadd.s32 %s69, 1
    %p73 = scmp.eq.s32.totalorder %s23, 23
    %p74 = scmp.ne.s32.totalorder %s69, %s71
    %p75 = scmp.eq.s32.totalorder %s23, 0
    %p76 = por %p74, %p75
    %p77 = scmp.ne.s32.totalorder %s69, %s71
    %p78 = scmp.eq.s32.totalorder %s28, 23
    %p79 = por %p77, %p78
    %p80 = scmp.ne.s32.totalorder %s71, %s72
    %p81 = scmp.eq.s32.totalorder %s28, 0
    %p82 = por %p80, %p81
    %p83 = scmp.ne.s32.totalorder %s71, %s72
    %p84 = scmp.eq.s32.totalorder %s29, 23
    %p85 = por %p83, %p84
    %p87 = scmp.ne.s32.totalorder %s72, %s86
    %p88 = scmp.eq.s32.totalorder %s29, 0
    %p89 = por %p87, %p88
    %s91 = sadd.s32 %s90, 1
    %p94 = scmp.eq.s32.totalorder %s23, 23
    %p95 = scmp.ne.s32.totalorder %s90, %s92
    %p96 = scmp.eq.s32.totalorder %s23, 0
    %p97 = por %p95, %p96
    %p98 = scmp.ne.s32.totalorder %s90, %s92
    %p99 = scmp.eq.s32.totalorder %s28, 23
    %p100 = por %p98, %p99
    %p101 = scmp.ne.s32.totalorder %s92, %s93
    %p102 = scmp.eq.s32.totalorder %s28, 0
    %p103 = por %p101, %p102
    %p104 = scmp.ne.s32.totalorder %s92, %s93
    %p105 = scmp.eq.s32.totalorder %s29, 23
    %p106 = por %p104, %p105
    %p108 = scmp.ne.s32.totalorder %s93, %s107
    %p109 = scmp.eq.s32.totalorder %s29, 0
    %p110 = por %p108, %p109
    %s112 = sadd.s32 %s111, 1
    %p115 = scmp.eq.s32.totalorder %s23, 23
    %p116 = scmp.ne.s32.totalorder %s111, %s113
    %p117 = scmp.eq.s32.totalorder %s23, 0
    %p118 = por %p116, %p117
    %p119 = scmp.ne.s32.totalorder %s111, %s113
    %p120 = scmp.eq.s32.totalorder %s28, 23
    %p121 = por %p119, %p120
    %p122 = scmp.ne.s32.totalorder %s113, %s114
    %p123 = scmp.eq.s32.totalorder %s28, 0
    %p124 = por %p122, %p123
    %p125 = scmp.ne.s32.totalorder %s113, %s114
    %p126 = scmp.eq.s32.totalorder %s29, 23
    %p127 = por %p125, %p126
    %p129 = scmp.ne.s32.totalorder %s114, %s128
    %p130 = scmp.eq.s32.totalorder %s29, 0
    %p131 = por %p129, %p130
    %s133 = sadd.s32 %s132, 1
    %p136 = scmp.eq.s32.totalorder %s23, 23
    %p137 = scmp.ne.s32.totalorder %s132, %s134
    %p138 = scmp.eq.s32.totalorder %s23, 0
    %p139 = por %p137, %p138
    %p140 = scmp.ne.s32.totalorder %s132, %s134
    %p141 = scmp.eq.s32.totalorder %s28, 23
    %p142 = por %p140, %p141
    %p143 = scmp.ne.s32.totalorder %s134, %s135
    %p144 = scmp.eq.s32.totalorder %s28, 0
    %p145 = por %p143, %p144
    %p146 = scmp.ne.s32.totalorder %s134, %s135
    %p147 = scmp.eq.s32.totalorder %s29, 23
    %p148 = por %p146, %p147
    %p150 = scmp.ne.s32.totalorder %s135, %s149
    %p151 = scmp.eq.s32.totalorder %s29, 0
    %p152 = por %p150, %p151
    %s153 = ssub.s32 %s31, %s38
    %p154 = scmp.eq.s32.totalorder %s153, 0
    %s156 = sadd.s32 %s155, 1
    %s157 = scalar_select %p154, %s155, %s156
    %p160 = pneg %p154
    %p161 = scmp.eq.s32.totalorder %s23, 23
    %p162 = por %p160, %p161
    %p163 = scmp.ne.s32.totalorder %s155, %s158
    %p164 = scmp.eq.s32.totalorder %s23, 0
    %p165 = por %p163, %p164
    %p166 = scmp.ne.s32.totalorder %s155, %s158
    %p167 = scmp.eq.s32.totalorder %s28, 23
    %p168 = por %p166, %p167
    %p169 = scmp.ne.s32.totalorder %s158, %s159
    %p170 = scmp.eq.s32.totalorder %s28, 0
    %p171 = por %p169, %p170
    %p172 = scmp.ne.s32.totalorder %s158, %s159
    %p173 = scmp.eq.s32.totalorder %s29, 23
    %p174 = por %p172, %p173
    %p176 = scmp.ne.s32.totalorder %s159, %s175
    %p177 = scmp.eq.s32.totalorder %s29, 0
    %p178 = por %p176, %p177
    %s179 = ssub.s32 %s31, %s38
    %p180 = scmp.eq.s32.totalorder %s179, 0
    %s182 = sadd.s32 %s181, 1
    %s183 = scalar_select %p180, %s181, %s182
    %p186 = pneg %p180
    %p187 = scmp.eq.s32.totalorder %s23, 23
    %p188 = por %p186, %p187
    %p189 = scmp.ne.s32.totalorder %s181, %s184
    %p190 = scmp.eq.s32.totalorder %s23, 0
    %p191 = por %p189, %p190
    %p192 = scmp.ne.s32.totalorder %s181, %s184
    %p193 = scmp.eq.s32.totalorder %s28, 23
    %p194 = por %p192, %p193
    %p195 = scmp.ne.s32.totalorder %s184, %s185
    %p196 = scmp.eq.s32.totalorder %s28, 0
    %p197 = por %p195, %p196
    %p198 = scmp.ne.s32.totalorder %s184, %s185
    %p199 = scmp.eq.s32.totalorder %s29, 23
    %p200 = por %p198, %p199
    %p202 = scmp.ne.s32.totalorder %s185, %s201
    %p203 = scmp.eq.s32.totalorder %s29, 0
    %p204 = por %p202, %p203
    %s205 = ssub.s32 %s31, %s38
    %p206 = scmp.eq.s32.totalorder %s205, 0
    %s208 = sadd.s32 %s207, 1
    %s209 = scalar_select %p206, %s207, %s208
    %p212 = pneg %p206
    %p213 = scmp.eq.s32.totalorder %s23, 23
    %p214 = por %p212, %p213
    %p215 = scmp.ne.s32.totalorder %s207, %s210
    %p216 = scmp.eq.s32.totalorder %s23, 0
    %p217 = por %p215, %p216
    %p218 = scmp.ne.s32.totalorder %s207, %s210
    %p219 = scmp.eq.s32.totalorder %s28, 23
    %p220 = por %p218, %p219
    %p221 = scmp.ne.s32.totalorder %s210, %s211
    %p222 = scmp.eq.s32.totalorder %s28, 0
    %p223 = por %p221, %p222
    %p224 = scmp.ne.s32.totalorder %s210, %s211
    %p225 = scmp.eq.s32.totalorder %s29, 23
    %p226 = por %p224, %p225
    %p228 = scmp.ne.s32.totalorder %s211, %s227
    %p229 = scmp.eq.s32.totalorder %s29, 0
    %p230 = por %p228, %p229
    %s231 = ssub.s32 %s31, %s38
    %p232 = scmp.eq.s32.totalorder %s231, 0
    %s234 = sadd.s32 %s233, 1
    %s235 = scalar_select %p232, %s233, %s234
    %p238 = pneg %p232
    %p239 = scmp.eq.s32.totalorder %s23, 23
    %p240 = por %p238, %p239
    %p241 = scmp.ne.s32.totalorder %s233, %s236
    %p242 = scmp.eq.s32.totalorder %s23, 0
    %p243 = por %p241, %p242
    %p244 = scmp.ne.s32.totalorder %s233, %s236
    %p245 = scmp.eq.s32.totalorder %s28, 23
    %p246 = por %p244, %p245
    %p247 = scmp.ne.s32.totalorder %s236, %s237
    %p248 = scmp.eq.s32.totalorder %s28, 0
    %p249 = por %p247, %p248
    %p250 = scmp.ne.s32.totalorder %s236, %s237
    %p251 = scmp.eq.s32.totalorder %s29, 23
    %p252 = por %p250, %p251
    %p254 = scmp.ne.s32.totalorder %s237, %s253
    %p255 = scmp.eq.s32.totalorder %s29, 0
    %p256 = por %p254, %p255
    %s257 = ssub.s32 %s31, %s38
    %p258 = scmp.eq.s32.totalorder %s257, 0
    %s260 = sadd.s32 %s259, 1
    %s261 = scalar_select %p258, %s259, %s260
    %p264 = pneg %p258
    %p265 = scmp.eq.s32.totalorder %s23, 23
    %p266 = por %p264, %p265
    %p267 = scmp.ne.s32.totalorder %s259, %s262
    %p268 = scmp.eq.s32.totalorder %s23, 0
    %p269 = por %p267, %p268
    %p270 = scmp.ne.s32.totalorder %s259, %s262
    %p271 = scmp.eq.s32.totalorder %s28, 23
    %p272 = por %p270, %p271
    %p273 = scmp.ne.s32.totalorder %s262, %s263
    %p274 = scmp.eq.s32.totalorder %s28, 0
    %p275 = por %p273, %p274
    %p276 = scmp.ne.s32.totalorder %s262, %s263
    %p277 = scmp.eq.s32.totalorder %s29, 23
    %p278 = por %p276, %p277
    %p280 = scmp.ne.s32.totalorder %s263, %s279
    %p281 = scmp.eq.s32.totalorder %s29, 0
    %p282 = por %p280, %p281
    %s283 = ssub.s32 %s31, %s38
    %p284 = scmp.eq.s32.totalorder %s283, 0
    %s286 = sadd.s32 %s285, 1
    %s287 = scalar_select %p284, %s285, %s286
    %p290 = pneg %p284
    %p291 = scmp.eq.s32.totalorder %s23, 23
    %p292 = por %p290, %p291
    %p293 = scmp.ne.s32.totalorder %s285, %s288
    %p294 = scmp.eq.s32.totalorder %s23, 0
    %p295 = por %p293, %p294
    %p296 = scmp.ne.s32.totalorder %s285, %s288
    %p297 = scmp.eq.s32.totalorder %s28, 23
    %p298 = por %p296, %p297
    %p299 = scmp.ne.s32.totalorder %s288, %s289
    %p300 = scmp.eq.s32.totalorder %s28, 0
    %p301 = por %p299, %p300
    %p302 = scmp.ne.s32.totalorder %s288, %s289
    %p303 = scmp.eq.s32.totalorder %s29, 23
    %p304 = por %p302, %p303
    %p306 = scmp.ne.s32.totalorder %s289, %s305
    %p307 = scmp.eq.s32.totalorder %s29, 0
    %p308 = por %p306, %p307
    %s309 = ssub.s32 %s31, %s38
    %p310 = scmp.eq.s32.totalorder %s309, 0
    %s312 = sadd.s32 %s311, 1
    %s313 = scalar_select %p310, %s311, %s312
    %p316 = pneg %p310
    %p317 = scmp.eq.s32.totalorder %s23, 23
    %p318 = por %p316, %p317
    %p319 = scmp.ne.s32.totalorder %s311, %s314
    %p320 = scmp.eq.s32.totalorder %s23, 0
    %p321 = por %p319, %p320
    %p322 = scmp.ne.s32.totalorder %s311, %s314
    %p323 = scmp.eq.s32.totalorder %s28, 23
    %p324 = por %p322, %p323
    %p325 = scmp.ne.s32.totalorder %s314, %s315
    %p326 = scmp.eq.s32.totalorder %s28, 0
    %p327 = por %p325, %p326
    %p328 = scmp.ne.s32.totalorder %s314, %s315
    %p329 = scmp.eq.s32.totalorder %s29, 23
    %p330 = por %p328, %p329
    %p332 = scmp.ne.s32.totalorder %s315, %s331
    %p333 = scmp.eq.s32.totalorder %s29, 0
    %p334 = por %p332, %p333
    %s335 = ssub.s32 %s31, %s38
    %p336 = scmp.eq.s32.totalorder %s335, 0
    %s338 = sadd.s32 %s337, 1
    %s339 = scalar_select %p336, %s337, %s338
    %p342 = pneg %p336
    %p343 = scmp.eq.s32.totalorder %s23, 23
    %p344 = por %p342, %p343
    %p345 = scmp.ne.s32.totalorder %s337, %s340
    %p346 = scmp.eq.s32.totalorder %s23, 0
    %p347 = por %p345, %p346
    %p348 = scmp.ne.s32.totalorder %s337, %s340
    %p349 = scmp.eq.s32.totalorder %s28, 23
    %p350 = por %p348, %p349
    %p351 = scmp.ne.s32.totalorder %s340, %s341
    %p352 = scmp.eq.s32.totalorder %s28, 0
    %p353 = por %p351, %p352
    %p354 = scmp.ne.s32.totalorder %s340, %s341
    %p355 = scmp.eq.s32.totalorder %s29, 23
    %p356 = por %p354, %p355
    %p358 = scmp.ne.s32.totalorder %s341, %s357
    %p359 = scmp.eq.s32.totalorder %s29, 0
    %p360 = por %p358, %p359
    %s361 = ssub.s32 %s31, %s38
    %p362 = scmp.eq.s32.totalorder %s361, 0
    %s364 = sadd.s32 %s363, 1
    %s365 = scalar_select %p362, %s363, %s364
    %p368 = pneg %p362
    %p369 = scmp.eq.s32.totalorder %s23, 23
    %p370 = por %p368, %p369
    %p371 = scmp.ne.s32.totalorder %s363, %s366
    %p372 = scmp.eq.s32.totalorder %s23, 0
    %p373 = por %p371, %p372
    %p374 = scmp.ne.s32.totalorder %s363, %s366
    %p375 = scmp.eq.s32.totalorder %s28, 23
    %p376 = por %p374, %p375
    %p377 = scmp.ne.s32.totalorder %s366, %s367
    %p378 = scmp.eq.s32.totalorder %s28, 0
    %p379 = por %p377, %p378
    %p380 = scmp.ne.s32.totalorder %s366, %s367
    %p381 = scmp.eq.s32.totalorder %s29, 23
    %p382 = por %p380, %p381
    %p384 = scmp.ne.s32.totalorder %s367, %s383
    %p385 = scmp.eq.s32.totalorder %s29, 0
    %p386 = por %p384, %p385
    %s387 = ssub.s32 %s31, %s38
    %p388 = scmp.eq.s32.totalorder %s387, 0
    %s390 = sadd.s32 %s389, 1
    %s391 = scalar_select %p388, %s389, %s390
    %p394 = pneg %p388
    %p395 = scmp.eq.s32.totalorder %s23, 23
    %p396 = por %p394, %p395
    %p397 = scmp.ne.s32.totalorder %s389, %s392
    %p398 = scmp.eq.s32.totalorder %s23, 0
    %p399 = por %p397, %p398
    %p400 = scmp.ne.s32.totalorder %s389, %s392
    %p401 = scmp.eq.s32.totalorder %s28, 23
    %p402 = por %p400, %p401
    %p403 = scmp.ne.s32.totalorder %s392, %s393
    %p404 = scmp.eq.s32.totalorder %s28, 0
    %p405 = por %p403, %p404
    %p406 = scmp.ne.s32.totalorder %s392, %s393
    %p407 = scmp.eq.s32.totalorder %s29, 23
    %p408 = por %p406, %p407
    %p410 = scmp.ne.s32.totalorder %s393, %s409
    %p411 = scmp.eq.s32.totalorder %s29, 0
    %p412 = por %p410, %p411
    %s413 = ssub.s32 %s31, %s38
    %p414 = scmp.eq.s32.totalorder %s413, 0
    %s416 = sadd.s32 %s415, 1
    %s417 = scalar_select %p414, %s415, %s416
    %p420 = pneg %p414
    %p421 = scmp.eq.s32.totalorder %s23, 23
    %p422 = por %p420, %p421
    %p423 = scmp.ne.s32.totalorder %s415, %s418
    %p424 = scmp.eq.s32.totalorder %s23, 0
    %p425 = por %p423, %p424
    %p426 = scmp.ne.s32.totalorder %s415, %s418
    %p427 = scmp.eq.s32.totalorder %s28, 23
    %p428 = por %p426, %p427
    %p429 = scmp.ne.s32.totalorder %s418, %s419
    %p430 = scmp.eq.s32.totalorder %s28, 0
    %p431 = por %p429, %p430
    %p432 = scmp.ne.s32.totalorder %s418, %s419
    %p433 = scmp.eq.s32.totalorder %s29, 23
    %p434 = por %p432, %p433
    %p436 = scmp.ne.s32.totalorder %s419, %s435
    %p437 = scmp.eq.s32.totalorder %s29, 0
    %p438 = por %p436, %p437
    %s439 = ssub.s32 %s31, %s38
    %p440 = scmp.eq.s32.totalorder %s439, 0
    %s442 = sadd.s32 %s441, 1
    %s443 = scalar_select %p440, %s441, %s442
    %p446 = pneg %p440
    %p447 = scmp.eq.s32.totalorder %s23, 23
    %p448 = por %p446, %p447
    %p449 = scmp.ne.s32.totalorder %s441, %s444
    %p450 = scmp.eq.s32.totalorder %s23, 0
    %p451 = por %p449, %p450
    %p452 = scmp.ne.s32.totalorder %s441, %s444
    %p453 = scmp.eq.s32.totalorder %s28, 23
    %p454 = por %p452, %p453
    %p455 = scmp.ne.s32.totalorder %s444, %s445
    %p456 = scmp.eq.s32.totalorder %s28, 0
    %p457 = por %p455, %p456
    %p458 = scmp.ne.s32.totalorder %s444, %s445
    %p459 = scmp.eq.s32.totalorder %s29, 23
    %p460 = por %p458, %p459
    %p462 = scmp.ne.s32.totalorder %s445, %s461
    %p463 = scmp.eq.s32.totalorder %s29, 0
    %p464 = por %p462, %p463
    %s465 = ssub.s32 %s30, %s42
    %p466 = scmp.eq.s32.totalorder %s465, 0
    %s468 = sadd.s32 %s467, 1
    %s469 = scalar_select %p466, %s467, %s468
    %p472 = pneg %p466
    %p473 = scmp.eq.s32.totalorder %s23, 23
    %p474 = por %p472, %p473
    %p475 = scmp.ne.s32.totalorder %s467, %s470
    %p476 = scmp.eq.s32.totalorder %s23, 0
    %p477 = por %p475, %p476
    %p478 = scmp.ne.s32.totalorder %s467, %s470
    %p479 = scmp.eq.s32.totalorder %s28, 23
    %p480 = por %p478, %p479
    %p481 = scmp.ne.s32.totalorder %s470, %s471
    %p482 = scmp.eq.s32.totalorder %s28, 0
    %p483 = por %p481, %p482
    %p484 = scmp.ne.s32.totalorder %s470, %s471
    %p485 = scmp.eq.s32.totalorder %s29, 23
    %p486 = por %p484, %p485
    %p488 = scmp.ne.s32.totalorder %s471, %s487
    %p489 = scmp.eq.s32.totalorder %s29, 0
    %p490 = por %p488, %p489
    %p491 = scmp.le.s32.totalorder 1, %s23
    %p492 = scmp.lt.s32.totalorder %s23, 25
    %p493 = pnand %p491, %p492
    %p494 = pneg %p493
    // Predicated region
    $region9: #{vit_backbone.1} parent=5 // pred_check
      _
    $region10: #{vit_backbone.1} parent=5 // pred_check_branch
      %496 = sbr.rel (%p493) target = $region12
    $region11: #{vit_backbone.1} parent=5 // pred_region
      %s497 = ssub.s32 %s23, 1
      // Predicated region
      $region13: #{vit_backbone.1} parent=11 // pred_check
        %p498 = pneg %p82
      $region14: #{vit_backbone.1} parent=11 // pred_check_branch
        %500 = sbr.rel (%p498) target = $region16
      $region15: #{vit_backbone.1} parent=11 // pred_region
        _
      $region16: #{vit_backbone.1} parent=11 // pred_fallthru
        _
      // Predicated region
      $region17: #{vit_backbone.1} parent=11 // pred_check
        %p501 = pneg %p103
      $region18: #{vit_backbone.1} parent=11 // pred_check_branch
        %503 = sbr.rel (%p501) target = $region20
      $region19: #{vit_backbone.1} parent=11 // pred_region
        _
      $region20: #{vit_backbone.1} parent=11 // pred_fallthru
        _
      // Predicated region
      $region21: #{vit_backbone.1} parent=11 // pred_check
        %p504 = pneg %p124
      $region22: #{vit_backbone.1} parent=11 // pred_check_branch
        %506 = sbr.rel (%p504) target = $region24
      $region23: #{vit_backbone.1} parent=11 // pred_region
        _
      $region24: #{vit_backbone.1} parent=11 // pred_fallthru
        _
      // Predicated region
      $region25: #{vit_backbone.1} parent=11 // pred_check
        %p507 = pneg %p145
      $region26: #{vit_backbone.1} parent=11 // pred_check_branch
        %509 = sbr.rel (%p507) target = $region28
      $region27: #{vit_backbone.1} parent=11 // pred_region
        _
      $region28: #{vit_backbone.1} parent=11 // pred_fallthru
        _
    $region12: #{vit_backbone.1} parent=5 // pred_fallthru
      _
    %p510 = scmp.lt.s32.totalorder %s23, 24
    // Predicated region
    $region29: #{vit_backbone.1} parent=5 // pred_check
      %p511 = pneg %p510
    $region30: #{vit_backbone.1} parent=5 // pred_check_branch
      %513 = sbr.rel (%p511) target = $region32
    $region31: #{vit_backbone.1} parent=5 // pred_region
      // Predicated region
      $region33: #{vit_backbone.1} parent=31 // pred_check
        %p514 = pneg %p55
      $region34: #{vit_backbone.1} parent=31 // pred_check_branch
        %516 = sbr.rel (%p514) target = $region36
      $region35: #{vit_backbone.1} parent=31 // pred_region
        %p517 = scmp.lt.s32.totalorder %s30, 1
        %s518 = scalar_select %p517, %s30, 1
        %s519 = smul.addr %s518, 2
        %s520 = smul.addr %s519, 8
        %s521 = scalar_lea.vmem %s0, %s520
      $region36: #{vit_backbone.1} parent=31 // pred_fallthru
        _
      // Predicated region
      $region37: #{vit_backbone.1} parent=31 // pred_check
        %p522 = pneg %p165
      $region38: #{vit_backbone.1} parent=31 // pred_check_branch
        %524 = sbr.rel (%p522) target = $region40
      $region39: #{vit_backbone.1} parent=31 // pred_region
        %p525 = scmp.lt.s32.totalorder %s31, 11
        %s526 = scalar_select %p525, %s31, 11
        %s527 = scalar_lea.vmem %s5, %s526
      $region40: #{vit_backbone.1} parent=31 // pred_fallthru
        _
      // Predicated region
      $region41: #{vit_backbone.1} parent=31 // pred_check
        %p528 = pneg %p191
      $region42: #{vit_backbone.1} parent=31 // pred_check_branch
        %530 = sbr.rel (%p528) target = $region44
      $region43: #{vit_backbone.1} parent=31 // pred_region
        %p531 = scmp.lt.s32.totalorder %s31, 11
        %s532 = scalar_select %p531, %s31, 11
        %s533 = scalar_lea.vmem %s6, %s532
      $region44: #{vit_backbone.1} parent=31 // pred_fallthru
        _
      // Predicated region
      $region45: #{vit_backbone.1} parent=31 // pred_check
        %p534 = pneg %p217
      $region46: #{vit_backbone.1} parent=31 // pred_check_branch
        %536 = sbr.rel (%p534) target = $region48
      $region47: #{vit_backbone.1} parent=31 // pred_region
        %p537 = scmp.lt.s32.totalorder %s31, 11
        %s538 = scalar_select %p537, %s31, 11
        %s539 = smul.addr %s538, 12
        %s540 = smul.addr %s539, 4
        %s541 = scalar_lea.vmem %s7, %s540
      $region48: #{vit_backbone.1} parent=31 // pred_fallthru
        _
      // Predicated region
      $region49: #{vit_backbone.1} parent=31 // pred_check
        %p542 = pneg %p243
      $region50: #{vit_backbone.1} parent=31 // pred_check_branch
        %544 = sbr.rel (%p542) target = $region52
      $region51: #{vit_backbone.1} parent=31 // pred_region
        %p545 = scmp.lt.s32.totalorder %s31, 11
        %s546 = scalar_select %p545, %s31, 11
        %s547 = smul.addr %s546, 2
        %s548 = scalar_lea.vmem %s8, %s547
      $region52: #{vit_backbone.1} parent=31 // pred_fallthru
        _
      // Predicated region
      $region53: #{vit_backbone.1} parent=31 // pred_check
        %p549 = pneg %p269
      $region54: #{vit_backbone.1} parent=31 // pred_check_branch
        %551 = sbr.rel (%p549) target = $region56
      $region55: #{vit_backbone.1} parent=31 // pred_region
        %p552 = scmp.lt.s32.totalorder %s31, 11
        %s553 = scalar_select %p552, %s31, 11
        %s554 = smul.addr %s553, 6
        %s555 = smul.addr %s554, 4
        %s556 = scalar_lea.vmem %s9, %s555
      $region56: #{vit_backbone.1} parent=31 // pred_fallthru
        _
      // Predicated region
      $region57: #{vit_backbone.1} parent=31 // pred_check
        %p557 = pneg %p295
      $region58: #{vit_backbone.1} parent=31 // pred_check_branch
        %559 = sbr.rel (%p557) target = $region60
      $region59: #{vit_backbone.1} parent=31 // pred_region
        %p560 = scmp.lt.s32.totalorder %s31, 11
        %s561 = scalar_select %p560, %s31, 11
        %s562 = scalar_lea.vmem %s10, %s561
      $region60: #{vit_backbone.1} parent=31 // pred_fallthru
        _
      // Predicated region
      $region61: #{vit_backbone.1} parent=31 // pred_check
        %p563 = pneg %p321
      $region62: #{vit_backbone.1} parent=31 // pred_check_branch
        %565 = sbr.rel (%p563) target = $region64
      $region63: #{vit_backbone.1} parent=31 // pred_region
        %p566 = scmp.lt.s32.totalorder %s31, 11
        %s567 = scalar_select %p566, %s31, 11
        %s568 = scalar_lea.vmem %s11, %s567
      $region64: #{vit_backbone.1} parent=31 // pred_fallthru
        _
      // Predicated region
      $region65: #{vit_backbone.1} parent=31 // pred_check
        %p569 = pneg %p347
      $region66: #{vit_backbone.1} parent=31 // pred_check_branch
        %571 = sbr.rel (%p569) target = $region68
      $region67: #{vit_backbone.1} parent=31 // pred_region
        %p572 = scmp.lt.s32.totalorder %s31, 11
        %s573 = scalar_select %p572, %s31, 11
        %s574 = scalar_lea.vmem %s12, %s573
      $region68: #{vit_backbone.1} parent=31 // pred_fallthru
        _
      // Predicated region
      $region69: #{vit_backbone.1} parent=31 // pred_check
        %p575 = pneg %p373
      $region70: #{vit_backbone.1} parent=31 // pred_check_branch
        %577 = sbr.rel (%p575) target = $region72
      $region71: #{vit_backbone.1} parent=31 // pred_region
        %p578 = scmp.lt.s32.totalorder %s31, 11
        %s579 = scalar_select %p578, %s31, 11
        %s580 = smul.addr %s579, 12
        %s581 = smul.addr %s580, 4
        %s582 = scalar_lea.vmem %s13, %s581
      $region72: #{vit_backbone.1} parent=31 // pred_fallthru
        _
      // Predicated region
      $region73: #{vit_backbone.1} parent=31 // pred_check
        %p583 = pneg %p399
      $region74: #{vit_backbone.1} parent=31 // pred_check_branch
        %585 = sbr.rel (%p583) target = $region76
      $region75: #{vit_backbone.1} parent=31 // pred_region
        %p586 = scmp.lt.s32.totalorder %s31, 11
        %s587 = scalar_select %p586, %s31, 11
        %s588 = smul.addr %s587, 2
        %s589 = scalar_lea.vmem %s14, %s588
      $region76: #{vit_backbone.1} parent=31 // pred_fallthru
        _
      // Predicated region
      $region77: #{vit_backbone.1} parent=31 // pred_check
        %p590 = pneg %p425
      $region78: #{vit_backbone.1} parent=31 // pred_check_branch
        %592 = sbr.rel (%p590) target = $region80
      $region79: #{vit_backbone.1} parent=31 // pred_region
        %p593 = scmp.lt.s32.totalorder %s31, 11
        %s594 = scalar_select %p593, %s31, 11
        %s595 = smul.addr %s594, 24
        %s596 = smul.addr %s595, 4
        %s597 = scalar_lea.vmem %s15, %s596
      $region80: #{vit_backbone.1} parent=31 // pred_fallthru
        _
      // Predicated region
      $region81: #{vit_backbone.1} parent=31 // pred_check
        %p598 = pneg %p451
      $region82: #{vit_backbone.1} parent=31 // pred_check_branch
        %600 = sbr.rel (%p598) target = $region84
      $region83: #{vit_backbone.1} parent=31 // pred_region
        %p601 = scmp.lt.s32.totalorder %s31, 11
        %s602 = scalar_select %p601, %s31, 11
        %s603 = scalar_lea.vmem %s16, %s602
      $region84: #{vit_backbone.1} parent=31 // pred_fallthru
        _
    $region32: #{vit_backbone.1} parent=5 // pred_fallthru
      _
    %p604 = scmp.le.s32.totalorder 1, %s23
    %p605 = scmp.lt.s32.totalorder %s23, 25
    %p606 = pnand %p604, %p605
    %p607 = pneg %p606
    // Predicated region
    $region85: #{vit_backbone.1} parent=5 // pred_check
      _
    $region86: #{vit_backbone.1} parent=5 // pred_check_branch
      %609 = sbr.rel (%p606) target = $region88
    $region87: #{vit_backbone.1} parent=5 // pred_region
      %s610 = ssub.s32 %s23, 1
      %p611 = scmp.lt.s32.totalorder %s32, 1
      %s612 = scalar_select %p611, %s32, 1
      %s613 = smul.addr %s612, 2
      %s614 = smul.addr %s613, 8
      %s615 = scalar_lea.vmem %s0, %s614
      %p616 = pneg %p61
      %p617 = pneg %p58
      %p618 = pneg %p82
      %p619 = pneg %p79
      %p620 = pneg %p103
      %p621 = pneg %p100
      %p622 = pneg %p124
      %p623 = pneg %p121
      %p624 = pneg %p145
      %p625 = pneg %p142
      %p626 = scmp.lt.s32.totalorder %s33, 11
      %s627 = scalar_select %p626, %s33, 11
      %s628 = scalar_lea.vmem %s5, %s627
      %p629 = pneg %p171
      %p630 = pneg %p168
      %p631 = scmp.lt.s32.totalorder %s33, 11
      %s632 = scalar_select %p631, %s33, 11
      %s633 = scalar_lea.vmem %s6, %s632
      %p634 = pneg %p197
      %p635 = pneg %p194
      %p636 = scmp.lt.s32.totalorder %s33, 11
      %s637 = scalar_select %p636, %s33, 11
      %s638 = smul.addr %s637, 12
      %s639 = smul.addr %s638, 4
      %s640 = scalar_lea.vmem %s7, %s639
      %p641 = pneg %p223
      %p642 = pneg %p220
      %p643 = scmp.lt.s32.totalorder %s33, 11
      %s644 = scalar_select %p643, %s33, 11
      %s645 = smul.addr %s644, 2
      %s646 = scalar_lea.vmem %s8, %s645
      %p647 = pneg %p249
      %p648 = pneg %p246
      %p649 = scmp.lt.s32.totalorder %s33, 11
      %s650 = scalar_select %p649, %s33, 11
      %s651 = smul.addr %s650, 6
      %s652 = smul.addr %s651, 4
      %s653 = scalar_lea.vmem %s9, %s652
      %p654 = pneg %p275
      %p655 = pneg %p272
      %p656 = scmp.lt.s32.totalorder %s33, 11
      %s657 = scalar_select %p656, %s33, 11
      %s658 = scalar_lea.vmem %s10, %s657
      %p659 = pneg %p301
      %p660 = pneg %p298
      %p661 = scmp.lt.s32.totalorder %s33, 11
      %s662 = scalar_select %p661, %s33, 11
      %s663 = scalar_lea.vmem %s11, %s662
      %p664 = pneg %p327
      %p665 = pneg %p324
      %p666 = scmp.lt.s32.totalorder %s33, 11
      %s667 = scalar_select %p666, %s33, 11
      %s668 = scalar_lea.vmem %s12, %s667
      %p669 = pneg %p353
      %p670 = pneg %p350
      %p671 = scmp.lt.s32.totalorder %s33, 11
      %s672 = scalar_select %p671, %s33, 11
      %s673 = smul.addr %s672, 12
      %s674 = smul.addr %s673, 4
      %s675 = scalar_lea.vmem %s13, %s674
      %p676 = pneg %p379
      %p677 = pneg %p376
      %p678 = scmp.lt.s32.totalorder %s33, 11
      %s679 = scalar_select %p678, %s33, 11
      %s680 = smul.addr %s679, 2
      %s681 = scalar_lea.vmem %s14, %s680
      %p682 = pneg %p405
      %p683 = pneg %p402
      %p684 = scmp.lt.s32.totalorder %s33, 11
      %s685 = scalar_select %p684, %s33, 11
      %s686 = smul.addr %s685, 24
      %s687 = smul.addr %s686, 4
      %s688 = scalar_lea.vmem %s15, %s687
      %p689 = pneg %p431
      %p690 = pneg %p428
      %p691 = scmp.lt.s32.totalorder %s33, 11
      %s692 = scalar_select %p691, %s33, 11
      %s693 = scalar_lea.vmem %s16, %s692
      %p694 = pneg %p457
      %p695 = pneg %p454
      %p696 = pneg %p483
      %p697 = pneg %p480
      %p698 = scmp.lt.s32.totalorder %s32, 1
      %s699 = scalar_select %p698, %s32, 1
      %s700 = smul.addr %s699, 3
      %s701 = smul.addr %s700, 8
      %s702 = scalar_lea.vmem %s17, %s701
      %p703 = scmp.lt.s32.totalorder %s32, 1
      %s704 = scalar_select %p703, %s32, 1
      %s705 = smul.addr %s704, 2
      %s706 = smul.addr %s705, 8
      %s707 = scalar_lea.vmem %s0, %s706
      %p708 = scmp.lt.s32.totalorder %s33, 11
      %s709 = scalar_select %p708, %s33, 11
      %s710 = scalar_lea.vmem %s5, %s709
      %p711 = scmp.lt.s32.totalorder %s33, 11
      %s712 = scalar_select %p711, %s33, 11
      %s713 = scalar_lea.vmem %s6, %s712
      %p714 = scmp.lt.s32.totalorder %s33, 11
      %s715 = scalar_select %p714, %s33, 11
      %s716 = smul.addr %s715, 12
      %s717 = smul.addr %s716, 4
      %s718 = scalar_lea.vmem %s7, %s717
      %p719 = scmp.lt.s32.totalorder %s33, 11
      %s720 = scalar_select %p719, %s33, 11
      %s721 = smul.addr %s720, 2
      %s722 = scalar_lea.vmem %s8, %s721
      %p723 = scmp.lt.s32.totalorder %s33, 11
      %s724 = scalar_select %p723, %s33, 11
      %s725 = smul.addr %s724, 6
      %s726 = smul.addr %s725, 4
      %s727 = scalar_lea.vmem %s9, %s726
      %p728 = scmp.lt.s32.totalorder %s33, 11
      %s729 = scalar_select %p728, %s33, 11
      %s730 = scalar_lea.vmem %s10, %s729
      %p731 = scmp.lt.s32.totalorder %s33, 11
      %s732 = scalar_select %p731, %s33, 11
      %s733 = scalar_lea.vmem %s11, %s732
      %p734 = scmp.lt.s32.totalorder %s33, 11
      %s735 = scalar_select %p734, %s33, 11
      %s736 = scalar_lea.vmem %s12, %s735
      %p737 = scmp.lt.s32.totalorder %s33, 11
      %s738 = scalar_select %p737, %s33, 11
      %s739 = smul.addr %s738, 12
      %s740 = smul.addr %s739, 4
      %s741 = scalar_lea.vmem %s13, %s740
      %p742 = scmp.lt.s32.totalorder %s33, 11
      %s743 = scalar_select %p742, %s33, 11
      %s744 = smul.addr %s743, 2
      %s745 = scalar_lea.vmem %s14, %s744
      %p746 = scmp.lt.s32.totalorder %s33, 11
      %s747 = scalar_select %p746, %s33, 11
      %s748 = smul.addr %s747, 24
      %s749 = smul.addr %s748, 4
      %s750 = scalar_lea.vmem %s15, %s749
      %p751 = scmp.lt.s32.totalorder %s33, 11
      %s752 = scalar_select %p751, %s33, 11
      %s753 = scalar_lea.vmem %s16, %s752
      %p754 = scmp.lt.s32.totalorder %s32, 1
      %s755 = scalar_select %p754, %s32, 1
      %s756 = smul.addr %s755, 3
      %s757 = smul.addr %s756, 8
      %s758 = scalar_lea.vmem %s17, %s757
      %p760 = scmp.eq.s32.totalorder %s33, 0
      // Predicated region
      $region89: #{vit_backbone.1} parent=87 // pred_check
        %p761 = pneg %p760
      $region90: #{vit_backbone.1} parent=87 // pred_check_branch
        %763 = sbr.rel (%p761) target = $region92
      $region91: #{vit_backbone.1} parent=87 // pred_region
        %v764 = vld [vmem:[%s707] sm:$0xff]
        %v765 = vld [vmem:[%s707 + $0x8] sm:$0xff]
        %v766 = vpack.c.bf16 %v765, %v764
        %v767 = vld [vmem:[%s1] sm:$0xf]
        %v768 = vld [vmem:[%s1 + $0x4] sm:$0xf]
        %v769 = vld [vmem:[%s1 + $0x8] sm:$0xf]
        %v770 = vld [vmem:[%s1 + $0xc] sm:$0xf]
        %v771 = vld [vmem:[%s1 + $0x10] sm:$0xf]
        %v772 = vld [vmem:[%s1 + $0x14] sm:$0xf]
        %v773 = vld [vmem:[%s1 + $0x18] sm:$0xf]
        %v774 = vld [vmem:[%s1 + $0x1c] sm:$0xf]
        %v775 = vld [vmem:[%s2] sm:$0x1]
        %v777 = vlaneseq
        %v778 = vshrl.u32 %v777, 7
        %v779 = vsub.s32 0, %v778
        %v780 = vrot.slane %v775, %v779
        %v790 = vunpack.c.l.b16 %v767
        %v791 = vunpack.c.l.b16 %v768
        %v792 = vunpack.c.l.b16 %v769
        %v793 = vunpack.c.l.b16 %v770
        %v794 = vunpack.c.l.b16 %v771
        %v795 = vunpack.c.l.b16 %v772
        %v796 = vunpack.c.l.b16 %v773
        %v797 = vunpack.c.l.b16 %v774
        %v798 = vpack.c.b16 %v791, %v790
        %v799 = vpack.c.b16 %v793, %v792
        %v800 = vpack.c.b16 %v795, %v794
        %v801 = vpack.c.b16 %v797, %v796
        %vm806 = vcmask 523264
        %v808 = vsel %vm806, %v766, 0
        %810 = vmatprep.subr.bf16.mxu0 0
        %811 = vmatpush1.bf16.msra.mxu0 %v798
        %812 = vmatprep.subr.bf16.mxu0 0
        %813 = vmatpush1.bf16.msra.mxu0 %v799
        %814 = vmatprep.subr.bf16.mxu0 0
        %815 = vmatpush1.bf16.msra.mxu0 %v800
        %816 = vmatprep.subr.bf16.mxu0 0
        %817 = vmatpush1.bf16.msra.mxu0 %v801
        %818 = vmatprep.subr.bf16.mxu0 0
        %819 = vmatpush1.bf16.msra.mxu0 0
        %820 = vmatprep.subr.bf16.mxu0 0
        %821 = vmatpush1.bf16.msra.mxu0 0
        %822 = vmatprep.subr.bf16.mxu0 0
        %823 = vmatpush1.bf16.msra.mxu0 0
        %824 = vmatprep.subr.bf16.mxu0 0
        %825 = vmatpush1.bf16.msra.mxu0 0
        %826 = vmatprep.subr.bf16.mxu0 0
        %827 = vmatpush1.bf16.msra.mxu0 0
        %828 = vmatprep.subr.bf16.mxu0 0
        %829 = vmatpush1.bf16.msra.mxu0 0
        %830 = vmatprep.subr.bf16.mxu0 0
        %831 = vmatpush1.bf16.msra.mxu0 0
        %832 = vmatprep.subr.bf16.mxu0 0
        %833 = vmatpush1.bf16.msra.mxu0 0
        %834 = vmatprep.subr.bf16.mxu0 0
        %835 = vmatpush1.bf16.msra.mxu0 0
        %836 = vmatprep.subr.bf16.mxu0 0
        %837 = vmatpush1.bf16.msra.mxu0 0
        %838 = vmatprep.subr.bf16.mxu0 0
        %839 = vmatpush1.bf16.msra.mxu0 0
        %840 = vmatprep.subr.bf16.mxu0 0
        %841 = vmatpush1.bf16.msra.mxu0 0
        %842 = vmatprep.mubr.bf16.mxu0 0
        %843 = vmatmul.mubr.bf16.gmra.mrb[0].mxu0 %v808
        %v844 = vpop.f32.mrb[0].mxu0
        %v845 = vadd.f32 %v780, %v844
        %v846 = vpop.f32.mrb[0].mxu0
        %v847 = vpop.f32.mrb[0].mxu0
        %v848 = vadd.f32 %v780, %v847
        %v849 = vpop.f32.mrb[0].mxu0
        %850 = vdwg.mxu0
        %v851 = vld [vmem:[%s4] sm:$0xff]
        %v852 = vld [vmem:[%s4 + $0x8] sm:$0xff]
        %v853 = vld [vmem:[%s4 + $0x10] sm:$0x1]
        %v854 = vld [vmem:[%s3] sm:$0x1]
        %v855 = vadd.f32 %v854, %v851
        %vm856 = vcmask 385024
        %857 = vst.msk [vmem:[#allocation2] sm:$0x1] %vm856, %v855
        %vm861 = vcmask 1046528
        %v862 = vrot.slane %v851, 1
        %v863 = vrot.slane %v852, 1
        %v864 = vsel %vm861, %v862, %v863
        %v865 = vrot.slane %v853, 1
        %v866 = vsel %vm861, %v863, %v865
        %v869 = vadd.f32 %v845, %v864
        %v870 = vadd.f32 %v848, %v866
        %vm871 = vcmask 392192
        %872 = vst.msk [vmem:[#allocation2 + $0x1] sm:$0xff] %vm871, %v869
        %873 = vst.msk [vmem:[#allocation2 + $0x9] sm:$0xff] %vm871, %v870
      $region92: #{vit_backbone.1} parent=87 // pred_fallthru
        _
      %v874 = vld [vmem:[#allocation2] sm:$0xff]
      %v875 = vld [vmem:[#allocation2 + $0x8] sm:$0xff]
      %v876 = vld [vmem:[#allocation2 + $0x10] sm:$0x1]
      %v877 = vld [vmem:[%s710] sm:$0x1]
      %v878 = vld [vmem:[%s713] sm:$0x1]
      %vm879 = vcmask 392192
      %v880 = vsel %vm879, %v874, 0.0
      %881 = vadd.xlane.f32.xlu0 %v880
      %v882 = vpop.xlane.xlu0 %881
      %v883 = vsel %vm879, %v875, 0.0
      %884 = vadd.xlane.f32.xlu0 %v883
      %v885 = vpop.xlane.xlu0 %884
      %vm886 = vcmask 385024
      %v887 = vsel %vm886, %v876, 0.0
      %888 = vadd.xlane.f32.xlu0 %v887
      %v889 = vpop.xlane.xlu0 %888
      %v890 = vrcp.pop 48.0
      %v891 = vmul.f32 %v882, %v890
      %v892 = vmul.f32 %v885, %v890
      %v893 = vmul.f32 %v889, %v890
      %v894 = vsub.f32 %v874, %v891
      %v895 = vsub.f32 %v875, %v892
      %v896 = vsub.f32 %v876, %v893
      %v897 = vmul.f32 %v894, %v894
      %v898 = vmul.f32 %v895, %v895
      %v899 = vmul.f32 %v896, %v896
      %v900 = vsel %vm879, %v897, 0.0
      %901 = vadd.xlane.f32.xlu0 %v900
      %v902 = vpop.xlane.xlu0 %901
      %v903 = vsel %vm879, %v898, 0.0
      %904 = vadd.xlane.f32.xlu0 %v903
      %v905 = vpop.xlane.xlu0 %904
      %v906 = vsel %vm886, %v899, 0.0
      %907 = vadd.xlane.f32.xlu0 %v906
      %v908 = vpop.xlane.xlu0 %907
      %v909 = vmul.f32 %v902, %v890
      %v910 = vmul.f32 %v905, %v890
      %v911 = vmul.f32 %v908, %v890
      %v912 = vadd.f32 %v909, 1e-05
      %v913 = vadd.f32 %v910, 1e-05
      %v914 = vadd.f32 %v911, 1e-05
      %v915 = vrsqrt.pop %v912
      %v916 = vrsqrt.pop %v913
      %v917 = vrsqrt.pop %v914
      %v918 = vmul.f32 %v894, %v915
      %v919 = vmul.f32 %v895, %v916
      %v920 = vmul.f32 %v896, %v917
      %v922 = vlaneseq
      %v923 = vshrl.u32 %v922, 7
      %v924 = vsub.s32 0, %v923
      %v925 = vrot.slane %v877, %v924
      %v927 = vmul.f32 %v918, %v925
      %v928 = vmul.f32 %v919, %v925
      %v929 = vmul.f32 %v920, %v925
      %v931 = vlaneseq
      %v932 = vshrl.u32 %v931, 7
      %v933 = vsub.s32 0, %v932
      %v934 = vrot.slane %v878, %v933
      %v936 = vadd.f32 %v927, %v934
      %v937 = vadd.f32 %v928, %v934
      %v938 = vadd.f32 %v929, %v934
      %v939 = vpack.c.bf16 %v937, %v936
      %v940 = vpack.c.bf16 %v938, %v938
      %v941 = vld [vmem:[%s718] sm:$0xff]
      %v942 = vld [vmem:[%s718 + $0x8] sm:$0xff]
      %v943 = vld [vmem:[%s718 + $0x10] sm:$0xff]
      %v944 = vld [vmem:[%s718 + $0x18] sm:$0xff]
      %v945 = vld [vmem:[%s718 + $0x20] sm:$0xff]
      %v946 = vld [vmem:[%s718 + $0x28] sm:$0xff]
      %v947 = vld [vmem:[%s722] sm:$0x3]
      %v949 = vlaneseq
      %v950 = vshrl.u32 %v949, 7
      %v951 = vsub.s32 0, %v950
      %v952 = vrot.slane %v947, %v951
      %v953 = vlaneseq
      %v954 = vshrl.u32 %v953, 7
      %v955 = vsub.s32 1, %v954
      %v956 = vrot.slane %v947, %v955
      %v965 = vunpack.c.l.b16 %v941
      %v966 = vunpack.c.h.b16 %v941
      %v967 = vunpack.c.l.b16 %v942
      %v968 = vunpack.c.h.b16 %v942
      %v969 = vunpack.c.l.b16 %v943
      %v970 = vunpack.c.h.b16 %v943
      %v971 = vunpack.c.l.b16 %v944
      %v972 = vunpack.c.h.b16 %v944
      %v973 = vunpack.c.l.b16 %v945
      %v974 = vunpack.c.h.b16 %v945
      %v975 = vunpack.c.l.b16 %v946
      %v976 = vunpack.c.h.b16 %v946
      %v977 = vpack.c.b16 %v967, %v965
      %v978 = vpack.c.b16 %v968, %v966
      %v979 = vpack.c.b16 %v971, %v969
      %v980 = vpack.c.b16 %v972, %v970
      %v981 = vpack.c.b16 %v975, %v973
      %v982 = vpack.c.b16 %v976, %v974
      %v990 = vsel %vm879, %v939, 0
      %v993 = vsel %vm879, %v940, 0
      %995 = vmatprep.subr.bf16.mxu0 %v978
      %996 = vmatpush1.bf16.msra.mxu0 %v977
      %997 = vmatprep.subr.bf16.mxu0 %v980
      %998 = vmatpush1.bf16.msra.mxu0 %v979
      %999 = vmatprep.subr.bf16.mxu0 %v982
      %1000 = vmatpush1.bf16.msra.mxu0 %v981
      %1001 = vmatprep.subr.bf16.mxu0 0
      %1002 = vmatpush1.bf16.msra.mxu0 0
      %1003 = vmatprep.subr.bf16.mxu0 0
      %1004 = vmatpush1.bf16.msra.mxu0 0
      %1005 = vmatprep.subr.bf16.mxu0 0
      %1006 = vmatpush1.bf16.msra.mxu0 0
      %1007 = vmatprep.subr.bf16.mxu0 0
      %1008 = vmatpush1.bf16.msra.mxu0 0
      %1009 = vmatprep.subr.bf16.mxu0 0
      %1010 = vmatpush1.bf16.msra.mxu0 0
      %1011 = vmatprep.subr.bf16.mxu0 0
      %1012 = vmatpush1.bf16.msra.mxu0 0
      %1013 = vmatprep.subr.bf16.mxu0 0
      %1014 = vmatpush1.bf16.msra.mxu0 0
      %1015 = vmatprep.subr.bf16.mxu0 0
      %1016 = vmatpush1.bf16.msra.mxu0 0
      %1017 = vmatprep.subr.bf16.mxu0 0
      %1018 = vmatpush1.bf16.msra.mxu0 0
      %1019 = vmatprep.subr.bf16.mxu0 0
      %1020 = vmatpush1.bf16.msra.mxu0 0
      %1021 = vmatprep.subr.bf16.mxu0 0
      %1022 = vmatpush1.bf16.msra.mxu0 0
      %1023 = vmatprep.subr.bf16.mxu0 0
      %1024 = vmatpush1.bf16.msra.mxu0 0
      %1025 = vmatprep.subr.bf16.mxu0 0
      %1026 = vmatpush1.bf16.msra.mxu0 0
      %1027 = vmatprep.mubr.bf16.mxu0 0
      %1028 = vmatmul.mubr.bf16.gmra.mrb[0].mxu0 %v990
      %v1029 = vpop.f32.mrb[0].mxu0
      %v1030 = vadd.f32 %v952, %v1029
      %v1031 = vpop.f32.mrb[0].mxu0
      %v1032 = vadd.f32 %v956, %v1031
      %v1033 = vpop.f32.mrb[0].mxu0
      %v1034 = vadd.f32 %v952, %v1033
      %v1035 = vpop.f32.mrb[0].mxu0
      %v1036 = vadd.f32 %v956, %v1035
      %1037 = vmatprep.mubr.bf16.mxu0 0
      %1038 = vmatmul.mubr.bf16.gmra.mrb[0].mxu0 %v993
      %v1039 = vpop.f32.mrb[0].mxu0
      %v1040 = vadd.f32 %v952, %v1039
      %v1041 = vpop.f32.mrb[0].mxu0
      %v1042 = vadd.f32 %v956, %v1041
      %v1043 = vpop.f32.mrb[0].mxu0
      %v1044 = vpop.f32.mrb[0].mxu0
      %1045 = vdwg.mxu0
      %v1046 = vpack.c.bf16 %v1034, %v1030
      %v1047 = vpack.c.bf16 %v1040, %v1040
      %v1048 = vpack.c.bf16 %v1036, %v1032
      %v1049 = vpack.c.bf16 %v1042, %v1042
      %1052 = vrot.lane.b32.xlu0 %v1046, 80
      %v1053 = vpop.permute.xlu0 %1052
      %1054 = vrot.lane.b32.xlu0 %v1047, 80
      %v1055 = vpop.permute.xlu0 %1054
      %vm1056 = vcmask 31744
      %v1058 = vsel %vm1056, %v1046, 0
      %v1061 = vsel %vm1056, %v1047, 0
      %v1064 = vsel %vm1056, %v1053, 0
      %v1067 = vsel %vm1056, %v1055, 0
      %1069 = vmatprep.subr.bf16.mxu0 0
      %1070 = vmatpush1.bf16.xpose.msra.mxu0 %v1064
      %1071 = vmatprep.subr.bf16.mxu0 0
      %1072 = vmatpush1.bf16.xpose.msra.mxu0 %v1067
      %1073 = vmatprep.subr.bf16.mxu0 0
      %1074 = vmatpush1.bf16.xpose.msra.mxu0 0
      %1075 = vmatprep.subr.bf16.mxu0 0
      %1076 = vmatpush1.bf16.xpose.msra.mxu0 0
      %1077 = vmatprep.subr.bf16.mxu0 0
      %1078 = vmatpush1.bf16.xpose.msra.mxu0 0
      %1079 = vmatprep.subr.bf16.mxu0 0
      %1080 = vmatpush1.bf16.xpose.msra.mxu0 0
      %1081 = vmatprep.subr.bf16.mxu0 0
      %1082 = vmatpush1.bf16.xpose.msra.mxu0 0
      %1083 = vmatprep.subr.bf16.mxu0 0
      %1084 = vmatpush1.bf16.xpose.msra.mxu0 0
      %1085 = vmatprep.subr.bf16.mxu0 0
      %1086 = vmatpush1.bf16.xpose.msra.mxu0 0
      %1087 = vmatprep.subr.bf16.mxu0 0
      %1088 = vmatpush1.bf16.xpose.msra.mxu0 0
      %1089 = vmatprep.subr.bf16.mxu0 0
      %1090 = vmatpush1.bf16.xpose.msra.mxu0 0
      %1091 = vmatprep.subr.bf16.mxu0 0
      %1092 = vmatpush1.bf16.xpose.msra.mxu0 0
      %1093 = vmatprep.subr.bf16.mxu0 0
      %1094 = vmatpush1.bf16.xpose.msra.mxu0 0
      %1095 = vmatprep.subr.bf16.mxu0 0
      %1096 = vmatpush1.bf16.xpose.msra.mxu0 0
      %1097 = vmatprep.subr.bf16.mxu0 0
      %1098 = vmatpush1.bf16.xpose.msra.mxu0 0
      %1099 = vmatprep.subr.bf16.mxu0 0
      %1100 = vmatpush1.bf16.xpose.msra.mxu0 0
      %1101 = vmatprep.mubr.bf16.mxu0 0
      %1102 = vmatmul.mubr.bf16.gmra.mrb[0].mxu0 %v1058
      %v1103 = vpop.f32.mrb[0].mxu0
      %v1104 = vadd.f32 0.0, %v1103
      %v1105 = vpop.f32.mrb[0].mxu0
      %v1106 = vpop.f32.mrb[0].mxu0
      %v1107 = vadd.f32 0.0, %v1106
      %v1108 = vpop.f32.mrb[0].mxu0
      %1109 = vmatprep.mubr.bf16.mxu0 0
      %1110 = vmatmul.mubr.bf16.gmra.mrb[0].mxu0 %v1061
      %v1111 = vpop.f32.mrb[0].mxu0
      %v1112 = vadd.f32 0.0, %v1111
      %v1113 = vpop.f32.mrb[0].mxu0
      %v1114 = vpop.f32.mrb[0].mxu0
      %v1115 = vpop.f32.mrb[0].mxu0
      %1116 = vdwg.mxu0
      %vm1117 = vcmask 138240
      %v1118 = vsel %vm1117, %v1104, -inf
      %1119 = vmax.xlane.f32.xlu0 %v1118
      %v1120 = vpop.xlane.xlu0 %1119
      %v1121 = vsel %vm1117, %v1107, -inf
      %1122 = vmax.xlane.f32.xlu0 %v1121
      %v1123 = vpop.xlane.xlu0 %1122
      %vm1124 = vcmask 131072
      %v1125 = vsel %vm1124, %v1112, -inf
      %1126 = vmax.xlane.f32.xlu0 %v1125
      %v1127 = vpop.xlane.xlu0 %1126
      %v1128 = vsub.f32 %v1104, %v1120
      %v1129 = vsub.f32 %v1107, %v1123
      %v1130 = vsub.f32 %v1112, %v1127
      %v1131 = vmul.f32 %v1128, 1.442695
      %v1132 = vpow.pop %v1131
      %v1133 = vmul.f32 %v1129, 1.442695
      %v1134 = vpow.pop %v1133
      %v1135 = vmul.f32 %v1130, 1.442695
      %v1136 = vpow.pop %v1135
      %v1137 = vsel %vm1117, %v1132, 0.0
      %1138 = vadd.xlane.f32.xlu0 %v1137
      %v1139 = vpop.xlane.xlu0 %1138
      %v1140 = vsel %vm1117, %v1134, 0.0
      %1141 = vadd.xlane.f32.xlu0 %v1140
      %v1142 = vpop.xlane.xlu0 %1141
      %v1143 = vsel %vm1124, %v1136, 0.0
      %1144 = vadd.xlane.f32.xlu0 %v1143
      %v1145 = vpop.xlane.xlu0 %1144
      %v1146 = vrcp.pop %v1139
      %v1147 = vrcp.pop %v1142
      %v1148 = vrcp.pop %v1145
      %v1149 = vmul.f32 %v1132, %v1146
      %v1150 = vmul.f32 %v1134, %v1147
      %v1151 = vmul.f32 %v1136, %v1148
      %v1152 = vpack.c.bf16 %v1150, %v1149
      %v1153 = vpack.c.bf16 %v1151, %v1151
      %1154 = vrot.lane.b32.xlu0 %v1046, 32
      %v1155 = vpop.permute.xlu0 %1154
      %1156 = vrot.lane.b32.xlu0 %v1047, 32
      %v1157 = vpop.permute.xlu0 %1156
      %v1160 = vsel %vm1117, %v1152, 0
      %v1163 = vsel %vm1117, %v1153, 0
      %vm1165 = vcmask 1040384
      %v1166 = vsel 0, 4294967295, 65535
      %v1167 = vsel %vm1165, %v1166, 0
      %v1169 = vand.u32 %v1157, %v1167
      %1171 = vmatprep.subr.bf16.mxu0 0
      %1172 = vmatpush1.bf16.msra.mxu0 %v1155
      %1173 = vmatprep.subr.bf16.mxu0 0
      %1174 = vmatpush1.bf16.msra.mxu0 %v1169
      %1175 = vmatprep.subr.bf16.mxu0 0
      %1176 = vmatpush1.bf16.msra.mxu0 0
      %1177 = vmatprep.subr.bf16.mxu0 0
      %1178 = vmatpush1.bf16.msra.mxu0 0
      %1179 = vmatprep.subr.bf16.mxu0 0
      %1180 = vmatpush1.bf16.msra.mxu0 0
      %1181 = vmatprep.subr.bf16.mxu0 0
      %1182 = vmatpush1.bf16.msra.mxu0 0
      %1183 = vmatprep.subr.bf16.mxu0 0
      %1184 = vmatpush1.bf16.msra.mxu0 0
      %1185 = vmatprep.subr.bf16.mxu0 0
      %1186 = vmatpush1.bf16.msra.mxu0 0
      %1187 = vmatprep.subr.bf16.mxu0 0
      %1188 = vmatpush1.bf16.msra.mxu0 0
      %1189 = vmatprep.subr.bf16.mxu0 0
      %1190 = vmatpush1.bf16.msra.mxu0 0
      %1191 = vmatprep.subr.bf16.mxu0 0
      %1192 = vmatpush1.bf16.msra.mxu0 0
      %1193 = vmatprep.subr.bf16.mxu0 0
      %1194 = vmatpush1.bf16.msra.mxu0 0
      %1195 = vmatprep.subr.bf16.mxu0 0
      %1196 = vmatpush1.bf16.msra.mxu0 0
      %1197 = vmatprep.subr.bf16.mxu0 0
      %1198 = vmatpush1.bf16.msra.mxu0 0
      %1199 = vmatprep.subr.bf16.mxu0 0
      %1200 = vmatpush1.bf16.msra.mxu0 0
      %1201 = vmatprep.subr.bf16.mxu0 0
      %1202 = vmatpush1.bf16.msra.mxu0 0
      %1203 = vmatprep.mubr.bf16.mxu0 0
      %1204 = vmatmul.mubr.bf16.gmra.mrb[0].mxu0 %v1160
      %v1205 = vpop.f32.mrb[0].mxu0
      %v1206 = vadd.f32 0.0, %v1205
      %v1207 = vpop.f32.mrb[0].mxu0
      %v1208 = vpop.f32.mrb[0].mxu0
      %v1209 = vadd.f32 0.0, %v1208
      %v1210 = vpop.f32.mrb[0].mxu0
      %1211 = vmatprep.mubr.bf16.mxu0 0
      %1212 = vmatmul.mubr.bf16.gmra.mrb[0].mxu0 %v1163
      %v1213 = vpop.f32.mrb[0].mxu0
      %v1214 = vadd.f32 0.0, %v1213
      %v1215 = vpop.f32.mrb[0].mxu0
      %v1216 = vpop.f32.mrb[0].mxu0
      %v1217 = vpop.f32.mrb[0].mxu0
      %1218 = vdwg.mxu0
      %1219 = vrot.lane.b32.xlu0 %v1046, 124
      %v1220 = vpop.permute.xlu0 %1219
      %1221 = vrot.lane.b32.xlu0 %v1047, 124
      %v1222 = vpop.permute.xlu0 %1221
      %1223 = vrot.lane.b32.xlu0 %v1046, 76
      %v1224 = vpop.permute.xlu0 %1223
      %1225 = vrot.lane.b32.xlu0 %v1047, 76
      %v1226 = vpop.permute.xlu0 %1225
      %v1228 = vsel %vm1056, %v1220, 0
      %v1231 = vsel %vm1056, %v1222, 0
      %v1234 = vsel %vm1056, %v1224, 0
      %v1237 = vsel %vm1056, %v1226, 0
      %1239 = vmatprep.subr.bf16.mxu0 0
      %1240 = vmatpush1.bf16.xpose.msra.mxu0 %v1234
      %1241 = vmatprep.subr.bf16.mxu0 0
      %1242 = vmatpush1.bf16.xpose.msra.mxu0 %v1237
      %1243 = vmatprep.subr.bf16.mxu0 0
      %1244 = vmatpush1.bf16.xpose.msra.mxu0 0
      %1245 = vmatprep.subr.bf16.mxu0 0
      %1246 = vmatpush1.bf16.xpose.msra.mxu0 0
      %1247 = vmatprep.subr.bf16.mxu0 0
      %1248 = vmatpush1.bf16.xpose.msra.mxu0 0
      %1249 = vmatprep.subr.bf16.mxu0 0
      %1250 = vmatpush1.bf16.xpose.msra.mxu0 0
      %1251 = vmatprep.subr.bf16.mxu0 0
      %1252 = vmatpush1.bf16.xpose.msra.mxu0 0
      %1253 = vmatprep.subr.bf16.mxu0 0
      %1254 = vmatpush1.bf16.xpose.msra.mxu0 0
      %1255 = vmatprep.subr.bf16.mxu0 0
      %1256 = vmatpush1.bf16.xpose.msra.mxu0 0
      %1257 = vmatprep.subr.bf16.mxu0 0
      %1258 = vmatpush1.bf16.xpose.msra.mxu0 0
      %1259 = vmatprep.subr.bf16.mxu0 0
      %1260 = vmatpush1.bf16.xpose.msra.mxu0 0
      %1261 = vmatprep.subr.bf16.mxu0 0
      %1262 = vmatpush1.bf16.xpose.msra.mxu0 0
      %1263 = vmatprep.subr.bf16.mxu0 0
      %1264 = vmatpush1.bf16.xpose.msra.mxu0 0
      %1265 = vmatprep.subr.bf16.mxu0 0
      %1266 = vmatpush1.bf16.xpose.msra.mxu0 0
      %1267 = vmatprep.subr.bf16.mxu0 0
      %1268 = vmatpush1.bf16.xpose.msra.mxu0 0
      %1269 = vmatprep.subr.bf16.mxu0 0
      %1270 = vmatpush1.bf16.xpose.msra.mxu0 0
      %1271 = vmatprep.mubr.bf16.mxu0 0
      %1272 = vmatmul.mubr.bf16.gmra.mrb[0].mxu0 %v1228
      %v1273 = vpop.f32.mrb[0].mxu0
      %v1274 = vadd.f32 0.0, %v1273
      %v1275 = vpop.f32.mrb[0].mxu0
      %v1276 = vpop.f32.mrb[0].mxu0
      %v1277 = vadd.f32 0.0, %v1276
      %v1278 = vpop.f32.mrb[0].mxu0
      %1279 = vmatprep.mubr.bf16.mxu0 0
      %1280 = vmatmul.mubr.bf16.gmra.mrb[0].mxu0 %v1231
      %v1281 = vpop.f32.mrb[0].mxu0
      %v1282 = vadd.f32 0.0, %v1281
      %v1283 = vpop.f32.mrb[0].mxu0
      %v1284 = vpop.f32.mrb[0].mxu0
      %v1285 = vpop.f32.mrb[0].mxu0
      %1286 = vdwg.mxu0
      %v1287 = vsel %vm1117, %v1274, -inf
      %1288 = vmax.xlane.f32.xlu0 %v1287
      %v1289 = vpop.xlane.xlu0 %1288
      %v1290 = vsel %vm1117, %v1277, -inf
      %1291 = vmax.xlane.f32.xlu0 %v1290
      %v1292 = vpop.xlane.xlu0 %1291
      %v1293 = vsel %vm1124, %v1282, -inf
      %1294 = vmax.xlane.f32.xlu0 %v1293
      %v1295 = vpop.xlane.xlu0 %1294
      %v1296 = vsub.f32 %v1274, %v1289
      %v1297 = vsub.f32 %v1277, %v1292
      %v1298 = vsub.f32 %v1282, %v1295
      %v1299 = vmul.f32 %v1296, 1.442695
      %v1300 = vpow.pop %v1299
      %v1301 = vmul.f32 %v1297, 1.442695
      %v1302 = vpow.pop %v1301
      %v1303 = vmul.f32 %v1298, 1.442695
      %v1304 = vpow.pop %v1303
      %v1305 = vsel %vm1117, %v1300, 0.0
      %1306 = vadd.xlane.f32.xlu0 %v1305
      %v1307 = vpop.xlane.xlu0 %1306
      %v1308 = vsel %vm1117, %v1302, 0.0
      %1309 = vadd.xlane.f32.xlu0 %v1308
      %v1310 = vpop.xlane.xlu0 %1309
      %v1311 = vsel %vm1124, %v1304, 0.0
      %1312 = vadd.xlane.f32.xlu0 %v1311
      %v1313 = vpop.xlane.xlu0 %1312
      %v1314 = vrcp.pop %v1307
      %v1315 = vrcp.pop %v1310
      %v1316 = vrcp.pop %v1313
      %v1317 = vmul.f32 %v1300, %v1314
      %v1318 = vmul.f32 %v1302, %v1315
      %v1319 = vmul.f32 %v1304, %v1316
      %v1320 = vpack.c.bf16 %v1318, %v1317
      %v1321 = vpack.c.bf16 %v1319, %v1319
      %1322 = vrot.lane.b32.xlu0 %v1046, 28
      %v1323 = vpop.permute.xlu0 %1322
      %1324 = vrot.lane.b32.xlu0 %v1047, 28
      %v1325 = vpop.permute.xlu0 %1324
      %v1328 = vsel %vm1117, %v1320, 0
      %v1331 = vsel %vm1117, %v1321, 0
      %v1334 = vand.u32 %v1325, %v1167
      %1336 = vmatprep.subr.bf16.mxu0 0
      %1337 = vmatpush1.bf16.msra.mxu0 %v1323
      %1338 = vmatprep.subr.bf16.mxu0 0
      %1339 = vmatpush1.bf16.msra.mxu0 %v1334
      %1340 = vmatprep.subr.bf16.mxu0 0
      %1341 = vmatpush1.bf16.msra.mxu0 0
      %1342 = vmatprep.subr.bf16.mxu0 0
      %1343 = vmatpush1.bf16.msra.mxu0 0
      %1344 = vmatprep.subr.bf16.mxu0 0
      %1345 = vmatpush1.bf16.msra.mxu0 0
      %1346 = vmatprep.subr.bf16.mxu0 0
      %1347 = vmatpush1.bf16.msra.mxu0 0
      %1348 = vmatprep.subr.bf16.mxu0 0
      %1349 = vmatpush1.bf16.msra.mxu0 0
      %1350 = vmatprep.subr.bf16.mxu0 0
      %1351 = vmatpush1.bf16.msra.mxu0 0
      %1352 = vmatprep.subr.bf16.mxu0 0
      %1353 = vmatpush1.bf16.msra.mxu0 0
      %1354 = vmatprep.subr.bf16.mxu0 0
      %1355 = vmatpush1.bf16.msra.mxu0 0
      %1356 = vmatprep.subr.bf16.mxu0 0
      %1357 = vmatpush1.bf16.msra.mxu0 0
      %1358 = vmatprep.subr.bf16.mxu0 0
      %1359 = vmatpush1.bf16.msra.mxu0 0
      %1360 = vmatprep.subr.bf16.mxu0 0
      %1361 = vmatpush1.bf16.msra.mxu0 0
      %1362 = vmatprep.subr.bf16.mxu0 0
      %1363 = vmatpush1.bf16.msra.mxu0 0
      %1364 = vmatprep.subr.bf16.mxu0 0
      %1365 = vmatpush1.bf16.msra.mxu0 0
      %1366 = vmatprep.subr.bf16.mxu0 0
      %1367 = vmatpush1.bf16.msra.mxu0 0
      %1368 = vmatprep.mubr.bf16.mxu0 0
      %1369 = vmatmul.mubr.bf16.gmra.mrb[0].mxu0 %v1328
      %v1370 = vpop.f32.mrb[0].mxu0
      %v1371 = vadd.f32 0.0, %v1370
      %v1372 = vpop.f32.mrb[0].mxu0
      %v1373 = vpop.f32.mrb[0].mxu0
      %v1374 = vadd.f32 0.0, %v1373
      %v1375 = vpop.f32.mrb[0].mxu0
      %1376 = vmatprep.mubr.bf16.mxu0 0
      %1377 = vmatmul.mubr.bf16.gmra.mrb[0].mxu0 %v1331
      %v1378 = vpop.f32.mrb[0].mxu0
      %v1379 = vadd.f32 0.0, %v1378
      %v1380 = vpop.f32.mrb[0].mxu0
      %v1381 = vpop.f32.mrb[0].mxu0
      %v1382 = vpop.f32.mrb[0].mxu0
      %1383 = vdwg.mxu0
      %1384 = vrot.lane.b32.xlu0 %v1046, 120
      %v1385 = vpop.permute.xlu0 %1384
      %1386 = vrot.lane.b32.xlu0 %v1047, 120
      %v1387 = vpop.permute.xlu0 %1386
      %1388 = vrot.lane.b32.xlu0 %v1046, 72
      %v1389 = vpop.permute.xlu0 %1388
      %1390 = vrot.lane.b32.xlu0 %v1047, 72
      %v1391 = vpop.permute.xlu0 %1390
      %v1393 = vsel %vm1056, %v1385, 0
      %v1396 = vsel %vm1056, %v1387, 0
      %v1399 = vsel %vm1056, %v1389, 0
      %v1402 = vsel %vm1056, %v1391, 0
      %1404 = vmatprep.subr.bf16.mxu0 0
      %1405 = vmatpush1.bf16.xpose.msra.mxu0 %v1399
      %1406 = vmatprep.subr.bf16.mxu0 0
      %1407 = vmatpush1.bf16.xpose.msra.mxu0 %v1402
      %1408 = vmatprep.subr.bf16.mxu0 0
      %1409 = vmatpush1.bf16.xpose.msra.mxu0 0
      %1410 = vmatprep.subr.bf16.mxu0 0
      %1411 = vmatpush1.bf16.xpose.msra.mxu0 0
      %1412 = vmatprep.subr.bf16.mxu0 0
      %1413 = vmatpush1.bf16.xpose.msra.mxu0 0
      %1414 = vmatprep.subr.bf16.mxu0 0
      %1415 = vmatpush1.bf16.xpose.msra.mxu0 0
      %1416 = vmatprep.subr.bf16.mxu0 0
      %1417 = vmatpush1.bf16.xpose.msra.mxu0 0
      %1418 = vmatprep.subr.bf16.mxu0 0
      %1419 = vmatpush1.bf16.xpose.msra.mxu0 0
      %1420 = vmatprep.subr.bf16.mxu0 0
      %1421 = vmatpush1.bf16.xpose.msra.mxu0 0
      %1422 = vmatprep.subr.bf16.mxu0 0
      %1423 = vmatpush1.bf16.xpose.msra.mxu0 0
      %1424 = vmatprep.subr.bf16.mxu0 0
      %1425 = vmatpush1.bf16.xpose.msra.mxu0 0
      %1426 = vmatprep.subr.bf16.mxu0 0
      %1427 = vmatpush1.bf16.xpose.msra.mxu0 0
      %1428 = vmatprep.subr.bf16.mxu0 0
      %1429 = vmatpush1.bf16.xpose.msra.mxu0 0
      %1430 = vmatprep.subr.bf16.mxu0 0
      %1431 = vmatpush1.bf16.xpose.msra.mxu0 0
      %1432 = vmatprep.subr.bf16.mxu0 0
      %1433 = vmatpush1.bf16.xpose.msra.mxu0 0
      %1434 = vmatprep.subr.bf16.mxu0 0
      %1435 = vmatpush1.bf16.xpose.msra.mxu0 0
      %1436 = vmatprep.mubr.bf16.mxu0 0
      %1437 = vmatmul.mubr.bf16.gmra.mrb[0].mxu0 %v1393
      %v1438 = vpop.f32.mrb[0].mxu0
      %v1439 = vadd.f32 0.0, %v1438
      %v1440 = vpop.f32.mrb[0].mxu0
      %v1441 = vpop.f32.mrb[0].mxu0
      %v1442 = vadd.f32 0.0, %v1441
      %v1443 = vpop.f32.mrb[0].mxu0
      %1444 = vmatprep.mubr.bf16.mxu0 0
      %1445 = vmatmul.mubr.bf16.gmra.mrb[0].mxu0 %v1396
      %v1446 = vpop.f32.mrb[0].mxu0
      %v1447 = vadd.f32 0.0, %v1446
      %v1448 = vpop.f32.mrb[0].mxu0
      %v1449 = vpop.f32.mrb[0].mxu0
      %v1450 = vpop.f32.mrb[0].mxu0
      %1451 = vdwg.mxu0
      %v1452 = vsel %vm1117, %v1439, -inf
      %1453 = vmax.xlane.f32.xlu0 %v1452
      %v1454 = vpop.xlane.xlu0 %1453
      %v1455 = vsel %vm1117, %v1442, -inf
      %1456 = vmax.xlane.f32.xlu0 %v1455
      %v1457 = vpop.xlane.xlu0 %1456
      %v1458 = vsel %vm1124, %v1447, -inf
      %1459 = vmax.xlane.f32.xlu0 %v1458
      %v1460 = vpop.xlane.xlu0 %1459
      %v1461 = vsub.f32 %v1439, %v1454
      %v1462 = vsub.f32 %v1442, %v1457
      %v1463 = vsub.f32 %v1447, %v1460
      %v1464 = vmul.f32 %v1461, 1.442695
      %v1465 = vpow.pop %v1464
      %v1466 = vmul.f32 %v1462, 1.442695
      %v1467 = vpow.pop %v1466
      %v1468 = vmul.f32 %v1463, 1.442695
      %v1469 = vpow.pop %v1468
      %v1470 = vsel %vm1117, %v1465, 0.0
      %1471 = vadd.xlane.f32.xlu0 %v1470
      %v1472 = vpop.xlane.xlu0 %1471
      %v1473 = vsel %vm1117, %v1467, 0.0
      %1474 = vadd.xlane.f32.xlu0 %v1473
      %v1475 = vpop.xlane.xlu0 %1474
      %v1476 = vsel %vm1124, %v1469, 0.0
      %1477 = vadd.xlane.f32.xlu0 %v1476
      %v1478 = vpop.xlane.xlu0 %1477
      %v1479 = vrcp.pop %v1472
      %v1480 = vrcp.pop %v1475
      %v1481 = vrcp.pop %v1478
      %v1482 = vmul.f32 %v1465, %v1479
      %v1483 = vmul.f32 %v1467, %v1480
      %v1484 = vmul.f32 %v1469, %v1481
      %v1485 = vpack.c.bf16 %v1483, %v1482
      %v1486 = vpack.c.bf16 %v1484, %v1484
      %1487 = vrot.lane.b32.xlu0 %v1046, 24
      %v1488 = vpop.permute.xlu0 %1487
      %1489 = vrot.lane.b32.xlu0 %v1047, 24
      %v1490 = vpop.permute.xlu0 %1489
      %v1493 = vsel %vm1117, %v1485, 0
      %v1496 = vsel %vm1117, %v1486, 0
      %v1499 = vand.u32 %v1490, %v1167
      %1501 = vmatprep.subr.bf16.mxu0 0
      %1502 = vmatpush1.bf16.msra.mxu0 %v1488
      %1503 = vmatprep.subr.bf16.mxu0 0
      %1504 = vmatpush1.bf16.msra.mxu0 %v1499
      %1505 = vmatprep.subr.bf16.mxu0 0
      %1506 = vmatpush1.bf16.msra.mxu0 0
      %1507 = vmatprep.subr.bf16.mxu0 0
      %1508 = vmatpush1.bf16.msra.mxu0 0
      %1509 = vmatprep.subr.bf16.mxu0 0
      %1510 = vmatpush1.bf16.msra.mxu0 0
      %1511 = vmatprep.subr.bf16.mxu0 0
      %1512 = vmatpush1.bf16.msra.mxu0 0
      %1513 = vmatprep.subr.bf16.mxu0 0
      %1514 = vmatpush1.bf16.msra.mxu0 0
      %1515 = vmatprep.subr.bf16.mxu0 0
      %1516 = vmatpush1.bf16.msra.mxu0 0
      %1517 = vmatprep.subr.bf16.mxu0 0
      %1518 = vmatpush1.bf16.msra.mxu0 0
      %1519 = vmatprep.subr.bf16.mxu0 0
      %1520 = vmatpush1.bf16.msra.mxu0 0
      %1521 = vmatprep.subr.bf16.mxu0 0
      %1522 = vmatpush1.bf16.msra.mxu0 0
      %1523 = vmatprep.subr.bf16.mxu0 0
      %1524 = vmatpush1.bf16.msra.mxu0 0
      %1525 = vmatprep.subr.bf16.mxu0 0
      %1526 = vmatpush1.bf16.msra.mxu0 0
      %1527 = vmatprep.subr.bf16.mxu0 0
      %1528 = vmatpush1.bf16.msra.mxu0 0
      %1529 = vmatprep.subr.bf16.mxu0 0
      %1530 = vmatpush1.bf16.msra.mxu0 0
      %1531 = vmatprep.subr.bf16.mxu0 0
      %1532 = vmatpush1.bf16.msra.mxu0 0
      %1533 = vmatprep.mubr.bf16.mxu0 0
      %1534 = vmatmul.mubr.bf16.gmra.mrb[0].mxu0 %v1493
      %v1535 = vpop.f32.mrb[0].mxu0
      %v1536 = vadd.f32 0.0, %v1535
      %v1537 = vpop.f32.mrb[0].mxu0
      %v1538 = vpop.f32.mrb[0].mxu0
      %v1539 = vadd.f32 0.0, %v1538
      %v1540 = vpop.f32.mrb[0].mxu0
      %1541 = vmatprep.mubr.bf16.mxu0 0
      %1542 = vmatmul.mubr.bf16.gmra.mrb[0].mxu0 %v1496
      %v1543 = vpop.f32.mrb[0].mxu0
      %v1544 = vadd.f32 0.0, %v1543
      %v1545 = vpop.f32.mrb[0].mxu0
      %v1546 = vpop.f32.mrb[0].mxu0
      %v1547 = vpop.f32.mrb[0].mxu0
      %1548 = vdwg.mxu0
      %1549 = vrot.lane.b32.xlu0 %v1046, 116
      %v1550 = vpop.permute.xlu0 %1549
      %1551 = vrot.lane.b32.xlu0 %v1047, 116
      %v1552 = vpop.permute.xlu0 %1551
      %1553 = vrot.lane.b32.xlu0 %v1046, 68
      %v1554 = vpop.permute.xlu0 %1553
      %1555 = vrot.lane.b32.xlu0 %v1047, 68
      %v1556 = vpop.permute.xlu0 %1555
      %v1558 = vsel %vm1056, %v1550, 0
      %v1561 = vsel %vm1056, %v1552, 0
      %v1564 = vsel %vm1056, %v1554, 0
      %v1567 = vsel %vm1056, %v1556, 0
      %1569 = vmatprep.subr.bf16.mxu0 0
      %1570 = vmatpush1.bf16.xpose.msra.mxu0 %v1564
      %1571 = vmatprep.subr.bf16.mxu0 0
      %1572 = vmatpush1.bf16.xpose.msra.mxu0 %v1567
      %1573 = vmatprep.subr.bf16.mxu0 0
      %1574 = vmatpush1.bf16.xpose.msra.mxu0 0
      %1575 = vmatprep.subr.bf16.mxu0 0
      %1576 = vmatpush1.bf16.xpose.msra.mxu0 0
      %1577 = vmatprep.subr.bf16.mxu0 0
      %1578 = vmatpush1.bf16.xpose.msra.mxu0 0
      %1579 = vmatprep.subr.bf16.mxu0 0
      %1580 = vmatpush1.bf16.xpose.msra.mxu0 0
      %1581 = vmatprep.subr.bf16.mxu0 0
      %1582 = vmatpush1.bf16.xpose.msra.mxu0 0
      %1583 = vmatprep.subr.bf16.mxu0 0
      %1584 = vmatpush1.bf16.xpose.msra.mxu0 0
      %1585 = vmatprep.subr.bf16.mxu0 0
      %1586 = vmatpush1.bf16.xpose.msra.mxu0 0
      %1587 = vmatprep.subr.bf16.mxu0 0
      %1588 = vmatpush1.bf16.xpose.msra.mxu0 0
      %1589 = vmatprep.subr.bf16.mxu0 0
      %1590 = vmatpush1.bf16.xpose.msra.mxu0 0
      %1591 = vmatprep.subr.bf16.mxu0 0
      %1592 = vmatpush1.bf16.xpose.msra.mxu0 0
      %1593 = vmatprep.subr.bf16.mxu0 0
      %1594 = vmatpush1.bf16.xpose.msra.mxu0 0
      %1595 = vmatprep.subr.bf16.mxu0 0
      %1596 = vmatpush1.bf16.xpose.msra.mxu0 0
      %1597 = vmatprep.subr.bf16.mxu0 0
      %1598 = vmatpush1.bf16.xpose.msra.mxu0 0
      %1599 = vmatprep.subr.bf16.mxu0 0
      %1600 = vmatpush1.bf16.xpose.msra.mxu0 0
      %1601 = vmatprep.mubr.bf16.mxu0 0
      %1602 = vmatmul.mubr.bf16.gmra.mrb[0].mxu0 %v1558
      %v1603 = vpop.f32.mrb[0].mxu0
      %v1604 = vadd.f32 0.0, %v1603
      %v1605 = vpop.f32.mrb[0].mxu0
      %v1606 = vpop.f32.mrb[0].mxu0
      %v1607 = vadd.f32 0.0, %v1606
      %v1608 = vpop.f32.mrb[0].mxu0
      %1609 = vmatprep.mubr.bf16.mxu0 0
      %1610 = vmatmul.mubr.bf16.gmra.mrb[0].mxu0 %v1561
      %v1611 = vpop.f32.mrb[0].mxu0
      %v1612 = vadd.f32 0.0, %v1611
      %v1613 = vpop.f32.mrb[0].mxu0
      %v1614 = vpop.f32.mrb[0].mxu0
      %v1615 = vpop.f32.mrb[0].mxu0
      %1616 = vdwg.mxu0
      %v1617 = vsel %vm1117, %v1604, -inf
      %1618 = vmax.xlane.f32.xlu0 %v1617
      %v1619 = vpop.xlane.xlu0 %1618
      %v1620 = vsel %vm1117, %v1607, -inf
      %1621 = vmax.xlane.f32.xlu0 %v1620
      %v1622 = vpop.xlane.xlu0 %1621
      %v1623 = vsel %vm1124, %v1612, -inf
      %1624 = vmax.xlane.f32.xlu0 %v1623
      %v1625 = vpop.xlane.xlu0 %1624
      %v1626 = vsub.f32 %v1604, %v1619
      %v1627 = vsub.f32 %v1607, %v1622
      %v1628 = vsub.f32 %v1612, %v1625
      %v1629 = vmul.f32 %v1626, 1.442695
      %v1630 = vpow.pop %v1629
      %v1631 = vmul.f32 %v1627, 1.442695
      %v1632 = vpow.pop %v1631
      %v1633 = vmul.f32 %v1628, 1.442695
      %v1634 = vpow.pop %v1633
      %v1635 = vsel %vm1117, %v1630, 0.0
      %1636 = vadd.xlane.f32.xlu0 %v1635
      %v1637 = vpop.xlane.xlu0 %1636
      %v1638 = vsel %vm1117, %v1632, 0.0
      %1639 = vadd.xlane.f32.xlu0 %v1638
      %v1640 = vpop.xlane.xlu0 %1639
      %v1641 = vsel %vm1124, %v1634, 0.0
      %1642 = vadd.xlane.f32.xlu0 %v1641
      %v1643 = vpop.xlane.xlu0 %1642
      %v1644 = vrcp.pop %v1637
      %v1645 = vrcp.pop %v1640
      %v1646 = vrcp.pop %v1643
      %v1647 = vmul.f32 %v1630, %v1644
      %v1648 = vmul.f32 %v1632, %v1645
      %v1649 = vmul.f32 %v1634, %v1646
      %v1650 = vpack.c.bf16 %v1648, %v1647
      %v1651 = vpack.c.bf16 %v1649, %v1649
      %1652 = vrot.lane.b32.xlu0 %v1046, 20
      %v1653 = vpop.permute.xlu0 %1652
      %1654 = vrot.lane.b32.xlu0 %v1047, 20
      %v1655 = vpop.permute.xlu0 %1654
      %v1658 = vsel %vm1117, %v1650, 0
      %v1661 = vsel %vm1117, %v1651, 0
      %v1664 = vand.u32 %v1655, %v1167
      %1666 = vmatprep.subr.bf16.mxu0 0
      %1667 = vmatpush1.bf16.msra.mxu0 %v1653
      %1668 = vmatprep.subr.bf16.mxu0 0
      %1669 = vmatpush1.bf16.msra.mxu0 %v1664
      %1670 = vmatprep.subr.bf16.mxu0 0
      %1671 = vmatpush1.bf16.msra.mxu0 0
      %1672 = vmatprep.subr.bf16.mxu0 0
      %1673 = vmatpush1.bf16.msra.mxu0 0
      %1674 = vmatprep.subr.bf16.mxu0 0
      %1675 = vmatpush1.bf16.msra.mxu0 0
      %1676 = vmatprep.subr.bf16.mxu0 0
      %1677 = vmatpush1.bf16.msra.mxu0 0
      %1678 = vmatprep.subr.bf16.mxu0 0
      %1679 = vmatpush1.bf16.msra.mxu0 0
      %1680 = vmatprep.subr.bf16.mxu0 0
      %1681 = vmatpush1.bf16.msra.mxu0 0
      %1682 = vmatprep.subr.bf16.mxu0 0
      %1683 = vmatpush1.bf16.msra.mxu0 0
      %1684 = vmatprep.subr.bf16.mxu0 0
      %1685 = vmatpush1.bf16.msra.mxu0 0
      %1686 = vmatprep.subr.bf16.mxu0 0
      %1687 = vmatpush1.bf16.msra.mxu0 0
      %1688 = vmatprep.subr.bf16.mxu0 0
      %1689 = vmatpush1.bf16.msra.mxu0 0
      %1690 = vmatprep.subr.bf16.mxu0 0
      %1691 = vmatpush1.bf16.msra.mxu0 0
      %1692 = vmatprep.subr.bf16.mxu0 0
      %1693 = vmatpush1.bf16.msra.mxu0 0
      %1694 = vmatprep.subr.bf16.mxu0 0
      %1695 = vmatpush1.bf16.msra.mxu0 0
      %1696 = vmatprep.subr.bf16.mxu0 0
      %1697 = vmatpush1.bf16.msra.mxu0 0
      %1698 = vmatprep.mubr.bf16.mxu0 0
      %1699 = vmatmul.mubr.bf16.gmra.mrb[0].mxu0 %v1658
      %v1700 = vpop.f32.mrb[0].mxu0
      %v1701 = vadd.f32 0.0, %v1700
      %v1702 = vpop.f32.mrb[0].mxu0
      %v1703 = vpop.f32.mrb[0].mxu0
      %v1704 = vadd.f32 0.0, %v1703
      %v1705 = vpop.f32.mrb[0].mxu0
      %1706 = vmatprep.mubr.bf16.mxu0 0
      %1707 = vmatmul.mubr.bf16.gmra.mrb[0].mxu0 %v1661
      %v1708 = vpop.f32.mrb[0].mxu0
      %v1709 = vadd.f32 0.0, %v1708
      %v1710 = vpop.f32.mrb[0].mxu0
      %v1711 = vpop.f32.mrb[0].mxu0
      %v1712 = vpop.f32.mrb[0].mxu0
      %1713 = vdwg.mxu0
      %1714 = vrot.lane.b32.xlu0 %v1046, 112
      %v1715 = vpop.permute.xlu0 %1714
      %1716 = vrot.lane.b32.xlu0 %v1047, 112
      %v1717 = vpop.permute.xlu0 %1716
      %1718 = vrot.lane.b32.xlu0 %v1046, 64
      %v1719 = vpop.permute.xlu0 %1718
      %1720 = vrot.lane.b32.xlu0 %v1047, 64
      %v1721 = vpop.permute.xlu0 %1720
      %v1723 = vsel %vm1056, %v1715, 0
      %v1726 = vsel %vm1056, %v1717, 0
      %v1729 = vsel %vm1056, %v1719, 0
      %v1732 = vsel %vm1056, %v1721, 0
      %1734 = vmatprep.subr.bf16.mxu0 0
      %1735 = vmatpush1.bf16.xpose.msra.mxu0 %v1729
      %1736 = vmatprep.subr.bf16.mxu0 0
      %1737 = vmatpush1.bf16.xpose.msra.mxu0 %v1732
      %1738 = vmatprep.subr.bf16.mxu0 0
      %1739 = vmatpush1.bf16.xpose.msra.mxu0 0
      %1740 = vmatprep.subr.bf16.mxu0 0
      %1741 = vmatpush1.bf16.xpose.msra.mxu0 0
      %1742 = vmatprep.subr.bf16.mxu0 0
      %1743 = vmatpush1.bf16.xpose.msra.mxu0 0
      %1744 = vmatprep.subr.bf16.mxu0 0
      %1745 = vmatpush1.bf16.xpose.msra.mxu0 0
      %1746 = vmatprep.subr.bf16.mxu0 0
      %1747 = vmatpush1.bf16.xpose.msra.mxu0 0
      %1748 = vmatprep.subr.bf16.mxu0 0
      %1749 = vmatpush1.bf16.xpose.msra.mxu0 0
      %1750 = vmatprep.subr.bf16.mxu0 0
      %1751 = vmatpush1.bf16.xpose.msra.mxu0 0
      %1752 = vmatprep.subr.bf16.mxu0 0
      %1753 = vmatpush1.bf16.xpose.msra.mxu0 0
      %1754 = vmatprep.subr.bf16.mxu0 0
      %1755 = vmatpush1.bf16.xpose.msra.mxu0 0
      %1756 = vmatprep.subr.bf16.mxu0 0
      %1757 = vmatpush1.bf16.xpose.msra.mxu0 0
      %1758 = vmatprep.subr.bf16.mxu0 0
      %1759 = vmatpush1.bf16.xpose.msra.mxu0 0
      %1760 = vmatprep.subr.bf16.mxu0 0
      %1761 = vmatpush1.bf16.xpose.msra.mxu0 0
      %1762 = vmatprep.subr.bf16.mxu0 0
      %1763 = vmatpush1.bf16.xpose.msra.mxu0 0
      %1764 = vmatprep.subr.bf16.mxu0 0
      %1765 = vmatpush1.bf16.xpose.msra.mxu0 0
      %1766 = vmatprep.mubr.bf16.mxu0 0
      %1767 = vmatmul.mubr.bf16.gmra.mrb[0].mxu0 %v1723
      %v1768 = vpop.f32.mrb[0].mxu0
      %v1769 = vadd.f32 0.0, %v1768
      %v1770 = vpop.f32.mrb[0].mxu0
      %v1771 = vpop.f32.mrb[0].mxu0
      %v1772 = vadd.f32 0.0, %v1771
      %v1773 = vpop.f32.mrb[0].mxu0
      %1774 = vmatprep.mubr.bf16.mxu0 0
      %1775 = vmatmul.mubr.bf16.gmra.mrb[0].mxu0 %v1726
      %v1776 = vpop.f32.mrb[0].mxu0
      %v1777 = vadd.f32 0.0, %v1776
      %v1778 = vpop.f32.mrb[0].mxu0
      %v1779 = vpop.f32.mrb[0].mxu0
      %v1780 = vpop.f32.mrb[0].mxu0
      %1781 = vdwg.mxu0
      %v1782 = vsel %vm1117, %v1769, -inf
      %1783 = vmax.xlane.f32.xlu0 %v1782
      %v1784 = vpop.xlane.xlu0 %1783
      %v1785 = vsel %vm1117, %v1772, -inf
      %1786 = vmax.xlane.f32.xlu0 %v1785
      %v1787 = vpop.xlane.xlu0 %1786
      %v1788 = vsel %vm1124, %v1777, -inf
      %1789 = vmax.xlane.f32.xlu0 %v1788
      %v1790 = vpop.xlane.xlu0 %1789
      %v1791 = vsub.f32 %v1769, %v1784
      %v1792 = vsub.f32 %v1772, %v1787
      %v1793 = vsub.f32 %v1777, %v1790
      %v1794 = vmul.f32 %v1791, 1.442695
      %v1795 = vpow.pop %v1794
      %v1796 = vmul.f32 %v1792, 1.442695
      %v1797 = vpow.pop %v1796
      %v1798 = vmul.f32 %v1793, 1.442695
      %v1799 = vpow.pop %v1798
      %v1800 = vsel %vm1117, %v1795, 0.0
      %1801 = vadd.xlane.f32.xlu0 %v1800
      %v1802 = vpop.xlane.xlu0 %1801
      %v1803 = vsel %vm1117, %v1797, 0.0
      %1804 = vadd.xlane.f32.xlu0 %v1803
      %v1805 = vpop.xlane.xlu0 %1804
      %v1806 = vsel %vm1124, %v1799, 0.0
      %1807 = vadd.xlane.f32.xlu0 %v1806
      %v1808 = vpop.xlane.xlu0 %1807
      %v1809 = vrcp.pop %v1802
      %v1810 = vrcp.pop %v1805
      %v1811 = vrcp.pop %v1808
      %v1812 = vmul.f32 %v1795, %v1809
      %v1813 = vmul.f32 %v1797, %v1810
      %v1814 = vmul.f32 %v1799, %v1811
      %v1815 = vpack.c.bf16 %v1813, %v1812
      %v1816 = vpack.c.bf16 %v1814, %v1814
      %1817 = vrot.lane.b32.xlu0 %v1046, 16
      %v1818 = vpop.permute.xlu0 %1817
      %1819 = vrot.lane.b32.xlu0 %v1047, 16
      %v1820 = vpop.permute.xlu0 %1819
      %v1823 = vsel %vm1117, %v1815, 0
      %v1826 = vsel %vm1117, %v1816, 0
      %v1829 = vand.u32 %v1820, %v1167
      %1831 = vmatprep.subr.bf16.mxu0 0
      %1832 = vmatpush1.bf16.msra.mxu0 %v1818
      %1833 = vmatprep.subr.bf16.mxu0 0
      %1834 = vmatpush1.bf16.msra.mxu0 %v1829
      %1835 = vmatprep.subr.bf16.mxu0 0
      %1836 = vmatpush1.bf16.msra.mxu0 0
      %1837 = vmatprep.subr.bf16.mxu0 0
      %1838 = vmatpush1.bf16.msra.mxu0 0
      %1839 = vmatprep.subr.bf16.mxu0 0
      %1840 = vmatpush1.bf16.msra.mxu0 0
      %1841 = vmatprep.subr.bf16.mxu0 0
      %1842 = vmatpush1.bf16.msra.mxu0 0
      %1843 = vmatprep.subr.bf16.mxu0 0
      %1844 = vmatpush1.bf16.msra.mxu0 0
      %1845 = vmatprep.subr.bf16.mxu0 0
      %1846 = vmatpush1.bf16.msra.mxu0 0
      %1847 = vmatprep.subr.bf16.mxu0 0
      %1848 = vmatpush1.bf16.msra.mxu0 0
      %1849 = vmatprep.subr.bf16.mxu0 0
      %1850 = vmatpush1.bf16.msra.mxu0 0
      %1851 = vmatprep.subr.bf16.mxu0 0
      %1852 = vmatpush1.bf16.msra.mxu0 0
      %1853 = vmatprep.subr.bf16.mxu0 0
      %1854 = vmatpush1.bf16.msra.mxu0 0
      %1855 = vmatprep.subr.bf16.mxu0 0
      %1856 = vmatpush1.bf16.msra.mxu0 0
      %1857 = vmatprep.subr.bf16.mxu0 0
      %1858 = vmatpush1.bf16.msra.mxu0 0
      %1859 = vmatprep.subr.bf16.mxu0 0
      %1860 = vmatpush1.bf16.msra.mxu0 0
      %1861 = vmatprep.subr.bf16.mxu0 0
      %1862 = vmatpush1.bf16.msra.mxu0 0
      %1863 = vmatprep.mubr.bf16.mxu0 0
      %1864 = vmatmul.mubr.bf16.gmra.mrb[0].mxu0 %v1823
      %v1865 = vpop.f32.mrb[0].mxu0
      %v1866 = vadd.f32 0.0, %v1865
      %v1867 = vpop.f32.mrb[0].mxu0
      %v1868 = vpop.f32.mrb[0].mxu0
      %v1869 = vadd.f32 0.0, %v1868
      %v1870 = vpop.f32.mrb[0].mxu0
      %1871 = vmatprep.mubr.bf16.mxu0 0
      %1872 = vmatmul.mubr.bf16.gmra.mrb[0].mxu0 %v1826
      %v1873 = vpop.f32.mrb[0].mxu0
      %v1874 = vadd.f32 0.0, %v1873
      %v1875 = vpop.f32.mrb[0].mxu0
      %v1876 = vpop.f32.mrb[0].mxu0
      %v1877 = vpop.f32.mrb[0].mxu0
      %1878 = vdwg.mxu0
      %1879 = vrot.lane.b32.xlu0 %v1046, 108
      %v1880 = vpop.permute.xlu0 %1879
      %1881 = vrot.lane.b32.xlu0 %v1047, 108
      %v1882 = vpop.permute.xlu0 %1881
      %1883 = vrot.lane.b32.xlu0 %v1046, 60
      %v1884 = vpop.permute.xlu0 %1883
      %1885 = vrot.lane.b32.xlu0 %v1047, 60
      %v1886 = vpop.permute.xlu0 %1885
      %v1888 = vsel %vm1056, %v1880, 0
      %v1891 = vsel %vm1056, %v1882, 0
      %v1894 = vsel %vm1056, %v1884, 0
      %v1897 = vsel %vm1056, %v1886, 0
      %1899 = vmatprep.subr.bf16.mxu0 0
      %1900 = vmatpush1.bf16.xpose.msra.mxu0 %v1894
      %1901 = vmatprep.subr.bf16.mxu0 0
      %1902 = vmatpush1.bf16.xpose.msra.mxu0 %v1897
      %1903 = vmatprep.subr.bf16.mxu0 0
      %1904 = vmatpush1.bf16.xpose.msra.mxu0 0
      %1905 = vmatprep.subr.bf16.mxu0 0
      %1906 = vmatpush1.bf16.xpose.msra.mxu0 0
      %1907 = vmatprep.subr.bf16.mxu0 0
      %1908 = vmatpush1.bf16.xpose.msra.mxu0 0
      %1909 = vmatprep.subr.bf16.mxu0 0
      %1910 = vmatpush1.bf16.xpose.msra.mxu0 0
      %1911 = vmatprep.subr.bf16.mxu0 0
      %1912 = vmatpush1.bf16.xpose.msra.mxu0 0
      %1913 = vmatprep.subr.bf16.mxu0 0
      %1914 = vmatpush1.bf16.xpose.msra.mxu0 0
      %1915 = vmatprep.subr.bf16.mxu0 0
      %1916 = vmatpush1.bf16.xpose.msra.mxu0 0
      %1917 = vmatprep.subr.bf16.mxu0 0
      %1918 = vmatpush1.bf16.xpose.msra.mxu0 0
      %1919 = vmatprep.subr.bf16.mxu0 0
      %1920 = vmatpush1.bf16.xpose.msra.mxu0 0
      %1921 = vmatprep.subr.bf16.mxu0 0
      %1922 = vmatpush1.bf16.xpose.msra.mxu0 0
      %1923 = vmatprep.subr.bf16.mxu0 0
      %1924 = vmatpush1.bf16.xpose.msra.mxu0 0
      %1925 = vmatprep.subr.bf16.mxu0 0
      %1926 = vmatpush1.bf16.xpose.msra.mxu0 0
      %1927 = vmatprep.subr.bf16.mxu0 0
      %1928 = vmatpush1.bf16.xpose.msra.mxu0 0
      %1929 = vmatprep.subr.bf16.mxu0 0
      %1930 = vmatpush1.bf16.xpose.msra.mxu0 0
      %1931 = vmatprep.mubr.bf16.mxu0 0
      %1932 = vmatmul.mubr.bf16.gmra.mrb[0].mxu0 %v1888
      %v1933 = vpop.f32.mrb[0].mxu0
      %v1934 = vadd.f32 0.0, %v1933
      %v1935 = vpop.f32.mrb[0].mxu0
      %v1936 = vpop.f32.mrb[0].mxu0
      %v1937 = vadd.f32 0.0, %v1936
      %v1938 = vpop.f32.mrb[0].mxu0
      %1939 = vmatprep.mubr.bf16.mxu0 0
      %1940 = vmatmul.mubr.bf16.gmra.mrb[0].mxu0 %v1891
      %v1941 = vpop.f32.mrb[0].mxu0
      %v1942 = vadd.f32 0.0, %v1941
      %v1943 = vpop.f32.mrb[0].mxu0
      %v1944 = vpop.f32.mrb[0].mxu0
      %v1945 = vpop.f32.mrb[0].mxu0
      %1946 = vdwg.mxu0
      %v1947 = vsel %vm1117, %v1934, -inf
      %1948 = vmax.xlane.f32.xlu0 %v1947
      %v1949 = vpop.xlane.xlu0 %1948
      %v1950 = vsel %vm1117, %v1937, -inf
      %1951 = vmax.xlane.f32.xlu0 %v1950
      %v1952 = vpop.xlane.xlu0 %1951
      %v1953 = vsel %vm1124, %v1942, -inf
      %1954 = vmax.xlane.f32.xlu0 %v1953
      %v1955 = vpop.xlane.xlu0 %1954
      %v1956 = vsub.f32 %v1934, %v1949
      %v1957 = vsub.f32 %v1937, %v1952
      %v1958 = vsub.f32 %v1942, %v1955
      %v1959 = vmul.f32 %v1956, 1.442695
      %v1960 = vpow.pop %v1959
      %v1961 = vmul.f32 %v1957, 1.442695
      %v1962 = vpow.pop %v1961
      %v1963 = vmul.f32 %v1958, 1.442695
      %v1964 = vpow.pop %v1963
      %v1965 = vsel %vm1117, %v1960, 0.0
      %1966 = vadd.xlane.f32.xlu0 %v1965
      %v1967 = vpop.xlane.xlu0 %1966
      %v1968 = vsel %vm1117, %v1962, 0.0
      %1969 = vadd.xlane.f32.xlu0 %v1968
      %v1970 = vpop.xlane.xlu0 %1969
      %v1971 = vsel %vm1124, %v1964, 0.0
      %1972 = vadd.xlane.f32.xlu0 %v1971
      %v1973 = vpop.xlane.xlu0 %1972
      %v1974 = vrcp.pop %v1967
      %v1975 = vrcp.pop %v1970
      %v1976 = vrcp.pop %v1973
      %v1977 = vmul.f32 %v1960, %v1974
      %v1978 = vmul.f32 %v1962, %v1975
      %v1979 = vmul.f32 %v1964, %v1976
      %v1980 = vpack.c.bf16 %v1978, %v1977
      %v1981 = vpack.c.bf16 %v1979, %v1979
      %1982 = vrot.lane.b32.xlu0 %v1046, 12
      %v1983 = vpop.permute.xlu0 %1982
      %1984 = vrot.lane.b32.xlu0 %v1047, 12
      %v1985 = vpop.permute.xlu0 %1984
      %v1988 = vsel %vm1117, %v1980, 0
      %v1991 = vsel %vm1117, %v1981, 0
      %v1994 = vand.u32 %v1985, %v1167
      %1996 = vmatprep.subr.bf16.mxu0 0
      %1997 = vmatpush1.bf16.msra.mxu0 %v1983
      %1998 = vmatprep.subr.bf16.mxu0 0
      %1999 = vmatpush1.bf16.msra.mxu0 %v1994
      %2000 = vmatprep.subr.bf16.mxu0 0
      %2001 = vmatpush1.bf16.msra.mxu0 0
      %2002 = vmatprep.subr.bf16.mxu0 0
      %2003 = vmatpush1.bf16.msra.mxu0 0
      %2004 = vmatprep.subr.bf16.mxu0 0
      %2005 = vmatpush1.bf16.msra.mxu0 0
      %2006 = vmatprep.subr.bf16.mxu0 0
      %2007 = vmatpush1.bf16.msra.mxu0 0
      %2008 = vmatprep.subr.bf16.mxu0 0
      %2009 = vmatpush1.bf16.msra.mxu0 0
      %2010 = vmatprep.subr.bf16.mxu0 0
      %2011 = vmatpush1.bf16.msra.mxu0 0
      %2012 = vmatprep.subr.bf16.mxu0 0
      %2013 = vmatpush1.bf16.msra.mxu0 0
      %2014 = vmatprep.subr.bf16.mxu0 0
      %2015 = vmatpush1.bf16.msra.mxu0 0
      %2016 = vmatprep.subr.bf16.mxu0 0
      %2017 = vmatpush1.bf16.msra.mxu0 0
      %2018 = vmatprep.subr.bf16.mxu0 0
      %2019 = vmatpush1.bf16.msra.mxu0 0
      %2020 = vmatprep.subr.bf16.mxu0 0
      %2021 = vmatpush1.bf16.msra.mxu0 0
      %2022 = vmatprep.subr.bf16.mxu0 0
      %2023 = vmatpush1.bf16.msra.mxu0 0
      %2024 = vmatprep.subr.bf16.mxu0 0
      %2025 = vmatpush1.bf16.msra.mxu0 0
      %2026 = vmatprep.subr.bf16.mxu0 0
      %2027 = vmatpush1.bf16.msra.mxu0 0
      %2028 = vmatprep.mubr.bf16.mxu0 0
      %2029 = vmatmul.mubr.bf16.gmra.mrb[0].mxu0 %v1988
      %v2030 = vpop.f32.mrb[0].mxu0
      %v2031 = vadd.f32 0.0, %v2030
      %v2032 = vpop.f32.mrb[0].mxu0
      %v2033 = vpop.f32.mrb[0].mxu0
      %v2034 = vadd.f32 0.0, %v2033
      %v2035 = vpop.f32.mrb[0].mxu0
      %2036 = vmatprep.mubr.bf16.mxu0 0
      %2037 = vmatmul.mubr.bf16.gmra.mrb[0].mxu0 %v1991
      %v2038 = vpop.f32.mrb[0].mxu0
      %v2039 = vadd.f32 0.0, %v2038
      %v2040 = vpop.f32.mrb[0].mxu0
      %v2041 = vpop.f32.mrb[0].mxu0
      %v2042 = vpop.f32.mrb[0].mxu0
      %2043 = vdwg.mxu0
      %2044 = vrot.lane.b32.xlu0 %v1046, 104
      %v2045 = vpop.permute.xlu0 %2044
      %2046 = vrot.lane.b32.xlu0 %v1047, 104
      %v2047 = vpop.permute.xlu0 %2046
      %2048 = vrot.lane.b32.xlu0 %v1046, 56
      %v2049 = vpop.permute.xlu0 %2048
      %2050 = vrot.lane.b32.xlu0 %v1047, 56
      %v2051 = vpop.permute.xlu0 %2050
      %v2053 = vsel %vm1056, %v2045, 0
      %v2056 = vsel %vm1056, %v2047, 0
      %v2059 = vsel %vm1056, %v2049, 0
      %v2062 = vsel %vm1056, %v2051, 0
      %2064 = vmatprep.subr.bf16.mxu0 0
      %2065 = vmatpush1.bf16.xpose.msra.mxu0 %v2059
      %2066 = vmatprep.subr.bf16.mxu0 0
      %2067 = vmatpush1.bf16.xpose.msra.mxu0 %v2062
      %2068 = vmatprep.subr.bf16.mxu0 0
      %2069 = vmatpush1.bf16.xpose.msra.mxu0 0
      %2070 = vmatprep.subr.bf16.mxu0 0
      %2071 = vmatpush1.bf16.xpose.msra.mxu0 0
      %2072 = vmatprep.subr.bf16.mxu0 0
      %2073 = vmatpush1.bf16.xpose.msra.mxu0 0
      %2074 = vmatprep.subr.bf16.mxu0 0
      %2075 = vmatpush1.bf16.xpose.msra.mxu0 0
      %2076 = vmatprep.subr.bf16.mxu0 0
      %2077 = vmatpush1.bf16.xpose.msra.mxu0 0
      %2078 = vmatprep.subr.bf16.mxu0 0
      %2079 = vmatpush1.bf16.xpose.msra.mxu0 0
      %2080 = vmatprep.subr.bf16.mxu0 0
      %2081 = vmatpush1.bf16.xpose.msra.mxu0 0
      %2082 = vmatprep.subr.bf16.mxu0 0
      %2083 = vmatpush1.bf16.xpose.msra.mxu0 0
      %2084 = vmatprep.subr.bf16.mxu0 0
      %2085 = vmatpush1.bf16.xpose.msra.mxu0 0
      %2086 = vmatprep.subr.bf16.mxu0 0
      %2087 = vmatpush1.bf16.xpose.msra.mxu0 0
      %2088 = vmatprep.subr.bf16.mxu0 0
      %2089 = vmatpush1.bf16.xpose.msra.mxu0 0
      %2090 = vmatprep.subr.bf16.mxu0 0
      %2091 = vmatpush1.bf16.xpose.msra.mxu0 0
      %2092 = vmatprep.subr.bf16.mxu0 0
      %2093 = vmatpush1.bf16.xpose.msra.mxu0 0
      %2094 = vmatprep.subr.bf16.mxu0 0
      %2095 = vmatpush1.bf16.xpose.msra.mxu0 0
      %2096 = vmatprep.mubr.bf16.mxu0 0
      %2097 = vmatmul.mubr.bf16.gmra.mrb[0].mxu0 %v2053
      %v2098 = vpop.f32.mrb[0].mxu0
      %v2099 = vadd.f32 0.0, %v2098
      %v2100 = vpop.f32.mrb[0].mxu0
      %v2101 = vpop.f32.mrb[0].mxu0
      %v2102 = vadd.f32 0.0, %v2101
      %v2103 = vpop.f32.mrb[0].mxu0
      %2104 = vmatprep.mubr.bf16.mxu0 0
      %2105 = vmatmul.mubr.bf16.gmra.mrb[0].mxu0 %v2056
      %v2106 = vpop.f32.mrb[0].mxu0
      %v2107 = vadd.f32 0.0, %v2106
      %v2108 = vpop.f32.mrb[0].mxu0
      %v2109 = vpop.f32.mrb[0].mxu0
      %v2110 = vpop.f32.mrb[0].mxu0
      %2111 = vdwg.mxu0
      %v2112 = vsel %vm1117, %v2099, -inf
      %2113 = vmax.xlane.f32.xlu0 %v2112
      %v2114 = vpop.xlane.xlu0 %2113
      %v2115 = vsel %vm1117, %v2102, -inf
      %2116 = vmax.xlane.f32.xlu0 %v2115
      %v2117 = vpop.xlane.xlu0 %2116
      %v2118 = vsel %vm1124, %v2107, -inf
      %2119 = vmax.xlane.f32.xlu0 %v2118
      %v2120 = vpop.xlane.xlu0 %2119
      %v2121 = vsub.f32 %v2099, %v2114
      %v2122 = vsub.f32 %v2102, %v2117
      %v2123 = vsub.f32 %v2107, %v2120
      %v2124 = vmul.f32 %v2121, 1.442695
      %v2125 = vpow.pop %v2124
      %v2126 = vmul.f32 %v2122, 1.442695
      %v2127 = vpow.pop %v2126
      %v2128 = vmul.f32 %v2123, 1.442695
      %v2129 = vpow.pop %v2128
      %v2130 = vsel %vm1117, %v2125, 0.0
      %2131 = vadd.xlane.f32.xlu0 %v2130
      %v2132 = vpop.xlane.xlu0 %2131
      %v2133 = vsel %vm1117, %v2127, 0.0
      %2134 = vadd.xlane.f32.xlu0 %v2133
      %v2135 = vpop.xlane.xlu0 %2134
      %v2136 = vsel %vm1124, %v2129, 0.0
      %2137 = vadd.xlane.f32.xlu0 %v2136
      %v2138 = vpop.xlane.xlu0 %2137
      %v2139 = vrcp.pop %v2132
      %v2140 = vrcp.pop %v2135
      %v2141 = vrcp.pop %v2138
      %v2142 = vmul.f32 %v2125, %v2139
      %v2143 = vmul.f32 %v2127, %v2140
      %v2144 = vmul.f32 %v2129, %v2141
      %v2145 = vpack.c.bf16 %v2143, %v2142
      %v2146 = vpack.c.bf16 %v2144, %v2144
      %2147 = vrot.lane.b32.xlu0 %v1046, 8
      %v2148 = vpop.permute.xlu0 %2147
      %2149 = vrot.lane.b32.xlu0 %v1047, 8
      %v2150 = vpop.permute.xlu0 %2149
      %v2153 = vsel %vm1117, %v2145, 0
      %v2156 = vsel %vm1117, %v2146, 0
      %v2159 = vand.u32 %v2150, %v1167
      %2161 = vmatprep.subr.bf16.mxu0 0
      %2162 = vmatpush1.bf16.msra.mxu0 %v2148
      %2163 = vmatprep.subr.bf16.mxu0 0
      %2164 = vmatpush1.bf16.msra.mxu0 %v2159
      %2165 = vmatprep.subr.bf16.mxu0 0
      %2166 = vmatpush1.bf16.msra.mxu0 0
      %2167 = vmatprep.subr.bf16.mxu0 0
      %2168 = vmatpush1.bf16.msra.mxu0 0
      %2169 = vmatprep.subr.bf16.mxu0 0
      %2170 = vmatpush1.bf16.msra.mxu0 0
      %2171 = vmatprep.subr.bf16.mxu0 0
      %2172 = vmatpush1.bf16.msra.mxu0 0
      %2173 = vmatprep.subr.bf16.mxu0 0
      %2174 = vmatpush1.bf16.msra.mxu0 0
      %2175 = vmatprep.subr.bf16.mxu0 0
      %2176 = vmatpush1.bf16.msra.mxu0 0
      %2177 = vmatprep.subr.bf16.mxu0 0
      %2178 = vmatpush1.bf16.msra.mxu0 0
      %2179 = vmatprep.subr.bf16.mxu0 0
      %2180 = vmatpush1.bf16.msra.mxu0 0
      %2181 = vmatprep.subr.bf16.mxu0 0
      %2182 = vmatpush1.bf16.msra.mxu0 0
      %2183 = vmatprep.subr.bf16.mxu0 0
      %2184 = vmatpush1.bf16.msra.mxu0 0
      %2185 = vmatprep.subr.bf16.mxu0 0
      %2186 = vmatpush1.bf16.msra.mxu0 0
      %2187 = vmatprep.subr.bf16.mxu0 0
      %2188 = vmatpush1.bf16.msra.mxu0 0
      %2189 = vmatprep.subr.bf16.mxu0 0
      %2190 = vmatpush1.bf16.msra.mxu0 0
      %2191 = vmatprep.subr.bf16.mxu0 0
      %2192 = vmatpush1.bf16.msra.mxu0 0
      %2193 = vmatprep.mubr.bf16.mxu0 0
      %2194 = vmatmul.mubr.bf16.gmra.mrb[0].mxu0 %v2153
      %v2195 = vpop.f32.mrb[0].mxu0
      %v2196 = vadd.f32 0.0, %v2195
      %v2197 = vpop.f32.mrb[0].mxu0
      %v2198 = vpop.f32.mrb[0].mxu0
      %v2199 = vadd.f32 0.0, %v2198
      %v2200 = vpop.f32.mrb[0].mxu0
      %2201 = vmatprep.mubr.bf16.mxu0 0
      %2202 = vmatmul.mubr.bf16.gmra.mrb[0].mxu0 %v2156
      %v2203 = vpop.f32.mrb[0].mxu0
      %v2204 = vadd.f32 0.0, %v2203
      %v2205 = vpop.f32.mrb[0].mxu0
      %v2206 = vpop.f32.mrb[0].mxu0
      %v2207 = vpop.f32.mrb[0].mxu0
      %2208 = vdwg.mxu0
      %2209 = vrot.lane.b32.xlu0 %v1046, 100
      %v2210 = vpop.permute.xlu0 %2209
      %2211 = vrot.lane.b32.xlu0 %v1047, 100
      %v2212 = vpop.permute.xlu0 %2211
      %2213 = vrot.lane.b32.xlu0 %v1046, 52
      %v2214 = vpop.permute.xlu0 %2213
      %2215 = vrot.lane.b32.xlu0 %v1047, 52
      %v2216 = vpop.permute.xlu0 %2215
      %v2218 = vsel %vm1056, %v2210, 0
      %v2221 = vsel %vm1056, %v2212, 0
      %v2224 = vsel %vm1056, %v2214, 0
      %v2227 = vsel %vm1056, %v2216, 0
      %2229 = vmatprep.subr.bf16.mxu0 0
      %2230 = vmatpush1.bf16.xpose.msra.mxu0 %v2224
      %2231 = vmatprep.subr.bf16.mxu0 0
      %2232 = vmatpush1.bf16.xpose.msra.mxu0 %v2227
      %2233 = vmatprep.subr.bf16.mxu0 0
      %2234 = vmatpush1.bf16.xpose.msra.mxu0 0
      %2235 = vmatprep.subr.bf16.mxu0 0
      %2236 = vmatpush1.bf16.xpose.msra.mxu0 0
      %2237 = vmatprep.subr.bf16.mxu0 0
      %2238 = vmatpush1.bf16.xpose.msra.mxu0 0
      %2239 = vmatprep.subr.bf16.mxu0 0
      %2240 = vmatpush1.bf16.xpose.msra.mxu0 0
      %2241 = vmatprep.subr.bf16.mxu0 0
      %2242 = vmatpush1.bf16.xpose.msra.mxu0 0
      %2243 = vmatprep.subr.bf16.mxu0 0
      %2244 = vmatpush1.bf16.xpose.msra.mxu0 0
      %2245 = vmatprep.subr.bf16.mxu0 0
      %2246 = vmatpush1.bf16.xpose.msra.mxu0 0
      %2247 = vmatprep.subr.bf16.mxu0 0
      %2248 = vmatpush1.bf16.xpose.msra.mxu0 0
      %2249 = vmatprep.subr.bf16.mxu0 0
      %2250 = vmatpush1.bf16.xpose.msra.mxu0 0
      %2251 = vmatprep.subr.bf16.mxu0 0
      %2252 = vmatpush1.bf16.xpose.msra.mxu0 0
      %2253 = vmatprep.subr.bf16.mxu0 0
      %2254 = vmatpush1.bf16.xpose.msra.mxu0 0
      %2255 = vmatprep.subr.bf16.mxu0 0
      %2256 = vmatpush1.bf16.xpose.msra.mxu0 0
      %2257 = vmatprep.subr.bf16.mxu0 0
      %2258 = vmatpush1.bf16.xpose.msra.mxu0 0
      %2259 = vmatprep.subr.bf16.mxu0 0
      %2260 = vmatpush1.bf16.xpose.msra.mxu0 0
      %2261 = vmatprep.mubr.bf16.mxu0 0
      %2262 = vmatmul.mubr.bf16.gmra.mrb[0].mxu0 %v2218
      %v2263 = vpop.f32.mrb[0].mxu0
      %v2264 = vadd.f32 0.0, %v2263
      %v2265 = vpop.f32.mrb[0].mxu0
      %v2266 = vpop.f32.mrb[0].mxu0
      %v2267 = vadd.f32 0.0, %v2266
      %v2268 = vpop.f32.mrb[0].mxu0
      %2269 = vmatprep.mubr.bf16.mxu0 0
      %2270 = vmatmul.mubr.bf16.gmra.mrb[0].mxu0 %v2221
      %v2271 = vpop.f32.mrb[0].mxu0
      %v2272 = vadd.f32 0.0, %v2271
      %v2273 = vpop.f32.mrb[0].mxu0
      %v2274 = vpop.f32.mrb[0].mxu0
      %v2275 = vpop.f32.mrb[0].mxu0
      %2276 = vdwg.mxu0
      %v2277 = vsel %vm1117, %v2264, -inf
      %2278 = vmax.xlane.f32.xlu0 %v2277
      %v2279 = vpop.xlane.xlu0 %2278
      %v2280 = vsel %vm1117, %v2267, -inf
      %2281 = vmax.xlane.f32.xlu0 %v2280
      %v2282 = vpop.xlane.xlu0 %2281
      %v2283 = vsel %vm1124, %v2272, -inf
      %2284 = vmax.xlane.f32.xlu0 %v2283
      %v2285 = vpop.xlane.xlu0 %2284
      %v2286 = vsub.f32 %v2264, %v2279
      %v2287 = vsub.f32 %v2267, %v2282
      %v2288 = vsub.f32 %v2272, %v2285
      %v2289 = vmul.f32 %v2286, 1.442695
      %v2290 = vpow.pop %v2289
      %v2291 = vmul.f32 %v2287, 1.442695
      %v2292 = vpow.pop %v2291
      %v2293 = vmul.f32 %v2288, 1.442695
      %v2294 = vpow.pop %v2293
      %v2295 = vsel %vm1117, %v2290, 0.0
      %2296 = vadd.xlane.f32.xlu0 %v2295
      %v2297 = vpop.xlane.xlu0 %2296
      %v2298 = vsel %vm1117, %v2292, 0.0
      %2299 = vadd.xlane.f32.xlu0 %v2298
      %v2300 = vpop.xlane.xlu0 %2299
      %v2301 = vsel %vm1124, %v2294, 0.0
      %2302 = vadd.xlane.f32.xlu0 %v2301
      %v2303 = vpop.xlane.xlu0 %2302
      %v2304 = vrcp.pop %v2297
      %v2305 = vrcp.pop %v2300
      %v2306 = vrcp.pop %v2303
      %v2307 = vmul.f32 %v2290, %v2304
      %v2308 = vmul.f32 %v2292, %v2305
      %v2309 = vmul.f32 %v2294, %v2306
      %v2310 = vpack.c.bf16 %v2308, %v2307
      %v2311 = vpack.c.bf16 %v2309, %v2309
      %2312 = vrot.lane.b32.xlu0 %v1046, 4
      %v2313 = vpop.permute.xlu0 %2312
      %2314 = vrot.lane.b32.xlu0 %v1047, 4
      %v2315 = vpop.permute.xlu0 %2314
      %v2318 = vsel %vm1117, %v2310, 0
      %v2321 = vsel %vm1117, %v2311, 0
      %v2324 = vand.u32 %v2315, %v1167
      %2326 = vmatprep.subr.bf16.mxu0 0
      %2327 = vmatpush1.bf16.msra.mxu0 %v2313
      %2328 = vmatprep.subr.bf16.mxu0 0
      %2329 = vmatpush1.bf16.msra.mxu0 %v2324
      %2330 = vmatprep.subr.bf16.mxu0 0
      %2331 = vmatpush1.bf16.msra.mxu0 0
      %2332 = vmatprep.subr.bf16.mxu0 0
      %2333 = vmatpush1.bf16.msra.mxu0 0
      %2334 = vmatprep.subr.bf16.mxu0 0
      %2335 = vmatpush1.bf16.msra.mxu0 0
      %2336 = vmatprep.subr.bf16.mxu0 0
      %2337 = vmatpush1.bf16.msra.mxu0 0
      %2338 = vmatprep.subr.bf16.mxu0 0
      %2339 = vmatpush1.bf16.msra.mxu0 0
      %2340 = vmatprep.subr.bf16.mxu0 0
      %2341 = vmatpush1.bf16.msra.mxu0 0
      %2342 = vmatprep.subr.bf16.mxu0 0
      %2343 = vmatpush1.bf16.msra.mxu0 0
      %2344 = vmatprep.subr.bf16.mxu0 0
      %2345 = vmatpush1.bf16.msra.mxu0 0
      %2346 = vmatprep.subr.bf16.mxu0 0
      %2347 = vmatpush1.bf16.msra.mxu0 0
      %2348 = vmatprep.subr.bf16.mxu0 0
      %2349 = vmatpush1.bf16.msra.mxu0 0
      %2350 = vmatprep.subr.bf16.mxu0 0
      %2351 = vmatpush1.bf16.msra.mxu0 0
      %2352 = vmatprep.subr.bf16.mxu0 0
      %2353 = vmatpush1.bf16.msra.mxu0 0
      %2354 = vmatprep.subr.bf16.mxu0 0
      %2355 = vmatpush1.bf16.msra.mxu0 0
      %2356 = vmatprep.subr.bf16.mxu0 0
      %2357 = vmatpush1.bf16.msra.mxu0 0
      %2358 = vmatprep.mubr.bf16.mxu0 0
      %2359 = vmatmul.mubr.bf16.gmra.mrb[0].mxu0 %v2318
      %v2360 = vpop.f32.mrb[0].mxu0
      %v2361 = vadd.f32 0.0, %v2360
      %v2362 = vpop.f32.mrb[0].mxu0
      %v2363 = vpop.f32.mrb[0].mxu0
      %v2364 = vadd.f32 0.0, %v2363
      %v2365 = vpop.f32.mrb[0].mxu0
      %2366 = vmatprep.mubr.bf16.mxu0 0
      %2367 = vmatmul.mubr.bf16.gmra.mrb[0].mxu0 %v2321
      %v2368 = vpop.f32.mrb[0].mxu0
      %v2369 = vadd.f32 0.0, %v2368
      %v2370 = vpop.f32.mrb[0].mxu0
      %v2371 = vpop.f32.mrb[0].mxu0
      %v2372 = vpop.f32.mrb[0].mxu0
      %2373 = vdwg.mxu0
      %2374 = vrot.lane.b32.xlu0 %v1046, 96
      %v2375 = vpop.permute.xlu0 %2374
      %2376 = vrot.lane.b32.xlu0 %v1047, 96
      %v2377 = vpop.permute.xlu0 %2376
      %2378 = vrot.lane.b32.xlu0 %v1046, 48
      %v2379 = vpop.permute.xlu0 %2378
      %2380 = vrot.lane.b32.xlu0 %v1047, 48
      %v2381 = vpop.permute.xlu0 %2380
      %v2383 = vsel %vm1056, %v2375, 0
      %v2386 = vsel %vm1056, %v2377, 0
      %v2389 = vsel %vm1056, %v2379, 0
      %v2392 = vsel %vm1056, %v2381, 0
      %2394 = vmatprep.subr.bf16.mxu0 0
      %2395 = vmatpush1.bf16.xpose.msra.mxu0 %v2389
      %2396 = vmatprep.subr.bf16.mxu0 0
      %2397 = vmatpush1.bf16.xpose.msra.mxu0 %v2392
      %2398 = vmatprep.subr.bf16.mxu0 0
      %2399 = vmatpush1.bf16.xpose.msra.mxu0 0
      %2400 = vmatprep.subr.bf16.mxu0 0
      %2401 = vmatpush1.bf16.xpose.msra.mxu0 0
      %2402 = vmatprep.subr.bf16.mxu0 0
      %2403 = vmatpush1.bf16.xpose.msra.mxu0 0
      %2404 = vmatprep.subr.bf16.mxu0 0
      %2405 = vmatpush1.bf16.xpose.msra.mxu0 0
      %2406 = vmatprep.subr.bf16.mxu0 0
      %2407 = vmatpush1.bf16.xpose.msra.mxu0 0
      %2408 = vmatprep.subr.bf16.mxu0 0
      %2409 = vmatpush1.bf16.xpose.msra.mxu0 0
      %2410 = vmatprep.subr.bf16.mxu0 0
      %2411 = vmatpush1.bf16.xpose.msra.mxu0 0
      %2412 = vmatprep.subr.bf16.mxu0 0
      %2413 = vmatpush1.bf16.xpose.msra.mxu0 0
      %2414 = vmatprep.subr.bf16.mxu0 0
      %2415 = vmatpush1.bf16.xpose.msra.mxu0 0
      %2416 = vmatprep.subr.bf16.mxu0 0
      %2417 = vmatpush1.bf16.xpose.msra.mxu0 0
      %2418 = vmatprep.subr.bf16.mxu0 0
      %2419 = vmatpush1.bf16.xpose.msra.mxu0 0
      %2420 = vmatprep.subr.bf16.mxu0 0
      %2421 = vmatpush1.bf16.xpose.msra.mxu0 0
      %2422 = vmatprep.subr.bf16.mxu0 0
      %2423 = vmatpush1.bf16.xpose.msra.mxu0 0
      %2424 = vmatprep.subr.bf16.mxu0 0
      %2425 = vmatpush1.bf16.xpose.msra.mxu0 0
      %2426 = vmatprep.mubr.bf16.mxu0 0
      %2427 = vmatmul.mubr.bf16.gmra.mrb[0].mxu0 %v2383
      %v2428 = vpop.f32.mrb[0].mxu0
      %v2429 = vadd.f32 0.0, %v2428
      %v2430 = vpop.f32.mrb[0].mxu0
      %v2431 = vpop.f32.mrb[0].mxu0
      %v2432 = vadd.f32 0.0, %v2431
      %v2433 = vpop.f32.mrb[0].mxu0
      %2434 = vmatprep.mubr.bf16.mxu0 0
      %2435 = vmatmul.mubr.bf16.gmra.mrb[0].mxu0 %v2386
      %v2436 = vpop.f32.mrb[0].mxu0
      %v2437 = vadd.f32 0.0, %v2436
      %v2438 = vpop.f32.mrb[0].mxu0
      %v2439 = vpop.f32.mrb[0].mxu0
      %v2440 = vpop.f32.mrb[0].mxu0
      %2441 = vdwg.mxu0
      %v2442 = vsel %vm1117, %v2429, -inf
      %2443 = vmax.xlane.f32.xlu0 %v2442
      %v2444 = vpop.xlane.xlu0 %2443
      %v2445 = vsel %vm1117, %v2432, -inf
      %2446 = vmax.xlane.f32.xlu0 %v2445
      %v2447 = vpop.xlane.xlu0 %2446
      %v2448 = vsel %vm1124, %v2437, -inf
      %2449 = vmax.xlane.f32.xlu0 %v2448
      %v2450 = vpop.xlane.xlu0 %2449
      %v2451 = vsub.f32 %v2429, %v2444
      %v2452 = vsub.f32 %v2432, %v2447
      %v2453 = vsub.f32 %v2437, %v2450
      %v2454 = vmul.f32 %v2451, 1.442695
      %v2455 = vpow.pop %v2454
      %v2456 = vmul.f32 %v2452, 1.442695
      %v2457 = vpow.pop %v2456
      %v2458 = vmul.f32 %v2453, 1.442695
      %v2459 = vpow.pop %v2458
      %v2460 = vsel %vm1117, %v2455, 0.0
      %2461 = vadd.xlane.f32.xlu0 %v2460
      %v2462 = vpop.xlane.xlu0 %2461
      %v2463 = vsel %vm1117, %v2457, 0.0
      %2464 = vadd.xlane.f32.xlu0 %v2463
      %v2465 = vpop.xlane.xlu0 %2464
      %v2466 = vsel %vm1124, %v2459, 0.0
      %2467 = vadd.xlane.f32.xlu0 %v2466
      %v2468 = vpop.xlane.xlu0 %2467
      %v2469 = vrcp.pop %v2462
      %v2470 = vrcp.pop %v2465
      %v2471 = vrcp.pop %v2468
      %v2472 = vmul.f32 %v2455, %v2469
      %v2473 = vmul.f32 %v2457, %v2470
      %v2474 = vmul.f32 %v2459, %v2471
      %v2475 = vpack.c.bf16 %v2473, %v2472
      %v2476 = vpack.c.bf16 %v2474, %v2474
      %v2478 = vsel %vm1117, %v2475, 0
      %v2481 = vsel %vm1117, %v2476, 0
      %v2484 = vand.u32 %v1049, %v1167
      %2486 = vmatprep.subr.bf16.mxu0 0
      %2487 = vmatpush1.bf16.msra.mxu0 %v1048
      %2488 = vmatprep.subr.bf16.mxu0 0
      %2489 = vmatpush1.bf16.msra.mxu0 %v2484
      %2490 = vmatprep.subr.bf16.mxu0 0
      %2491 = vmatpush1.bf16.msra.mxu0 0
      %2492 = vmatprep.subr.bf16.mxu0 0
      %2493 = vmatpush1.bf16.msra.mxu0 0
      %2494 = vmatprep.subr.bf16.mxu0 0
      %2495 = vmatpush1.bf16.msra.mxu0 0
      %2496 = vmatprep.subr.bf16.mxu0 0
      %2497 = vmatpush1.bf16.msra.mxu0 0
      %2498 = vmatprep.subr.bf16.mxu0 0
      %2499 = vmatpush1.bf16.msra.mxu0 0
      %2500 = vmatprep.subr.bf16.mxu0 0
      %2501 = vmatpush1.bf16.msra.mxu0 0
      %2502 = vmatprep.subr.bf16.mxu0 0
      %2503 = vmatpush1.bf16.msra.mxu0 0
      %2504 = vmatprep.subr.bf16.mxu0 0
      %2505 = vmatpush1.bf16.msra.mxu0 0
      %2506 = vmatprep.subr.bf16.mxu0 0
      %2507 = vmatpush1.bf16.msra.mxu0 0
      %2508 = vmatprep.subr.bf16.mxu0 0
      %2509 = vmatpush1.bf16.msra.mxu0 0
      %2510 = vmatprep.subr.bf16.mxu0 0
      %2511 = vmatpush1.bf16.msra.mxu0 0
      %2512 = vmatprep.subr.bf16.mxu0 0
      %2513 = vmatpush1.bf16.msra.mxu0 0
      %2514 = vmatprep.subr.bf16.mxu0 0
      %2515 = vmatpush1.bf16.msra.mxu0 0
      %2516 = vmatprep.subr.bf16.mxu0 0
      %2517 = vmatpush1.bf16.msra.mxu0 0
      %2518 = vmatprep.mubr.bf16.mxu0 0
      %2519 = vmatmul.mubr.bf16.gmra.mrb[0].mxu0 %v2478
      %v2520 = vpop.f32.mrb[0].mxu0
      %v2521 = vadd.f32 0.0, %v2520
      %v2522 = vpop.f32.mrb[0].mxu0
      %v2523 = vpop.f32.mrb[0].mxu0
      %v2524 = vadd.f32 0.0, %v2523
      %v2525 = vpop.f32.mrb[0].mxu0
      %2526 = vmatprep.mubr.bf16.mxu0 0
      %2527 = vmatmul.mubr.bf16.gmra.mrb[0].mxu0 %v2481
      %v2528 = vpop.f32.mrb[0].mxu0
      %v2529 = vadd.f32 0.0, %v2528
      %v2530 = vpop.f32.mrb[0].mxu0
      %v2531 = vpop.f32.mrb[0].mxu0
      %v2532 = vpop.f32.mrb[0].mxu0
      %2533 = vdwg.mxu0
      %2534 = vrot.lane.b32.xlu0 %v1046, 92
      %v2535 = vpop.permute.xlu0 %2534
      %2536 = vrot.lane.b32.xlu0 %v1047, 92
      %v2537 = vpop.permute.xlu0 %2536
      %2538 = vrot.lane.b32.xlu0 %v1046, 44
      %v2539 = vpop.permute.xlu0 %2538
      %2540 = vrot.lane.b32.xlu0 %v1047, 44
      %v2541 = vpop.permute.xlu0 %2540
      %v2543 = vsel %vm1056, %v2535, 0
      %v2546 = vsel %vm1056, %v2537, 0
      %v2549 = vsel %vm1056, %v2539, 0
      %v2552 = vsel %vm1056, %v2541, 0
      %2554 = vmatprep.subr.bf16.mxu0 0
      %2555 = vmatpush1.bf16.xpose.msra.mxu0 %v2549
      %2556 = vmatprep.subr.bf16.mxu0 0
      %2557 = vmatpush1.bf16.xpose.msra.mxu0 %v2552
      %2558 = vmatprep.subr.bf16.mxu0 0
      %2559 = vmatpush1.bf16.xpose.msra.mxu0 0
      %2560 = vmatprep.subr.bf16.mxu0 0
      %2561 = vmatpush1.bf16.xpose.msra.mxu0 0
      %2562 = vmatprep.subr.bf16.mxu0 0
      %2563 = vmatpush1.bf16.xpose.msra.mxu0 0
      %2564 = vmatprep.subr.bf16.mxu0 0
      %2565 = vmatpush1.bf16.xpose.msra.mxu0 0
      %2566 = vmatprep.subr.bf16.mxu0 0
      %2567 = vmatpush1.bf16.xpose.msra.mxu0 0
      %2568 = vmatprep.subr.bf16.mxu0 0
      %2569 = vmatpush1.bf16.xpose.msra.mxu0 0
      %2570 = vmatprep.subr.bf16.mxu0 0
      %2571 = vmatpush1.bf16.xpose.msra.mxu0 0
      %2572 = vmatprep.subr.bf16.mxu0 0
      %2573 = vmatpush1.bf16.xpose.msra.mxu0 0
      %2574 = vmatprep.subr.bf16.mxu0 0
      %2575 = vmatpush1.bf16.xpose.msra.mxu0 0
      %2576 = vmatprep.subr.bf16.mxu0 0
      %2577 = vmatpush1.bf16.xpose.msra.mxu0 0
      %2578 = vmatprep.subr.bf16.mxu0 0
      %2579 = vmatpush1.bf16.xpose.msra.mxu0 0
      %2580 = vmatprep.subr.bf16.mxu0 0
      %2581 = vmatpush1.bf16.xpose.msra.mxu0 0
      %2582 = vmatprep.subr.bf16.mxu0 0
      %2583 = vmatpush1.bf16.xpose.msra.mxu0 0
      %2584 = vmatprep.subr.bf16.mxu0 0
      %2585 = vmatpush1.bf16.xpose.msra.mxu0 0
      %2586 = vmatprep.mubr.bf16.mxu0 0
      %2587 = vmatmul.mubr.bf16.gmra.mrb[0].mxu0 %v2543
      %v2588 = vpop.f32.mrb[0].mxu0
      %v2589 = vadd.f32 0.0, %v2588
      %v2590 = vpop.f32.mrb[0].mxu0
      %v2591 = vpop.f32.mrb[0].mxu0
      %v2592 = vadd.f32 0.0, %v2591
      %v2593 = vpop.f32.mrb[0].mxu0
      %2594 = vmatprep.mubr.bf16.mxu0 0
      %2595 = vmatmul.mubr.bf16.gmra.mrb[0].mxu0 %v2546
      %v2596 = vpop.f32.mrb[0].mxu0
      %v2597 = vadd.f32 0.0, %v2596
      %v2598 = vpop.f32.mrb[0].mxu0
      %v2599 = vpop.f32.mrb[0].mxu0
      %v2600 = vpop.f32.mrb[0].mxu0
      %2601 = vdwg.mxu0
      %v2602 = vsel %vm1117, %v2589, -inf
      %2603 = vmax.xlane.f32.xlu0 %v2602
      %v2604 = vpop.xlane.xlu0 %2603
      %v2605 = vsel %vm1117, %v2592, -inf
      %2606 = vmax.xlane.f32.xlu0 %v2605
      %v2607 = vpop.xlane.xlu0 %2606
      %v2608 = vsel %vm1124, %v2597, -inf
      %2609 = vmax.xlane.f32.xlu0 %v2608
      %v2610 = vpop.xlane.xlu0 %2609
      %v2611 = vsub.f32 %v2589, %v2604
      %v2612 = vsub.f32 %v2592, %v2607
      %v2613 = vsub.f32 %v2597, %v2610
      %v2614 = vmul.f32 %v2611, 1.442695
      %v2615 = vpow.pop %v2614
      %v2616 = vmul.f32 %v2612, 1.442695
      %v2617 = vpow.pop %v2616
      %v2618 = vmul.f32 %v2613, 1.442695
      %v2619 = vpow.pop %v2618
      %v2620 = vsel %vm1117, %v2615, 0.0
      %2621 = vadd.xlane.f32.xlu0 %v2620
      %v2622 = vpop.xlane.xlu0 %2621
      %v2623 = vsel %vm1117, %v2617, 0.0
      %2624 = vadd.xlane.f32.xlu0 %v2623
      %v2625 = vpop.xlane.xlu0 %2624
      %v2626 = vsel %vm1124, %v2619, 0.0
      %2627 = vadd.xlane.f32.xlu0 %v2626
      %v2628 = vpop.xlane.xlu0 %2627
      %v2629 = vrcp.pop %v2622
      %v2630 = vrcp.pop %v2625
      %v2631 = vrcp.pop %v2628
      %v2632 = vmul.f32 %v2615, %v2629
      %v2633 = vmul.f32 %v2617, %v2630
      %v2634 = vmul.f32 %v2619, %v2631
      %v2635 = vpack.c.bf16 %v2633, %v2632
      %v2636 = vpack.c.bf16 %v2634, %v2634
      %2639 = vrot.lane.b32.xlu0 %v1048, 124
      %v2640 = vpop.permute.xlu0 %2639
      %2641 = vrot.lane.b32.xlu0 %v1049, 124
      %v2642 = vpop.permute.xlu0 %2641
      %v2645 = vsel %vm1117, %v2635, 0
      %v2648 = vsel %vm1117, %v2636, 0
      %v2651 = vand.u32 %v2642, %v1167
      %2653 = vmatprep.subr.bf16.mxu0 0
      %2654 = vmatpush1.bf16.msra.mxu0 %v2640
      %2655 = vmatprep.subr.bf16.mxu0 0
      %2656 = vmatpush1.bf16.msra.mxu0 %v2651
      %2657 = vmatprep.subr.bf16.mxu0 0
      %2658 = vmatpush1.bf16.msra.mxu0 0
      %2659 = vmatprep.subr.bf16.mxu0 0
      %2660 = vmatpush1.bf16.msra.mxu0 0
      %2661 = vmatprep.subr.bf16.mxu0 0
      %2662 = vmatpush1.bf16.msra.mxu0 0
      %2663 = vmatprep.subr.bf16.mxu0 0
      %2664 = vmatpush1.bf16.msra.mxu0 0
      %2665 = vmatprep.subr.bf16.mxu0 0
      %2666 = vmatpush1.bf16.msra.mxu0 0
      %2667 = vmatprep.subr.bf16.mxu0 0
      %2668 = vmatpush1.bf16.msra.mxu0 0
      %2669 = vmatprep.subr.bf16.mxu0 0
      %2670 = vmatpush1.bf16.msra.mxu0 0
      %2671 = vmatprep.subr.bf16.mxu0 0
      %2672 = vmatpush1.bf16.msra.mxu0 0
      %2673 = vmatprep.subr.bf16.mxu0 0
      %2674 = vmatpush1.bf16.msra.mxu0 0
      %2675 = vmatprep.subr.bf16.mxu0 0
      %2676 = vmatpush1.bf16.msra.mxu0 0
      %2677 = vmatprep.subr.bf16.mxu0 0
      %2678 = vmatpush1.bf16.msra.mxu0 0
      %2679 = vmatprep.subr.bf16.mxu0 0
      %2680 = vmatpush1.bf16.msra.mxu0 0
      %2681 = vmatprep.subr.bf16.mxu0 0
      %2682 = vmatpush1.bf16.msra.mxu0 0
      %2683 = vmatprep.subr.bf16.mxu0 0
      %2684 = vmatpush1.bf16.msra.mxu0 0
      %2685 = vmatprep.mubr.bf16.mxu0 0
      %2686 = vmatmul.mubr.bf16.gmra.mrb[0].mxu0 %v2645
      %v2687 = vpop.f32.mrb[0].mxu0
      %v2688 = vadd.f32 0.0, %v2687
      %v2689 = vpop.f32.mrb[0].mxu0
      %v2690 = vpop.f32.mrb[0].mxu0
      %v2691 = vadd.f32 0.0, %v2690
      %v2692 = vpop.f32.mrb[0].mxu0
      %2693 = vmatprep.mubr.bf16.mxu0 0
      %2694 = vmatmul.mubr.bf16.gmra.mrb[0].mxu0 %v2648
      %v2695 = vpop.f32.mrb[0].mxu0
      %v2696 = vadd.f32 0.0, %v2695
      %v2697 = vpop.f32.mrb[0].mxu0
      %v2698 = vpop.f32.mrb[0].mxu0
      %v2699 = vpop.f32.mrb[0].mxu0
      %2700 = vdwg.mxu0
      %2701 = vrot.lane.b32.xlu0 %v1046, 88
      %v2702 = vpop.permute.xlu0 %2701
      %2703 = vrot.lane.b32.xlu0 %v1047, 88
      %v2704 = vpop.permute.xlu0 %2703
      %2705 = vrot.lane.b32.xlu0 %v1046, 40
      %v2706 = vpop.permute.xlu0 %2705
      %2707 = vrot.lane.b32.xlu0 %v1047, 40
      %v2708 = vpop.permute.xlu0 %2707
      %v2710 = vsel %vm1056, %v2702, 0
      %v2713 = vsel %vm1056, %v2704, 0
      %v2716 = vsel %vm1056, %v2706, 0
      %v2719 = vsel %vm1056, %v2708, 0
      %2721 = vmatprep.subr.bf16.mxu0 0
      %2722 = vmatpush1.bf16.xpose.msra.mxu0 %v2716
      %2723 = vmatprep.subr.bf16.mxu0 0
      %2724 = vmatpush1.bf16.xpose.msra.mxu0 %v2719
      %2725 = vmatprep.subr.bf16.mxu0 0
      %2726 = vmatpush1.bf16.xpose.msra.mxu0 0
      %2727 = vmatprep.subr.bf16.mxu0 0
      %2728 = vmatpush1.bf16.xpose.msra.mxu0 0
      %2729 = vmatprep.subr.bf16.mxu0 0
      %2730 = vmatpush1.bf16.xpose.msra.mxu0 0
      %2731 = vmatprep.subr.bf16.mxu0 0
      %2732 = vmatpush1.bf16.xpose.msra.mxu0 0
      %2733 = vmatprep.subr.bf16.mxu0 0
      %2734 = vmatpush1.bf16.xpose.msra.mxu0 0
      %2735 = vmatprep.subr.bf16.mxu0 0
      %2736 = vmatpush1.bf16.xpose.msra.mxu0 0
      %2737 = vmatprep.subr.bf16.mxu0 0
      %2738 = vmatpush1.bf16.xpose.msra.mxu0 0
      %2739 = vmatprep.subr.bf16.mxu0 0
      %2740 = vmatpush1.bf16.xpose.msra.mxu0 0
      %2741 = vmatprep.subr.bf16.mxu0 0
      %2742 = vmatpush1.bf16.xpose.msra.mxu0 0
      %2743 = vmatprep.subr.bf16.mxu0 0
      %2744 = vmatpush1.bf16.xpose.msra.mxu0 0
      %2745 = vmatprep.subr.bf16.mxu0 0
      %2746 = vmatpush1.bf16.xpose.msra.mxu0 0
      %2747 = vmatprep.subr.bf16.mxu0 0
      %2748 = vmatpush1.bf16.xpose.msra.mxu0 0
      %2749 = vmatprep.subr.bf16.mxu0 0
      %2750 = vmatpush1.bf16.xpose.msra.mxu0 0
      %2751 = vmatprep.subr.bf16.mxu0 0
      %2752 = vmatpush1.bf16.xpose.msra.mxu0 0
      %2753 = vmatprep.mubr.bf16.mxu0 0
      %2754 = vmatmul.mubr.bf16.gmra.mrb[0].mxu0 %v2710
      %v2755 = vpop.f32.mrb[0].mxu0
      %v2756 = vadd.f32 0.0, %v2755
      %v2757 = vpop.f32.mrb[0].mxu0
      %v2758 = vpop.f32.mrb[0].mxu0
      %v2759 = vadd.f32 0.0, %v2758
      %v2760 = vpop.f32.mrb[0].mxu0
      %2761 = vmatprep.mubr.bf16.mxu0 0
      %2762 = vmatmul.mubr.bf16.gmra.mrb[0].mxu0 %v2713
      %v2763 = vpop.f32.mrb[0].mxu0
      %v2764 = vadd.f32 0.0, %v2763
      %v2765 = vpop.f32.mrb[0].mxu0
      %v2766 = vpop.f32.mrb[0].mxu0
      %v2767 = vpop.f32.mrb[0].mxu0
      %2768 = vdwg.mxu0
      %v2769 = vsel %vm1117, %v2756, -inf
      %2770 = vmax.xlane.f32.xlu0 %v2769
      %v2771 = vpop.xlane.xlu0 %2770
      %v2772 = vsel %vm1117, %v2759, -inf
      %2773 = vmax.xlane.f32.xlu0 %v2772
      %v2774 = vpop.xlane.xlu0 %2773
      %v2775 = vsel %vm1124, %v2764, -inf
      %2776 = vmax.xlane.f32.xlu0 %v2775
      %v2777 = vpop.xlane.xlu0 %2776
      %v2778 = vsub.f32 %v2756, %v2771
      %v2779 = vsub.f32 %v2759, %v2774
      %v2780 = vsub.f32 %v2764, %v2777
      %v2781 = vmul.f32 %v2778, 1.442695
      %v2782 = vpow.pop %v2781
      %v2783 = vmul.f32 %v2779, 1.442695
      %v2784 = vpow.pop %v2783
      %v2785 = vmul.f32 %v2780, 1.442695
      %v2786 = vpow.pop %v2785
      %v2787 = vsel %vm1117, %v2782, 0.0
      %2788 = vadd.xlane.f32.xlu0 %v2787
      %v2789 = vpop.xlane.xlu0 %2788
      %v2790 = vsel %vm1117, %v2784, 0.0
      %2791 = vadd.xlane.f32.xlu0 %v2790
      %v2792 = vpop.xlane.xlu0 %2791
      %v2793 = vsel %vm1124, %v2786, 0.0
      %2794 = vadd.xlane.f32.xlu0 %v2793
      %v2795 = vpop.xlane.xlu0 %2794
      %v2796 = vrcp.pop %v2789
      %v2797 = vrcp.pop %v2792
      %v2798 = vrcp.pop %v2795
      %v2799 = vmul.f32 %v2782, %v2796
      %v2800 = vmul.f32 %v2784, %v2797
      %v2801 = vmul.f32 %v2786, %v2798
      %v2802 = vpack.c.bf16 %v2800, %v2799
      %v2803 = vpack.c.bf16 %v2801, %v2801
      %2804 = vrot.lane.b32.xlu0 %v1048, 120
      %v2805 = vpop.permute.xlu0 %2804
      %2806 = vrot.lane.b32.xlu0 %v1049, 120
      %v2807 = vpop.permute.xlu0 %2806
      %v2810 = vsel %vm1117, %v2802, 0
      %v2813 = vsel %vm1117, %v2803, 0
      %v2816 = vand.u32 %v2807, %v1167
      %2818 = vmatprep.subr.bf16.mxu0 0
      %2819 = vmatpush1.bf16.msra.mxu0 %v2805
      %2820 = vmatprep.subr.bf16.mxu0 0
      %2821 = vmatpush1.bf16.msra.mxu0 %v2816
      %2822 = vmatprep.subr.bf16.mxu0 0
      %2823 = vmatpush1.bf16.msra.mxu0 0
      %2824 = vmatprep.subr.bf16.mxu0 0
      %2825 = vmatpush1.bf16.msra.mxu0 0
      %2826 = vmatprep.subr.bf16.mxu0 0
      %2827 = vmatpush1.bf16.msra.mxu0 0
      %2828 = vmatprep.subr.bf16.mxu0 0
      %2829 = vmatpush1.bf16.msra.mxu0 0
      %2830 = vmatprep.subr.bf16.mxu0 0
      %2831 = vmatpush1.bf16.msra.mxu0 0
      %2832 = vmatprep.subr.bf16.mxu0 0
      %2833 = vmatpush1.bf16.msra.mxu0 0
      %2834 = vmatprep.subr.bf16.mxu0 0
      %2835 = vmatpush1.bf16.msra.mxu0 0
      %2836 = vmatprep.subr.bf16.mxu0 0
      %2837 = vmatpush1.bf16.msra.mxu0 0
      %2838 = vmatprep.subr.bf16.mxu0 0
      %2839 = vmatpush1.bf16.msra.mxu0 0
      %2840 = vmatprep.subr.bf16.mxu0 0
      %2841 = vmatpush1.bf16.msra.mxu0 0
      %2842 = vmatprep.subr.bf16.mxu0 0
      %2843 = vmatpush1.bf16.msra.mxu0 0
      %2844 = vmatprep.subr.bf16.mxu0 0
      %2845 = vmatpush1.bf16.msra.mxu0 0
      %2846 = vmatprep.subr.bf16.mxu0 0
      %2847 = vmatpush1.bf16.msra.mxu0 0
      %2848 = vmatprep.subr.bf16.mxu0 0
      %2849 = vmatpush1.bf16.msra.mxu0 0
      %2850 = vmatprep.mubr.bf16.mxu0 0
      %2851 = vmatmul.mubr.bf16.gmra.mrb[0].mxu0 %v2810
      %v2852 = vpop.f32.mrb[0].mxu0
      %v2853 = vadd.f32 0.0, %v2852
      %v2854 = vpop.f32.mrb[0].mxu0
      %v2855 = vpop.f32.mrb[0].mxu0
      %v2856 = vadd.f32 0.0, %v2855
      %v2857 = vpop.f32.mrb[0].mxu0
      %2858 = vmatprep.mubr.bf16.mxu0 0
      %2859 = vmatmul.mubr.bf16.gmra.mrb[0].mxu0 %v2813
      %v2860 = vpop.f32.mrb[0].mxu0
      %v2861 = vadd.f32 0.0, %v2860
      %v2862 = vpop.f32.mrb[0].mxu0
      %v2863 = vpop.f32.mrb[0].mxu0
      %v2864 = vpop.f32.mrb[0].mxu0
      %2865 = vdwg.mxu0
      %2866 = vrot.lane.b32.xlu0 %v1046, 84
      %v2867 = vpop.permute.xlu0 %2866
      %2868 = vrot.lane.b32.xlu0 %v1047, 84
      %v2869 = vpop.permute.xlu0 %2868
      %2870 = vrot.lane.b32.xlu0 %v1046, 36
      %v2871 = vpop.permute.xlu0 %2870
      %2872 = vrot.lane.b32.xlu0 %v1047, 36
      %v2873 = vpop.permute.xlu0 %2872
      %v2875 = vsel %vm1056, %v2867, 0
      %v2878 = vsel %vm1056, %v2869, 0
      %v2881 = vsel %vm1056, %v2871, 0
      %v2884 = vsel %vm1056, %v2873, 0
      %2886 = vmatprep.subr.bf16.mxu0 0
      %2887 = vmatpush1.bf16.xpose.msra.mxu0 %v2881
      %2888 = vmatprep.subr.bf16.mxu0 0
      %2889 = vmatpush1.bf16.xpose.msra.mxu0 %v2884
      %2890 = vmatprep.subr.bf16.mxu0 0
      %2891 = vmatpush1.bf16.xpose.msra.mxu0 0
      %2892 = vmatprep.subr.bf16.mxu0 0
      %2893 = vmatpush1.bf16.xpose.msra.mxu0 0
      %2894 = vmatprep.subr.bf16.mxu0 0
      %2895 = vmatpush1.bf16.xpose.msra.mxu0 0
      %2896 = vmatprep.subr.bf16.mxu0 0
      %2897 = vmatpush1.bf16.xpose.msra.mxu0 0
      %2898 = vmatprep.subr.bf16.mxu0 0
      %2899 = vmatpush1.bf16.xpose.msra.mxu0 0
      %2900 = vmatprep.subr.bf16.mxu0 0
      %2901 = vmatpush1.bf16.xpose.msra.mxu0 0
      %2902 = vmatprep.subr.bf16.mxu0 0
      %2903 = vmatpush1.bf16.xpose.msra.mxu0 0
      %2904 = vmatprep.subr.bf16.mxu0 0
      %2905 = vmatpush1.bf16.xpose.msra.mxu0 0
      %2906 = vmatprep.subr.bf16.mxu0 0
      %2907 = vmatpush1.bf16.xpose.msra.mxu0 0
      %2908 = vmatprep.subr.bf16.mxu0 0
      %2909 = vmatpush1.bf16.xpose.msra.mxu0 0
      %2910 = vmatprep.subr.bf16.mxu0 0
      %2911 = vmatpush1.bf16.xpose.msra.mxu0 0
      %2912 = vmatprep.subr.bf16.mxu0 0
      %2913 = vmatpush1.bf16.xpose.msra.mxu0 0
      %2914 = vmatprep.subr.bf16.mxu0 0
      %2915 = vmatpush1.bf16.xpose.msra.mxu0 0
      %2916 = vmatprep.subr.bf16.mxu0 0
      %2917 = vmatpush1.bf16.xpose.msra.mxu0 0
      %2918 = vmatprep.mubr.bf16.mxu0 0
      %2919 = vmatmul.mubr.bf16.gmra.mrb[0].mxu0 %v2875
      %v2920 = vpop.f32.mrb[0].mxu0
      %v2921 = vadd.f32 0.0, %v2920
      %v2922 = vpop.f32.mrb[0].mxu0
      %v2923 = vpop.f32.mrb[0].mxu0
      %v2924 = vadd.f32 0.0, %v2923
      %v2925 = vpop.f32.mrb[0].mxu0
      %2926 = vmatprep.mubr.bf16.mxu0 0
      %2927 = vmatmul.mubr.bf16.gmra.mrb[0].mxu0 %v2878
      %v2928 = vpop.f32.mrb[0].mxu0
      %v2929 = vadd.f32 0.0, %v2928
      %v2930 = vpop.f32.mrb[0].mxu0
      %v2931 = vpop.f32.mrb[0].mxu0
      %v2932 = vpop.f32.mrb[0].mxu0
      %2933 = vdwg.mxu0
      %v2934 = vsel %vm1117, %v2921, -inf
      %2935 = vmax.xlane.f32.xlu0 %v2934
      %v2936 = vpop.xlane.xlu0 %2935
      %v2937 = vsel %vm1117, %v2924, -inf
      %2938 = vmax.xlane.f32.xlu0 %v2937
      %v2939 = vpop.xlane.xlu0 %2938
      %v2940 = vsel %vm1124, %v2929, -inf
      %2941 = vmax.xlane.f32.xlu0 %v2940
      %v2942 = vpop.xlane.xlu0 %2941
      %v2943 = vsub.f32 %v2921, %v2936
      %v2944 = vsub.f32 %v2924, %v2939
      %v2945 = vsub.f32 %v2929, %v2942
      %v2946 = vmul.f32 %v2943, 1.442695
      %v2947 = vpow.pop %v2946
      %v2948 = vmul.f32 %v2944, 1.442695
      %v2949 = vpow.pop %v2948
      %v2950 = vmul.f32 %v2945, 1.442695
      %v2951 = vpow.pop %v2950
      %v2952 = vsel %vm1117, %v2947, 0.0
      %2953 = vadd.xlane.f32.xlu0 %v2952
      %v2954 = vpop.xlane.xlu0 %2953
      %v2955 = vsel %vm1117, %v2949, 0.0
      %2956 = vadd.xlane.f32.xlu0 %v2955
      %v2957 = vpop.xlane.xlu0 %2956
      %v2958 = vsel %vm1124, %v2951, 0.0
      %2959 = vadd.xlane.f32.xlu0 %v2958
      %v2960 = vpop.xlane.xlu0 %2959
      %v2961 = vrcp.pop %v2954
      %v2962 = vrcp.pop %v2957
      %v2963 = vrcp.pop %v2960
      %v2964 = vmul.f32 %v2947, %v2961
      %v2965 = vmul.f32 %v2949, %v2962
      %v2966 = vmul.f32 %v2951, %v2963
      %v2967 = vpack.c.bf16 %v2965, %v2964
      %v2968 = vpack.c.bf16 %v2966, %v2966
      %2969 = vrot.lane.b32.xlu0 %v1048, 116
      %v2970 = vpop.permute.xlu0 %2969
      %2971 = vrot.lane.b32.xlu0 %v1049, 116
      %v2972 = vpop.permute.xlu0 %2971
      %v2975 = vsel %vm1117, %v2967, 0
      %v2978 = vsel %vm1117, %v2968, 0
      %v2981 = vand.u32 %v2972, %v1167
      %2983 = vmatprep.subr.bf16.mxu0 0
      %2984 = vmatpush1.bf16.msra.mxu0 %v2970
      %2985 = vmatprep.subr.bf16.mxu0 0
      %2986 = vmatpush1.bf16.msra.mxu0 %v2981
      %2987 = vmatprep.subr.bf16.mxu0 0
      %2988 = vmatpush1.bf16.msra.mxu0 0
      %2989 = vmatprep.subr.bf16.mxu0 0
      %2990 = vmatpush1.bf16.msra.mxu0 0
      %2991 = vmatprep.subr.bf16.mxu0 0
      %2992 = vmatpush1.bf16.msra.mxu0 0
      %2993 = vmatprep.subr.bf16.mxu0 0
      %2994 = vmatpush1.bf16.msra.mxu0 0
      %2995 = vmatprep.subr.bf16.mxu0 0
      %2996 = vmatpush1.bf16.msra.mxu0 0
      %2997 = vmatprep.subr.bf16.mxu0 0
      %2998 = vmatpush1.bf16.msra.mxu0 0
      %2999 = vmatprep.subr.bf16.mxu0 0
      %3000 = vmatpush1.bf16.msra.mxu0 0
      %3001 = vmatprep.subr.bf16.mxu0 0
      %3002 = vmatpush1.bf16.msra.mxu0 0
      %3003 = vmatprep.subr.bf16.mxu0 0
      %3004 = vmatpush1.bf16.msra.mxu0 0
      %3005 = vmatprep.subr.bf16.mxu0 0
      %3006 = vmatpush1.bf16.msra.mxu0 0
      %3007 = vmatprep.subr.bf16.mxu0 0
      %3008 = vmatpush1.bf16.msra.mxu0 0
      %3009 = vmatprep.subr.bf16.mxu0 0
      %3010 = vmatpush1.bf16.msra.mxu0 0
      %3011 = vmatprep.subr.bf16.mxu0 0
      %3012 = vmatpush1.bf16.msra.mxu0 0
      %3013 = vmatprep.subr.bf16.mxu0 0
      %3014 = vmatpush1.bf16.msra.mxu0 0
      %3015 = vmatprep.mubr.bf16.mxu0 0
      %3016 = vmatmul.mubr.bf16.gmra.mrb[0].mxu0 %v2975
      %v3017 = vpop.f32.mrb[0].mxu0
      %v3018 = vadd.f32 0.0, %v3017
      %v3019 = vpop.f32.mrb[0].mxu0
      %v3020 = vpop.f32.mrb[0].mxu0
      %v3021 = vadd.f32 0.0, %v3020
      %v3022 = vpop.f32.mrb[0].mxu0
      %3023 = vmatprep.mubr.bf16.mxu0 0
      %3024 = vmatmul.mubr.bf16.gmra.mrb[0].mxu0 %v2978
      %v3025 = vpop.f32.mrb[0].mxu0
      %v3026 = vadd.f32 0.0, %v3025
      %v3027 = vpop.f32.mrb[0].mxu0
      %v3028 = vpop.f32.mrb[0].mxu0
      %v3029 = vpop.f32.mrb[0].mxu0
      %3030 = vdwg.mxu0
      %3034 = vrot.lane.b32.xlu0 %v1371, 4
      %v3035 = vpop.permute.xlu0 %3034
      %3036 = vrot.lane.b32.xlu0 %v1374, 4
      %v3037 = vpop.permute.xlu0 %3036
      %3038 = vrot.lane.b32.xlu0 %v1379, 4
      %v3039 = vpop.permute.xlu0 %3038
      %3046 = vrot.lane.b32.xlu0 %v1536, 8
      %v3047 = vpop.permute.xlu0 %3046
      %3048 = vrot.lane.b32.xlu0 %v1539, 8
      %v3049 = vpop.permute.xlu0 %3048
      %3050 = vrot.lane.b32.xlu0 %v1544, 8
      %v3051 = vpop.permute.xlu0 %3050
      %3058 = vrot.lane.b32.xlu0 %v1701, 12
      %v3059 = vpop.permute.xlu0 %3058
      %3060 = vrot.lane.b32.xlu0 %v1704, 12
      %v3061 = vpop.permute.xlu0 %3060
      %3062 = vrot.lane.b32.xlu0 %v1709, 12
      %v3063 = vpop.permute.xlu0 %3062
      %3070 = vrot.lane.b32.xlu0 %v1866, 16
      %v3071 = vpop.permute.xlu0 %3070
      %3072 = vrot.lane.b32.xlu0 %v1869, 16
      %v3073 = vpop.permute.xlu0 %3072
      %3074 = vrot.lane.b32.xlu0 %v1874, 16
      %v3075 = vpop.permute.xlu0 %3074
      %3082 = vrot.lane.b32.xlu0 %v2031, 20
      %v3083 = vpop.permute.xlu0 %3082
      %3084 = vrot.lane.b32.xlu0 %v2034, 20
      %v3085 = vpop.permute.xlu0 %3084
      %3086 = vrot.lane.b32.xlu0 %v2039, 20
      %v3087 = vpop.permute.xlu0 %3086
      %3094 = vrot.lane.b32.xlu0 %v2196, 24
      %v3095 = vpop.permute.xlu0 %3094
      %3096 = vrot.lane.b32.xlu0 %v2199, 24
      %v3097 = vpop.permute.xlu0 %3096
      %3098 = vrot.lane.b32.xlu0 %v2204, 24
      %v3099 = vpop.permute.xlu0 %3098
      %3106 = vrot.lane.b32.xlu0 %v2361, 28
      %v3107 = vpop.permute.xlu0 %3106
      %3108 = vrot.lane.b32.xlu0 %v2364, 28
      %v3109 = vpop.permute.xlu0 %3108
      %3110 = vrot.lane.b32.xlu0 %v2369, 28
      %v3111 = vpop.permute.xlu0 %3110
      %3118 = vrot.lane.b32.xlu0 %v2521, 32
      %v3119 = vpop.permute.xlu0 %3118
      %3120 = vrot.lane.b32.xlu0 %v2524, 32
      %v3121 = vpop.permute.xlu0 %3120
      %3122 = vrot.lane.b32.xlu0 %v2529, 32
      %v3123 = vpop.permute.xlu0 %3122
      %3130 = vrot.lane.b32.xlu0 %v2688, 36
      %v3131 = vpop.permute.xlu0 %3130
      %3132 = vrot.lane.b32.xlu0 %v2691, 36
      %v3133 = vpop.permute.xlu0 %3132
      %3134 = vrot.lane.b32.xlu0 %v2696, 36
      %v3135 = vpop.permute.xlu0 %3134
      %3142 = vrot.lane.b32.xlu0 %v2853, 40
      %v3143 = vpop.permute.xlu0 %3142
      %3144 = vrot.lane.b32.xlu0 %v2856, 40
      %v3145 = vpop.permute.xlu0 %3144
      %3146 = vrot.lane.b32.xlu0 %v2861, 40
      %v3147 = vpop.permute.xlu0 %3146
      %3154 = vrot.lane.b32.xlu0 %v3018, 44
      %v3155 = vpop.permute.xlu0 %3154
      %3156 = vrot.lane.b32.xlu0 %v3021, 44
      %v3157 = vpop.permute.xlu0 %3156
      %3158 = vrot.lane.b32.xlu0 %v3026, 44
      %v3159 = vpop.permute.xlu0 %3158
      %v3163 = vsel %vm1056, %v1206, %v3035
      %v3164 = vsel %vm1056, %v1209, %v3037
      %v3165 = vsel %vm1056, %v1214, %v3039
      %vm3166 = vcmask 64512
      %v3167 = vsel %vm3166, %v3163, %v3047
      %v3168 = vsel %vm3166, %v3164, %v3049
      %v3169 = vsel %vm3166, %v3165, %v3051
      %vm3170 = vcmask 97280
      %v3171 = vsel %vm3170, %v3167, %v3059
      %v3172 = vsel %vm3170, %v3168, %v3061
      %v3173 = vsel %vm3170, %v3169, %v3063
      %vm3174 = vcmask 130048
      %v3175 = vsel %vm3174, %v3171, %v3071
      %v3176 = vsel %vm3174, %v3172, %v3073
      %v3177 = vsel %vm3174, %v3173, %v3075
      %vm3178 = vcmask 162816
      %v3179 = vsel %vm3178, %v3175, %v3083
      %v3180 = vsel %vm3178, %v3176, %v3085
      %v3181 = vsel %vm3178, %v3177, %v3087
      %vm3182 = vcmask 195584
      %v3183 = vsel %vm3182, %v3179, %v3095
      %v3184 = vsel %vm3182, %v3180, %v3097
      %v3185 = vsel %vm3182, %v3181, %v3099
      %vm3186 = vcmask 228352
      %v3187 = vsel %vm3186, %v3183, %v3107
      %v3188 = vsel %vm3186, %v3184, %v3109
      %v3189 = vsel %vm3186, %v3185, %v3111
      %vm3190 = vcmask 261120
      %v3191 = vsel %vm3190, %v3187, %v3119
      %v3192 = vsel %vm3190, %v3188, %v3121
      %v3193 = vsel %vm3190, %v3189, %v3123
      %vm3194 = vcmask 293888
      %v3195 = vsel %vm3194, %v3191, %v3131
      %v3196 = vsel %vm3194, %v3192, %v3133
      %v3197 = vsel %vm3194, %v3193, %v3135
      %vm3198 = vcmask 326656
      %v3199 = vsel %vm3198, %v3195, %v3143
      %v3200 = vsel %vm3198, %v3196, %v3145
      %v3201 = vsel %vm3198, %v3197, %v3147
      %vm3202 = vcmask 359424
      %v3203 = vsel %vm3202, %v3199, %v3155
      %v3204 = vsel %vm3202, %v3200, %v3157
      %v3205 = vsel %vm3202, %v3201, %v3159
      %v3206 = vpack.c.bf16 %v3204, %v3203
      %v3207 = vpack.c.bf16 %v3205, %v3205
      %v3208 = vld [vmem:[%s727] sm:$0xf]
      %v3209 = vld [vmem:[%s727 + $0x4] sm:$0xf]
      %v3210 = vld [vmem:[%s727 + $0x8] sm:$0xf]
      %v3211 = vld [vmem:[%s727 + $0xc] sm:$0xf]
      %v3212 = vld [vmem:[%s727 + $0x10] sm:$0xf]
      %v3213 = vld [vmem:[%s727 + $0x14] sm:$0xf]
      %v3214 = vld [vmem:[%s730] sm:$0x1]
      %v3216 = vlaneseq
      %v3217 = vshrl.u32 %v3216, 7
      %v3218 = vsub.s32 0, %v3217
      %v3219 = vrot.slane %v3214, %v3218
      %v3227 = vunpack.c.l.b16 %v3208
      %v3228 = vunpack.c.l.b16 %v3209
      %v3229 = vunpack.c.l.b16 %v3210
      %v3230 = vunpack.c.l.b16 %v3211
      %v3231 = vunpack.c.l.b16 %v3212
      %v3232 = vunpack.c.l.b16 %v3213
      %v3233 = vpack.c.b16 %v3228, %v3227
      %v3234 = vpack.c.b16 %v3230, %v3229
      %v3235 = vpack.c.b16 %v3232, %v3231
      %v3240 = vsel %vm879, %v3206, 0
      %v3243 = vsel %vm879, %v3207, 0
      %3245 = vmatprep.subr.bf16.mxu0 0
      %3246 = vmatpush1.bf16.msra.mxu0 %v3233
      %3247 = vmatprep.subr.bf16.mxu0 0
      %3248 = vmatpush1.bf16.msra.mxu0 %v3234
      %3249 = vmatprep.subr.bf16.mxu0 0
      %3250 = vmatpush1.bf16.msra.mxu0 %v3235
      %3251 = vmatprep.subr.bf16.mxu0 0
      %3252 = vmatpush1.bf16.msra.mxu0 0
      %3253 = vmatprep.subr.bf16.mxu0 0
      %3254 = vmatpush1.bf16.msra.mxu0 0
      %3255 = vmatprep.subr.bf16.mxu0 0
      %3256 = vmatpush1.bf16.msra.mxu0 0
      %3257 = vmatprep.subr.bf16.mxu0 0
      %3258 = vmatpush1.bf16.msra.mxu0 0
      %3259 = vmatprep.subr.bf16.mxu0 0
      %3260 = vmatpush1.bf16.msra.mxu0 0
      %3261 = vmatprep.subr.bf16.mxu0 0
      %3262 = vmatpush1.bf16.msra.mxu0 0
      %3263 = vmatprep.subr.bf16.mxu0 0
      %3264 = vmatpush1.bf16.msra.mxu0 0
      %3265 = vmatprep.subr.bf16.mxu0 0
      %3266 = vmatpush1.bf16.msra.mxu0 0
      %3267 = vmatprep.subr.bf16.mxu0 0
      %3268 = vmatpush1.bf16.msra.mxu0 0
      %3269 = vmatprep.subr.bf16.mxu0 0
      %3270 = vmatpush1.bf16.msra.mxu0 0
      %3271 = vmatprep.subr.bf16.mxu0 0
      %3272 = vmatpush1.bf16.msra.mxu0 0
      %3273 = vmatprep.subr.bf16.mxu0 0
      %3274 = vmatpush1.bf16.msra.mxu0 0
      %3275 = vmatprep.subr.bf16.mxu0 0
      %3276 = vmatpush1.bf16.msra.mxu0 0
      %3277 = vmatprep.mubr.bf16.mxu0 0
      %3278 = vmatmul.mubr.bf16.gmra.mrb[0].mxu0 %v3240
      %v3279 = vpop.f32.mrb[0].mxu0
      %v3280 = vadd.f32 %v3219, %v3279
      %v3281 = vpop.f32.mrb[0].mxu0
      %v3282 = vpop.f32.mrb[0].mxu0
      %v3283 = vadd.f32 %v3219, %v3282
      %v3284 = vpop.f32.mrb[0].mxu0
      %3285 = vmatprep.mubr.bf16.mxu0 0
      %3286 = vmatmul.mubr.bf16.gmra.mrb[0].mxu0 %v3243
      %v3287 = vpop.f32.mrb[0].mxu0
      %v3288 = vadd.f32 %v3219, %v3287
      %v3289 = vpop.f32.mrb[0].mxu0
      %v3290 = vpop.f32.mrb[0].mxu0
      %v3291 = vpop.f32.mrb[0].mxu0
      %3292 = vdwg.mxu0
      %v3293 = vadd.f32 %v874, %v3280
      %v3294 = vadd.f32 %v875, %v3283
      %v3295 = vadd.f32 %v876, %v3288
      %v3296 = vld [vmem:[%s733] sm:$0x1]
      %v3297 = vld [vmem:[%s736] sm:$0x1]
      %v3298 = vsel %vm879, %v3293, 0.0
      %3299 = vadd.xlane.f32.xlu0 %v3298
      %v3300 = vpop.xlane.xlu0 %3299
      %v3301 = vsel %vm879, %v3294, 0.0
      %3302 = vadd.xlane.f32.xlu0 %v3301
      %v3303 = vpop.xlane.xlu0 %3302
      %v3304 = vsel %vm886, %v3295, 0.0
      %3305 = vadd.xlane.f32.xlu0 %v3304
      %v3306 = vpop.xlane.xlu0 %3305
      %v3307 = vmul.f32 %v3300, %v890
      %v3308 = vmul.f32 %v3303, %v890
      %v3309 = vmul.f32 %v3306, %v890
      %v3310 = vsub.f32 %v3293, %v3307
      %v3311 = vsub.f32 %v3294, %v3308
      %v3312 = vsub.f32 %v3295, %v3309
      %v3313 = vmul.f32 %v3310, %v3310
      %v3314 = vmul.f32 %v3311, %v3311
      %v3315 = vmul.f32 %v3312, %v3312
      %v3316 = vsel %vm879, %v3313, 0.0
      %3317 = vadd.xlane.f32.xlu0 %v3316
      %v3318 = vpop.xlane.xlu0 %3317
      %v3319 = vsel %vm879, %v3314, 0.0
      %3320 = vadd.xlane.f32.xlu0 %v3319
      %v3321 = vpop.xlane.xlu0 %3320
      %v3322 = vsel %vm886, %v3315, 0.0
      %3323 = vadd.xlane.f32.xlu0 %v3322
      %v3324 = vpop.xlane.xlu0 %3323
      %v3325 = vmul.f32 %v3318, %v890
      %v3326 = vmul.f32 %v3321, %v890
      %v3327 = vmul.f32 %v3324, %v890
      %v3328 = vadd.f32 %v3325, 1e-05
      %v3329 = vadd.f32 %v3326, 1e-05
      %v3330 = vadd.f32 %v3327, 1e-05
      %v3331 = vrsqrt.pop %v3328
      %v3332 = vrsqrt.pop %v3329
      %v3333 = vrsqrt.pop %v3330
      %v3334 = vmul.f32 %v3310, %v3331
      %v3335 = vmul.f32 %v3311, %v3332
      %v3336 = vmul.f32 %v3312, %v3333
      %v3338 = vlaneseq
      %v3339 = vshrl.u32 %v3338, 7
      %v3340 = vsub.s32 0, %v3339
      %v3341 = vrot.slane %v3296, %v3340
      %v3343 = vmul.f32 %v3334, %v3341
      %v3344 = vmul.f32 %v3335, %v3341
      %v3345 = vmul.f32 %v3336, %v3341
      %v3347 = vlaneseq
      %v3348 = vshrl.u32 %v3347, 7
      %v3349 = vsub.s32 0, %v3348
      %v3350 = vrot.slane %v3297, %v3349
      %v3352 = vadd.f32 %v3343, %v3350
      %v3353 = vadd.f32 %v3344, %v3350
      %v3354 = vadd.f32 %v3345, %v3350
      %v3355 = vpack.c.bf16 %v3353, %v3352
      %v3356 = vpack.c.bf16 %v3354, %v3354
      %v3357 = vld [vmem:[%s741] sm:$0xff]
      %v3358 = vld [vmem:[%s741 + $0x8] sm:$0xff]
      %v3359 = vld [vmem:[%s741 + $0x10] sm:$0xff]
      %v3360 = vld [vmem:[%s741 + $0x18] sm:$0xff]
      %v3361 = vld [vmem:[%s741 + $0x20] sm:$0xff]
      %v3362 = vld [vmem:[%s741 + $0x28] sm:$0xff]
      %v3363 = vld [vmem:[%s745] sm:$0x3]
      %v3365 = vlaneseq
      %v3366 = vshrl.u32 %v3365, 7
      %v3367 = vsub.s32 0, %v3366
      %v3368 = vrot.slane %v3363, %v3367
      %v3369 = vlaneseq
      %v3370 = vshrl.u32 %v3369, 7
      %v3371 = vsub.s32 1, %v3370
      %v3372 = vrot.slane %v3363, %v3371
      %v3381 = vunpack.c.l.b16 %v3357
      %v3382 = vunpack.c.h.b16 %v3357
      %v3383 = vunpack.c.l.b16 %v3358
      %v3384 = vunpack.c.h.b16 %v3358
      %v3385 = vunpack.c.l.b16 %v3359
      %v3386 = vunpack.c.h.b16 %v3359
      %v3387 = vunpack.c.l.b16 %v3360
      %v3388 = vunpack.c.h.b16 %v3360
      %v3389 = vunpack.c.l.b16 %v3361
      %v3390 = vunpack.c.h.b16 %v3361
      %v3391 = vunpack.c.l.b16 %v3362
      %v3392 = vunpack.c.h.b16 %v3362
      %v3393 = vpack.c.b16 %v3383, %v3381
      %v3394 = vpack.c.b16 %v3384, %v3382
      %v3395 = vpack.c.b16 %v3387, %v3385
      %v3396 = vpack.c.b16 %v3388, %v3386
      %v3397 = vpack.c.b16 %v3391, %v3389
      %v3398 = vpack.c.b16 %v3392, %v3390
      %v3406 = vsel %vm879, %v3355, 0
      %v3409 = vsel %vm879, %v3356, 0
      %3411 = vmatprep.subr.bf16.mxu0 %v3394
      %3412 = vmatpush1.bf16.msra.mxu0 %v3393
      %3413 = vmatprep.subr.bf16.mxu0 %v3396
      %3414 = vmatpush1.bf16.msra.mxu0 %v3395
      %3415 = vmatprep.subr.bf16.mxu0 %v3398
      %3416 = vmatpush1.bf16.msra.mxu0 %v3397
      %3417 = vmatprep.subr.bf16.mxu0 0
      %3418 = vmatpush1.bf16.msra.mxu0 0
      %3419 = vmatprep.subr.bf16.mxu0 0
      %3420 = vmatpush1.bf16.msra.mxu0 0
      %3421 = vmatprep.subr.bf16.mxu0 0
      %3422 = vmatpush1.bf16.msra.mxu0 0
      %3423 = vmatprep.subr.bf16.mxu0 0
      %3424 = vmatpush1.bf16.msra.mxu0 0
      %3425 = vmatprep.subr.bf16.mxu0 0
      %3426 = vmatpush1.bf16.msra.mxu0 0
      %3427 = vmatprep.subr.bf16.mxu0 0
      %3428 = vmatpush1.bf16.msra.mxu0 0
      %3429 = vmatprep.subr.bf16.mxu0 0
      %3430 = vmatpush1.bf16.msra.mxu0 0
      %3431 = vmatprep.subr.bf16.mxu0 0
      %3432 = vmatpush1.bf16.msra.mxu0 0
      %3433 = vmatprep.subr.bf16.mxu0 0
      %3434 = vmatpush1.bf16.msra.mxu0 0
      %3435 = vmatprep.subr.bf16.mxu0 0
      %3436 = vmatpush1.bf16.msra.mxu0 0
      %3437 = vmatprep.subr.bf16.mxu0 0
      %3438 = vmatpush1.bf16.msra.mxu0 0
      %3439 = vmatprep.subr.bf16.mxu0 0
      %3440 = vmatpush1.bf16.msra.mxu0 0
      %3441 = vmatprep.subr.bf16.mxu0 0
      %3442 = vmatpush1.bf16.msra.mxu0 0
      %3443 = vmatprep.mubr.bf16.mxu0 0
      %3444 = vmatmul.mubr.bf16.gmra.mrb[0].mxu0 %v3406
      %v3445 = vpop.f32.mrb[0].mxu0
      %v3446 = vadd.f32 %v3368, %v3445
      %v3447 = vpop.f32.mrb[0].mxu0
      %v3448 = vadd.f32 %v3372, %v3447
      %v3449 = vpop.f32.mrb[0].mxu0
      %v3450 = vadd.f32 %v3368, %v3449
      %v3451 = vpop.f32.mrb[0].mxu0
      %v3452 = vadd.f32 %v3372, %v3451
      %3453 = vmatprep.mubr.bf16.mxu0 0
      %3454 = vmatmul.mubr.bf16.gmra.mrb[0].mxu0 %v3409
      %v3455 = vpop.f32.mrb[0].mxu0
      %v3456 = vadd.f32 %v3368, %v3455
      %v3457 = vpop.f32.mrb[0].mxu0
      %v3458 = vadd.f32 %v3372, %v3457
      %v3459 = vpop.f32.mrb[0].mxu0
      %v3460 = vpop.f32.mrb[0].mxu0
      %3461 = vdwg.mxu0
      %v3462 = vmul.f32 %v3446, %v3446
      %v3463 = vmul.f32 %v3448, %v3448
      %v3464 = vmul.f32 %v3450, %v3450
      %v3465 = vmul.f32 %v3452, %v3452
      %v3466 = vmul.f32 %v3456, %v3456
      %v3467 = vmul.f32 %v3458, %v3458
      %v3468 = vmul.f32 %v3446, %v3462
      %v3469 = vmul.f32 %v3448, %v3463
      %v3470 = vmul.f32 %v3450, %v3464
      %v3471 = vmul.f32 %v3452, %v3465
      %v3472 = vmul.f32 %v3456, %v3466
      %v3473 = vmul.f32 %v3458, %v3467
      %v3474 = vmul.f32 %v3468, 0.044715
      %v3475 = vmul.f32 %v3469, 0.044715
      %v3476 = vmul.f32 %v3470, 0.044715
      %v3477 = vmul.f32 %v3471, 0.044715
      %v3478 = vmul.f32 %v3472, 0.044715
      %v3479 = vmul.f32 %v3473, 0.044715
      %v3480 = vadd.f32 %v3446, %v3474
      %v3481 = vadd.f32 %v3448, %v3475
      %v3482 = vadd.f32 %v3450, %v3476
      %v3483 = vadd.f32 %v3452, %v3477
      %v3484 = vadd.f32 %v3456, %v3478
      %v3485 = vadd.f32 %v3458, %v3479
      %v3486 = vmul.f32 %v3480, 0.7978846
      %v3487 = vmul.f32 %v3481, 0.7978846
      %v3488 = vmul.f32 %v3482, 0.7978846
      %v3489 = vmul.f32 %v3483, 0.7978846
      %v3490 = vmul.f32 %v3484, 0.7978846
      %v3491 = vmul.f32 %v3485, 0.7978846
      %v3492 = vtanh.pop %v3486
      %v3493 = vtanh.pop %v3487
      %v3494 = vtanh.pop %v3488
      %v3495 = vtanh.pop %v3489
      %v3496 = vtanh.pop %v3490
      %v3497 = vtanh.pop %v3491
      %v3498 = vadd.f32 %v3492, 1.0
      %v3499 = vadd.f32 %v3493, 1.0
      %v3500 = vadd.f32 %v3494, 1.0
      %v3501 = vadd.f32 %v3495, 1.0
      %v3502 = vadd.f32 %v3496, 1.0
      %v3503 = vadd.f32 %v3497, 1.0
      %v3504 = vmul.f32 %v3498, 0.5
      %v3505 = vmul.f32 %v3499, 0.5
      %v3506 = vmul.f32 %v3500, 0.5
      %v3507 = vmul.f32 %v3501, 0.5
      %v3508 = vmul.f32 %v3502, 0.5
      %v3509 = vmul.f32 %v3503, 0.5
      %v3510 = vmul.f32 %v3446, %v3504
      %v3511 = vmul.f32 %v3448, %v3505
      %v3512 = vmul.f32 %v3450, %v3506
      %v3513 = vmul.f32 %v3452, %v3507
      %v3514 = vmul.f32 %v3456, %v3508
      %v3515 = vmul.f32 %v3458, %v3509
      %v3516 = vpack.c.bf16 %v3512, %v3510
      %v3517 = vpack.c.bf16 %v3513, %v3511
      %v3518 = vpack.c.bf16 %v3514, %v3514
      %v3519 = vpack.c.bf16 %v3515, %v3515
      %v3520 = vld [vmem:[%s750] sm:$0xf]
      %v3521 = vld [vmem:[%s750 + $0x4] sm:$0xf]
      %v3522 = vld [vmem:[%s750 + $0x8] sm:$0xf]
      %v3523 = vld [vmem:[%s750 + $0xc] sm:$0xf]
      %v3524 = vld [vmem:[%s750 + $0x10] sm:$0xf]
      %v3525 = vld [vmem:[%s750 + $0x14] sm:$0xf]
      %v3526 = vld [vmem:[%s750 + $0x18] sm:$0xf]
      %v3527 = vld [vmem:[%s750 + $0x1c] sm:$0xf]
      %v3528 = vld [vmem:[%s750 + $0x20] sm:$0xf]
      %v3529 = vld [vmem:[%s750 + $0x24] sm:$0xf]
      %v3530 = vld [vmem:[%s750 + $0x28] sm:$0xf]
      %v3531 = vld [vmem:[%s750 + $0x2c] sm:$0xf]
      %v3532 = vld [vmem:[%s750 + $0x30] sm:$0xf]
      %v3533 = vld [vmem:[%s750 + $0x34] sm:$0xf]
      %v3534 = vld [vmem:[%s750 + $0x38] sm:$0xf]
      %v3535 = vld [vmem:[%s750 + $0x3c] sm:$0xf]
      %v3536 = vld [vmem:[%s750 + $0x40] sm:$0xf]
      %v3537 = vld [vmem:[%s750 + $0x44] sm:$0xf]
      %v3538 = vld [vmem:[%s750 + $0x48] sm:$0xf]
      %v3539 = vld [vmem:[%s750 + $0x4c] sm:$0xf]
      %v3540 = vld [vmem:[%s750 + $0x50] sm:$0xf]
      %v3541 = vld [vmem:[%s750 + $0x54] sm:$0xf]
      %v3542 = vld [vmem:[%s750 + $0x58] sm:$0xf]
      %v3543 = vld [vmem:[%s750 + $0x5c] sm:$0xf]
      %v3544 = vld [vmem:[%s753] sm:$0x1]
      %v3546 = vlaneseq
      %v3547 = vshrl.u32 %v3546, 7
      %v3548 = vsub.s32 0, %v3547
      %v3549 = vrot.slane %v3544, %v3548
      %v3575 = vunpack.c.l.b16 %v3520
      %v3576 = vunpack.c.l.b16 %v3521
      %v3577 = vunpack.c.l.b16 %v3522
      %v3578 = vunpack.c.l.b16 %v3523
      %v3579 = vunpack.c.l.b16 %v3524
      %v3580 = vunpack.c.l.b16 %v3525
      %v3581 = vunpack.c.l.b16 %v3526
      %v3582 = vunpack.c.l.b16 %v3527
      %v3583 = vunpack.c.l.b16 %v3528
      %v3584 = vunpack.c.l.b16 %v3529
      %v3585 = vunpack.c.l.b16 %v3530
      %v3586 = vunpack.c.l.b16 %v3531
      %v3587 = vunpack.c.l.b16 %v3532
      %v3588 = vunpack.c.l.b16 %v3533
      %v3589 = vunpack.c.l.b16 %v3534
      %v3590 = vunpack.c.l.b16 %v3535
      %v3591 = vunpack.c.l.b16 %v3536
      %v3592 = vunpack.c.l.b16 %v3537
      %v3593 = vunpack.c.l.b16 %v3538
      %v3594 = vunpack.c.l.b16 %v3539
      %v3595 = vunpack.c.l.b16 %v3540
      %v3596 = vunpack.c.l.b16 %v3541
      %v3597 = vunpack.c.l.b16 %v3542
      %v3598 = vunpack.c.l.b16 %v3543
      %v3599 = vpack.c.b16 %v3576, %v3575
      %v3600 = vpack.c.b16 %v3578, %v3577
      %v3601 = vpack.c.b16 %v3580, %v3579
      %v3602 = vpack.c.b16 %v3582, %v3581
      %v3603 = vpack.c.b16 %v3584, %v3583
      %v3604 = vpack.c.b16 %v3586, %v3585
      %v3605 = vpack.c.b16 %v3588, %v3587
      %v3606 = vpack.c.b16 %v3590, %v3589
      %v3607 = vpack.c.b16 %v3592, %v3591
      %v3608 = vpack.c.b16 %v3594, %v3593
      %v3609 = vpack.c.b16 %v3596, %v3595
      %v3610 = vpack.c.b16 %v3598, %v3597
      %vm3623 = vcmask 523264
      %v3625 = vsel %vm3623, %v3517, 0
      %v3628 = vsel %vm3623, %v3519, 0
      %3630 = vmatprep.subr.bf16.mxu0 0
      %3631 = vmatpush1.bf16.msra.mxu0 %v3599
      %3632 = vmatprep.subr.bf16.mxu0 0
      %3633 = vmatpush1.bf16.msra.mxu0 %v3600
      %3634 = vmatprep.subr.bf16.mxu0 0
      %3635 = vmatpush1.bf16.msra.mxu0 %v3601
      %3636 = vmatprep.subr.bf16.mxu0 0
      %3637 = vmatpush1.bf16.msra.mxu0 %v3602
      %3638 = vmatprep.subr.bf16.mxu0 0
      %3639 = vmatpush1.bf16.msra.mxu0 %v3603
      %3640 = vmatprep.subr.bf16.mxu0 0
      %3641 = vmatpush1.bf16.msra.mxu0 %v3604
      %3642 = vmatprep.subr.bf16.mxu0 0
      %3643 = vmatpush1.bf16.msra.mxu0 %v3605
      %3644 = vmatprep.subr.bf16.mxu0 0
      %3645 = vmatpush1.bf16.msra.mxu0 %v3606
      %3646 = vmatprep.subr.bf16.mxu0 0
      %3647 = vmatpush1.bf16.msra.mxu0 %v3607
      %3648 = vmatprep.subr.bf16.mxu0 0
      %3649 = vmatpush1.bf16.msra.mxu0 %v3608
      %3650 = vmatprep.subr.bf16.mxu0 0
      %3651 = vmatpush1.bf16.msra.mxu0 %v3609
      %3652 = vmatprep.subr.bf16.mxu0 0
      %3653 = vmatpush1.bf16.msra.mxu0 %v3610
      %3654 = vmatprep.subr.bf16.mxu0 0
      %3655 = vmatpush1.bf16.msra.mxu0 0
      %3656 = vmatprep.subr.bf16.mxu0 0
      %3657 = vmatpush1.bf16.msra.mxu0 0
      %3658 = vmatprep.subr.bf16.mxu0 0
      %3659 = vmatpush1.bf16.msra.mxu0 0
      %3660 = vmatprep.subr.bf16.mxu0 0
      %3661 = vmatpush1.bf16.msra.mxu0 0
      %3662 = vmatprep.mubr.bf16.mxu0 %v3625
      %3663 = vmatmul.mubr.bf16.gmra.mrb[0].mxu0 %v3516
      %v3664 = vpop.f32.mrb[0].mxu0
      %v3665 = vadd.f32 %v3549, %v3664
      %v3666 = vpop.f32.mrb[0].mxu0
      %v3667 = vpop.f32.mrb[0].mxu0
      %v3668 = vadd.f32 %v3549, %v3667
      %v3669 = vpop.f32.mrb[0].mxu0
      %3670 = vmatprep.mubr.bf16.mxu0 %v3628
      %3671 = vmatmul.mubr.bf16.gmra.mrb[0].mxu0 %v3518
      %v3672 = vpop.f32.mrb[0].mxu0
      %v3673 = vadd.f32 %v3549, %v3672
      %v3674 = vpop.f32.mrb[0].mxu0
      %v3675 = vpop.f32.mrb[0].mxu0
      %v3676 = vpop.f32.mrb[0].mxu0
      %3677 = vdwg.mxu0
      %v3678 = vadd.f32 %v3293, %v3665
      %v3679 = vadd.f32 %v3294, %v3668
      %v3680 = vadd.f32 %v3295, %v3673
      %3681 = vst.msk [vmem:[#allocation2] sm:$0xff] %vm879, %v3678
      %3682 = vst.msk [vmem:[#allocation2 + $0x8] sm:$0xff] %vm879, %v3679
      %3683 = vst.msk [vmem:[#allocation2 + $0x10] sm:$0x1] %vm886, %v3680
      %p3684 = scmp.eq.s32.totalorder %s33, 11
      // Predicated region
      $region93: #{vit_backbone.1} parent=87 // pred_check
        %p3685 = pneg %p3684
      $region94: #{vit_backbone.1} parent=87 // pred_check_branch
        %3687 = sbr.rel (%p3685) target = $region96
      $region95: #{vit_backbone.1} parent=87 // pred_region
        %3688 = vst.msk [vmem:[%s758] sm:$0xff] %vm879, %v3678
        %3689 = vst.msk [vmem:[%s758 + $0x8] sm:$0xff] %vm879, %v3679
        %3690 = vst.msk [vmem:[%s758 + $0x10] sm:$0x1] %vm886, %v3680
      $region96: #{vit_backbone.1} parent=87 // pred_fallthru
        _
      %p3691 = scmp.lt.s32.totalorder %s32, 1
      %s3692 = scalar_select %p3691, %s32, 1
      %s3693 = smul.addr %s3692, 3
      %s3694 = smul.addr %s3693, 8
      %s3695 = scalar_lea.vmem %s17, %s3694
      // Predicated region
      $region97: #{vit_backbone.1} parent=87 // pred_check
        %p3696 = pneg %p480
      $region98: #{vit_backbone.1} parent=87 // pred_check_branch
        %3698 = sbr.rel (%p3696) target = $region100
      $region99: #{vit_backbone.1} parent=87 // pred_region
        _
      $region100: #{vit_backbone.1} parent=87 // pred_fallthru
        _
    $region88: #{vit_backbone.1} parent=5 // pred_fallthru
      _
    %p3699 = scmp.le.s32.totalorder 2, %s23
    // Predicated region
    $region101: #{vit_backbone.1} parent=5 // pred_check
      %p3700 = pneg %p3699
    $region102: #{vit_backbone.1} parent=5 // pred_check_branch
      %3702 = sbr.rel (%p3700) target = $region104
    $region103: #{vit_backbone.1} parent=5 // pred_region
      %s3703 = ssub.s32 %s23, 2
      // Predicated region
      $region105: #{vit_backbone.1} parent=103 // pred_check
        %p3704 = pneg %p486
      $region106: #{vit_backbone.1} parent=103 // pred_check_branch
        %3706 = sbr.rel (%p3704) target = $region108
      $region107: #{vit_backbone.1} parent=103 // pred_region
        %p3707 = scmp.lt.s32.totalorder %s34, 1
        %s3708 = scalar_select %p3707, %s34, 1
        %s3709 = smul.addr %s3708, 3
        %s3710 = smul.addr %s3709, 8
        %s3711 = scalar_lea.vmem %s17, %s3710
      $region108: #{vit_backbone.1} parent=103 // pred_fallthru
        _
    $region104: #{vit_backbone.1} parent=5 // pred_fallthru
      _
  $region6: #{vit_backbone.1} parent=0 // loop_footer
    %s27 = sadd.s32 1, %s23
  $region7: #{vit_backbone.1} parent=0 // loop_footer_branch
    %22 = sbr.rel target = $region3
  $region8: #{vit_backbone.1} parent=0 // loop_exit
    _

</llo_original>
